<compile_context>
chip_gen: v6e
topology: v6e:2x2x1
jax: 0.10.0
libtpu: 0.0.40
codegen_flags: <defaults>
</compile_context>

<pallas_src>
import functools

import jax
import jax.numpy as jnp
from jax.experimental import pallas as pl
from jax.experimental.pallas import tpu as pltpu


def _round_up(v, m):
    return (v + m - 1) // m * m


# --------------------------------------------------------------------------
# Kernels
# --------------------------------------------------------------------------
def _shortcut_conv_kernel(x_ref, w_ref, b_ref, e_ref, y_ref, o_ref,
                          *, use_fma, two_row_concat):
    # x_ref: (1, Cin, th, Ws)      subsampled input rows (NCHW block)
    # w_ref: (Cout, Cin)           1x1 conv weight
    # b_ref: (Cout, 1)             conv bias
    # e_ref: (Ws, EW)              0/1 nearest-x2 lane-expansion matrix
    #                              EW = 2*Ws (concat path) or 4*Ws (fused path)
    # y_ref: (1, Cout, th, 4*Ws)   residual, viewed as (N, Cout, Hs, 4*Ws)
    # o_ref: (1, Cout, th, 4*Ws)
    _, cin, th, ws = x_ref.shape
    cout = w_ref.shape[0]

    w = w_ref[...].astype(jnp.float32)
    b = b_ref[...].astype(jnp.float32)
    e = e_ref[...]

    for r in range(th):                                       # static unroll (th <= 16)
        xr = x_ref[0, :, r, :].astype(jnp.float32)            # (Cin, Ws)

        if use_fma:
            # Tiny channel counts: Cin broadcast FMAs on the VPU instead of a
            # K=Cin MXU matmul.
            conv = jnp.zeros((cout, ws), jnp.float32)
            for ci in range(cin):
                conv = conv + w[:, ci:ci + 1] * xr[ci:ci + 1, :]
        else:
            conv = jnp.dot(w, xr, preferred_element_type=jnp.float32)
        conv = conv + b                                       # (Cout, Ws)

        # nearest-x2 along W == multiply by the 0/1 expansion matrix (MXU).
        convw = jnp.dot(conv, e, preferred_element_type=jnp.float32)
        if two_row_concat:
            # nearest-x2 along H: output rows 2i and 2i+1 are identical, and in
            # the 4*Ws layout they are the two lane-halves -> lane concat.
            row_pair = jnp.concatenate([convw, convw], axis=-1)   # (Cout, 4Ws)
        else:
            row_pair = convw                                      # already (Cout, 4Ws)

        yr = y_ref[0, :, r, :]
        if o_ref.dtype == jnp.float32:
            out_r = yr.astype(jnp.float32) + row_pair
        else:
            # bf16 residual add (halves VALU/vreg traffic on v6e/v7x)
            out_r = yr + row_pair.astype(o_ref.dtype)
        o_ref[0, :, r, :] = out_r.astype(o_ref.dtype)


def _add_kernel(x_ref, y_ref, o_ref):
    o_ref[...] = x_ref[...] + y_ref[...]


# --------------------------------------------------------------------------
# Tile selection
# --------------------------------------------------------------------------
def _pick_tile_h(n_batch, hs, ws, ew, cin, cout, itemsize):
    """Rows of the subsampled grid handled per kernel step.

    Multiple of 8 (sublane rule) and capped so the double-buffered, lane-padded
    x/y/out blocks stay well under the explicit 32 MiB VMEM limit.
    """
    if hs <= 8:
        return hs
    lane_x = _round_up(ws, 128)
    lane_y = _round_up(4 * ws, 128)
    # weight + bias + expansion matrix, conservatively counted double-buffered
    fixed = 2 * (_round_up(cout, 8) * _round_up(cin, 128) * itemsize
                 + _round_up(cout, 8) * 128 * itemsize
                 + _round_up(ws, 8) * _round_up(ew, 128) * 4)
    budget = 20 * 1024 * 1024 - fixed
    # bytes per 8 rows: double-buffered x block + y block + out block
    per8 = 2 * 8 * (cin * lane_x + 2 * cout * lane_y) * itemsize
    th = 8 * max(1, min(budget // max(per8, 1), 2))           # cap at 16 rows/step
    th = max(8, min(th, (hs // 8) * 8))
    # keep >= 2 grid steps so both v7x TensorCores get work
    while th > 8 and n_batch * ((hs + th - 1) // th) < 2:
        th -= 8
    return th


# --------------------------------------------------------------------------
# Wrappers
# --------------------------------------------------------------------------
@functools.partial(jax.jit, static_argnames=("subsample",))
def u_shortcut_process(x, y, weight, bias, *, subsample=1):
    """process=True branch: conv1x1(stride) -> nearest-upsample(2x) -> + y."""
    n, cin, _, _ = x.shape
    if weight.ndim == 4:                       # accept PyTorch (Cout, Cin, 1, 1)
        weight = weight.reshape(weight.shape[0], weight.shape[1])
    cout = weight.shape[0]

    s = int(subsample)
    x_sub = x if s == 1 else x[:, :, ::s, ::s]          # strided 1x1 conv == dense on subsample
    hs, ws = x_sub.shape[2], x_sub.shape[3]
    assert y.shape == (n, cout, 2 * hs, 2 * ws), (y.shape, (n, cout, 2 * hs, 2 * ws))

    # --- free row-major re-views (no transposes / extra HBM passes) ---
    # (N, Cout, 2Hs, 2Ws) -> (N, Cout, Hs, 4Ws): entry (i, k) is output pixel
    # (2i + k // (2Ws), k % (2Ws)), i.e. the 2x2 footprint of conv row i is one
    # contiguous lane-dense row.
    y4 = y.reshape(n, cout, hs, 4 * ws)
    b2 = bias.reshape(cout, 1)

    # nearest-x2 lane expansion matrix
    two_row_concat = (2 * ws) % 128 == 0       # aligned lane concat is cheap
    ew = 2 * ws if two_row_concat else 4 * ws
    col = jax.lax.broadcasted_iota(jnp.int32, (ws, ew), 1)
    row = jax.lax.broadcasted_iota(jnp.int32, (ws, ew), 0)
    if two_row_concat:
        e = (row == col // 2).astype(jnp.float32)                  # (Ws, 2Ws)
    else:
        e = (row == (col % (2 * ws)) // 2).astype(jnp.float32)     # (Ws, 4Ws)

    itemsize = jnp.dtype(y.dtype).itemsize
    th = _pick_tile_h(n, hs, ws, ew, cin, cout, itemsize)
    grid = (n, pl.cdiv(hs, th))

    kernel = functools.partial(_shortcut_conv_kernel,
                               use_fma=(cin <= 16),
                               two_row_concat=two_row_concat)

    out4 = pl.pallas_call(
        kernel,
        out_shape=jax.ShapeDtypeStruct((n, cout, hs, 4 * ws), y.dtype),
        grid=grid,
        in_specs=[
            pl.BlockSpec((1, cin, th, ws), lambda b, i: (b, 0, i, 0)),
            pl.BlockSpec((cout, cin), lambda b, i: (0, 0)),
            pl.BlockSpec((cout, 1), lambda b, i: (0, 0)),
            pl.BlockSpec((ws, ew), lambda b, i: (0, 0)),
            pl.BlockSpec((1, cout, th, 4 * ws), lambda b, i: (b, 0, i, 0)),
        ],
        out_specs=pl.BlockSpec((1, cout, th, 4 * ws), lambda b, i: (b, 0, i, 0)),
        compiler_params=pltpu.CompilerParams(
            dimension_semantics=("parallel", "parallel"),
            vmem_limit_bytes=32 * 1024 * 1024),
    )(x_sub, weight, b2, e, y4)

    # free re-view back to NCHW
    return out4.reshape(n, cout, 2 * hs, 2 * ws)


@jax.jit
def u_shortcut_identity(x, y):
    """process=False branch: plain x + y, tiled so blocks always fit VMEM."""
    assert x.shape == y.shape
    shape = x.shape
    w_last = shape[-1]
    rows = x.size // w_last
    x2 = x.reshape(rows, w_last)
    y2 = y.reshape(rows, w_last)

    itemsize = jnp.dtype(x.dtype).itemsize
    lane = _round_up(w_last, 128)
    tr_cap = max(8, (2 * 1024 * 1024 // (lane * itemsize)) // 8 * 8)
    tr = rows if rows <= 8 else min((rows // 8) * 8, tr_cap)

    out = pl.pallas_call(
        _add_kernel,
        out_shape=jax.ShapeDtypeStruct((rows, w_last), x.dtype),
        grid=(pl.cdiv(rows, tr),),
        in_specs=[pl.BlockSpec((tr, w_last), lambda i: (i, 0)),
                  pl.BlockSpec((tr, w_last), lambda i: (i, 0))],
        out_specs=pl.BlockSpec((tr, w_last), lambda i: (i, 0)),
        compiler_params=pltpu.CompilerParams(
            dimension_semantics=("parallel",),
            vmem_limit_bytes=32 * 1024 * 1024),
    )(x2, y2)
    return out.reshape(shape)


def u_shortcut(x, y, *, in_filters, nb_filters, subsample, weight=None, bias=None):
    """Forward of `_u_shortcut` (and the identity branch of `_shortcut`)."""
    if in_filters != nb_filters:
        assert weight is not None and bias is not None
        return u_shortcut_process(x, y, weight, bias, subsample=subsample)
    return u_shortcut_identity(x, y)


# --------------------------------------------------------------------------
# Pure-jnp reference
# --------------------------------------------------------------------------
def _reference(x, y, weight, bias, subsample):
    s = subsample
    x_sub = x[:, :, ::s, ::s]                                       # (N,Cin,Hs,Ws)
    conv = (x_sub[:, None, :, :, :].astype(jnp.float32)
            * weight[None, :, :, None, None].astype(jnp.float32)).sum(axis=2)
    conv = conv + bias[None, :, None, None].astype(jnp.float32)
    up = jnp.repeat(jnp.repeat(conv, 2, axis=2), 2, axis=3)         # nearest x2
    return (up + y.astype(jnp.float32)).astype(y.dtype)


if __name__ == "__main__":
    key = jax.random.PRNGKey(0)
    k_x, k_y, k_w, k_b, k_x2, k_y2, k_w2, k_b2 = jax.random.split(key, 8)

    # ---- case 1: process=True as used in _u_basic_block (subsample=1,
    #      tiny channels -> VPU-FMA conv path, aligned lane-concat path)
    N, Cin, Cout, H, W = 2, 4, 8, 32, 64
    x = jax.random.normal(k_x, (N, Cin, H, W), dtype=jnp.float32)
    y = jax.random.normal(k_y, (N, Cout, 2 * H, 2 * W), dtype=jnp.float32)
    weight = jax.random.normal(k_w, (Cout, Cin), dtype=jnp.float32) * 0.1
    bias = jax.random.normal(k_b, (Cout,), dtype=jnp.float32) * 0.1

    out = jax.block_until_ready(
        u_shortcut(x, y, in_filters=Cin, nb_filters=Cout, subsample=1,
                   weight=weight, bias=bias))
    ref = _reference(x, y, weight, bias, 1)
    assert out.shape == ref.shape == (N, Cout, 2 * H, 2 * W)
    # tolerance covers TPU MXU f32 matmul rounding of the expansion dot
    assert jnp.allclose(out, ref, atol=5e-3, rtol=5e-3), \
        float(jnp.max(jnp.abs(out - ref)))

    # ---- case 2: larger channels (MXU conv path), subsample=2, fused-expansion path
    N2, Cin2, Cout2, H2, W2, s2 = 1, 32, 16, 16, 16, 2
    Hs2, Ws2 = H2 // s2, W2 // s2
    x2 = jax.random.normal(k_x2, (N2, Cin2, H2, W2), dtype=jnp.float32)
    y2 = jax.random.normal(k_y2, (N2, Cout2, 2 * Hs2, 2 * Ws2), dtype=jnp.float32)
    weight2 = jax.random.normal(k_w2, (Cout2, Cin2), dtype=jnp.float32) * 0.1
    bias2 = jax.random.normal(k_b2, (Cout2,), dtype=jnp.float32) * 0.1

    out2 = jax.block_until_ready(
        u_shortcut(x2, y2, in_filters=Cin2, nb_filters=Cout2, subsample=s2,
                   weight=weight2, bias=bias2))
    ref2 = _reference(x2, y2, weight2, bias2, s2)
    assert jnp.allclose(out2, ref2, atol=1e-2, rtol=1e-2), \
        float(jnp.max(jnp.abs(out2 - ref2)))

    # ---- case 3: identity shortcut (process=False): x + y
    out3 = jax.block_until_ready(
        u_shortcut(y, y, in_filters=Cout, nb_filters=Cout, subsample=1))
    assert jnp.allclose(out3, y + y, atol=1e-6)

    print("KERNEL_OK")
</pallas_src>

<mosaic_0001>
module attributes {stable_mosaic.version = 11 : i64} {
  func.func @_shortcut_conv_kernel(%arg0: i32, %arg1: i32, %arg2: memref<1x4x16x64xf32, #tpu.memory_space<vmem>>, %arg3: memref<8x4xf32, #tpu.memory_space<vmem>>, %arg4: memref<8x1xf32, #tpu.memory_space<vmem>>, %arg5: memref<64x128xf32, #tpu.memory_space<vmem>>, %arg6: memref<1x8x16x256xf32, #tpu.memory_space<vmem>>, %arg7: memref<1x8x16x256xf32, #tpu.memory_space<vmem>>) attributes {dimension_semantics = [#tpu.dimension_semantics<parallel>, #tpu.dimension_semantics<parallel>], iteration_bounds = array<i64: 2, 2>, scalar_prefetch = 0 : i64, scratch_operands = 0 : i64, tpu.core_type = #tpu.core_type<tc>, window_params = [{transform_indices = @transform_0, window_bounds = array<i64: 1, 4, 16, 64>}, {pipeline_mode = #tpu.pipeline_mode<synchronous>, transform_indices = @transform_1, window_bounds = array<i64: 8, 4>}, {pipeline_mode = #tpu.pipeline_mode<synchronous>, transform_indices = @transform_2, window_bounds = array<i64: 8, 1>}, {pipeline_mode = #tpu.pipeline_mode<synchronous>, transform_indices = @transform_3, window_bounds = array<i64: 64, 128>}, {transform_indices = @transform_4, window_bounds = array<i64: 1, 8, 16, 256>}, {transform_indices = @transform_5, window_bounds = array<i64: 1, 8, 16, 256>}]} {
    %c0 = arith.constant 0 : index
    %c0_0 = arith.constant 0 : index
    %0 = vector.load %arg3[%c0, %c0_0] : memref<8x4xf32, #tpu.memory_space<vmem>>, vector<8x4xf32>
    %c0_1 = arith.constant 0 : index
    %c0_2 = arith.constant 0 : index
    %1 = vector.load %arg4[%c0_1, %c0_2] : memref<8x1xf32, #tpu.memory_space<vmem>>, vector<8x1xf32>
    %c0_3 = arith.constant 0 : index
    %c0_4 = arith.constant 0 : index
    %2 = vector.load %arg5[%c0_3, %c0_4] : memref<64x128xf32, #tpu.memory_space<vmem>>, vector<64x128xf32>
    %c0_5 = arith.constant 0 : index
    %c0_6 = arith.constant 0 : index
    %c0_7 = arith.constant 0 : index
    %c0_8 = arith.constant 0 : index
    %3 = vector.load %arg2[%c0_5, %c0_6, %c0_7, %c0_8] : memref<1x4x16x64xf32, #tpu.memory_space<vmem>>, vector<1x4x1x64xf32>
    %4 = vector.shape_cast %3 : vector<1x4x1x64xf32> to vector<4x64xf32>
    %cst = arith.constant 0.000000e+00 : f32
    %5 = vector.broadcast %cst : f32 to vector<8x64xf32>
    %6 = vector.extract_strided_slice %0 {offsets = [0, 0], sizes = [8, 1], strides = [1, 1]} : vector<8x4xf32> to vector<8x1xf32>
    %7 = vector.extract_strided_slice %4 {offsets = [0, 0], sizes = [1, 64], strides = [1, 1]} : vector<4x64xf32> to vector<1x64xf32>
    %8 = vector.broadcast %6 : vector<8x1xf32> to vector<8x64xf32>
    %9 = vector.broadcast %7 : vector<1x64xf32> to vector<8x64xf32>
    %10 = arith.mulf %8, %9 : vector<8x64xf32>
    %11 = arith.addf %5, %10 : vector<8x64xf32>
    %12 = vector.extract_strided_slice %0 {offsets = [0, 1], sizes = [8, 1], strides = [1, 1]} : vector<8x4xf32> to vector<8x1xf32>
    %13 = vector.extract_strided_slice %4 {offsets = [1, 0], sizes = [1, 64], strides = [1, 1]} : vector<4x64xf32> to vector<1x64xf32>
    %14 = vector.broadcast %12 : vector<8x1xf32> to vector<8x64xf32>
    %15 = vector.broadcast %13 : vector<1x64xf32> to vector<8x64xf32>
    %16 = arith.mulf %14, %15 : vector<8x64xf32>
    %17 = arith.addf %11, %16 : vector<8x64xf32>
    %18 = vector.extract_strided_slice %0 {offsets = [0, 2], sizes = [8, 1], strides = [1, 1]} : vector<8x4xf32> to vector<8x1xf32>
    %19 = vector.extract_strided_slice %4 {offsets = [2, 0], sizes = [1, 64], strides = [1, 1]} : vector<4x64xf32> to vector<1x64xf32>
    %20 = vector.broadcast %18 : vector<8x1xf32> to vector<8x64xf32>
    %21 = vector.broadcast %19 : vector<1x64xf32> to vector<8x64xf32>
    %22 = arith.mulf %20, %21 : vector<8x64xf32>
    %23 = arith.addf %17, %22 : vector<8x64xf32>
    %24 = vector.extract_strided_slice %0 {offsets = [0, 3], sizes = [8, 1], strides = [1, 1]} : vector<8x4xf32> to vector<8x1xf32>
    %25 = vector.extract_strided_slice %4 {offsets = [3, 0], sizes = [1, 64], strides = [1, 1]} : vector<4x64xf32> to vector<1x64xf32>
    %26 = vector.broadcast %24 : vector<8x1xf32> to vector<8x64xf32>
    %27 = vector.broadcast %25 : vector<1x64xf32> to vector<8x64xf32>
    %28 = arith.mulf %26, %27 : vector<8x64xf32>
    %29 = arith.addf %23, %28 : vector<8x64xf32>
    %30 = vector.broadcast %1 : vector<8x1xf32> to vector<8x64xf32>
    %31 = arith.addf %29, %30 : vector<8x64xf32>
    %cst_9 = arith.constant dense<0.000000e+00> : vector<8x128xf32>
    %32 = tpu.matmul %31, %2, %cst_9 {dimension_numbers = #tpu.dot_dimension_numbers<[1], [0], [0], [1], [0, 0, 1, 1], [], []>} : vector<8x64xf32>, vector<64x128xf32>, vector<8x128xf32> -> vector<8x128xf32>
    %33 = tpu.concatenate %32, %32 in 1 : vector<8x128xf32>, vector<8x128xf32> -> vector<8x256xf32>
    %c0_10 = arith.constant 0 : index
    %c0_11 = arith.constant 0 : index
    %c0_12 = arith.constant 0 : index
    %c0_13 = arith.constant 0 : index
    %34 = vector.load %arg6[%c0_10, %c0_11, %c0_12, %c0_13] : memref<1x8x16x256xf32, #tpu.memory_space<vmem>>, vector<1x8x1x256xf32>
    %35 = vector.shape_cast %34 : vector<1x8x1x256xf32> to vector<8x256xf32>
    %36 = arith.addf %35, %33 : vector<8x256xf32>
    %c0_14 = arith.constant 0 : index
    %c0_15 = arith.constant 0 : index
    %c0_16 = arith.constant 0 : index
    %c0_17 = arith.constant 0 : index
    %37 = vector.load %arg7[%c0_14, %c0_15, %c0_16, %c0_17] : memref<1x8x16x256xf32, #tpu.memory_space<vmem>>, vector<1x8x1x256xf32>
    %38 = vector.shape_cast %37 : vector<1x8x1x256xf32> to vector<8x256xf32>
    %39 = vector.shape_cast %36 : vector<8x256xf32> to vector<1x8x1x256xf32>
    tpu.vector_store %arg7[%c0_14, %c0_15, %c0_16, %c0_17], %39 {strides = array<i32>} : memref<1x8x16x256xf32, #tpu.memory_space<vmem>>, vector<1x8x1x256xf32>,
    %c0_18 = arith.constant 0 : index
    %c0_19 = arith.constant 0 : index
    %c1 = arith.constant 1 : index
    %c0_20 = arith.constant 0 : index
    %40 = vector.load %arg2[%c0_18, %c0_19, %c1, %c0_20] : memref<1x4x16x64xf32, #tpu.memory_space<vmem>>, vector<1x4x1x64xf32>
    %41 = vector.shape_cast %40 : vector<1x4x1x64xf32> to vector<4x64xf32>
    %cst_21 = arith.constant 0.000000e+00 : f32
    %42 = vector.broadcast %cst_21 : f32 to vector<8x64xf32>
    %43 = vector.extract_strided_slice %0 {offsets = [0, 0], sizes = [8, 1], strides = [1, 1]} : vector<8x4xf32> to vector<8x1xf32>
    %44 = vector.extract_strided_slice %41 {offsets = [0, 0], sizes = [1, 64], strides = [1, 1]} : vector<4x64xf32> to vector<1x64xf32>
    %45 = vector.broadcast %43 : vector<8x1xf32> to vector<8x64xf32>
    %46 = vector.broadcast %44 : vector<1x64xf32> to vector<8x64xf32>
    %47 = arith.mulf %45, %46 : vector<8x64xf32>
    %48 = arith.addf %42, %47 : vector<8x64xf32>
    %49 = vector.extract_strided_slice %0 {offsets = [0, 1], sizes = [8, 1], strides = [1, 1]} : vector<8x4xf32> to vector<8x1xf32>
    %50 = vector.extract_strided_slice %41 {offsets = [1, 0], sizes = [1, 64], strides = [1, 1]} : vector<4x64xf32> to vector<1x64xf32>
    %51 = vector.broadcast %49 : vector<8x1xf32> to vector<8x64xf32>
    %52 = vector.broadcast %50 : vector<1x64xf32> to vector<8x64xf32>
    %53 = arith.mulf %51, %52 : vector<8x64xf32>
    %54 = arith.addf %48, %53 : vector<8x64xf32>
    %55 = vector.extract_strided_slice %0 {offsets = [0, 2], sizes = [8, 1], strides = [1, 1]} : vector<8x4xf32> to vector<8x1xf32>
    %56 = vector.extract_strided_slice %41 {offsets = [2, 0], sizes = [1, 64], strides = [1, 1]} : vector<4x64xf32> to vector<1x64xf32>
    %57 = vector.broadcast %55 : vector<8x1xf32> to vector<8x64xf32>
    %58 = vector.broadcast %56 : vector<1x64xf32> to vector<8x64xf32>
    %59 = arith.mulf %57, %58 : vector<8x64xf32>
    %60 = arith.addf %54, %59 : vector<8x64xf32>
    %61 = vector.extract_strided_slice %0 {offsets = [0, 3], sizes = [8, 1], strides = [1, 1]} : vector<8x4xf32> to vector<8x1xf32>
    %62 = vector.extract_strided_slice %41 {offsets = [3, 0], sizes = [1, 64], strides = [1, 1]} : vector<4x64xf32> to vector<1x64xf32>
    %63 = vector.broadcast %61 : vector<8x1xf32> to vector<8x64xf32>
    %64 = vector.broadcast %62 : vector<1x64xf32> to vector<8x64xf32>
    %65 = arith.mulf %63, %64 : vector<8x64xf32>
    %66 = arith.addf %60, %65 : vector<8x64xf32>
    %67 = vector.broadcast %1 : vector<8x1xf32> to vector<8x64xf32>
    %68 = arith.addf %66, %67 : vector<8x64xf32>
    %cst_22 = arith.constant dense<0.000000e+00> : vector<8x128xf32>
    %69 = tpu.matmul %68, %2, %cst_22 {dimension_numbers = #tpu.dot_dimension_numbers<[1], [0], [0], [1], [0, 0, 1, 1], [], []>} : vector<8x64xf32>, vector<64x128xf32>, vector<8x128xf32> -> vector<8x128xf32>
    %70 = tpu.concatenate %69, %69 in 1 : vector<8x128xf32>, vector<8x128xf32> -> vector<8x256xf32>
    %c0_23 = arith.constant 0 : index
    %c0_24 = arith.constant 0 : index
    %c1_25 = arith.constant 1 : index
    %c0_26 = arith.constant 0 : index
    %71 = vector.load %arg6[%c0_23, %c0_24, %c1_25, %c0_26] : memref<1x8x16x256xf32, #tpu.memory_space<vmem>>, vector<1x8x1x256xf32>
    %72 = vector.shape_cast %71 : vector<1x8x1x256xf32> to vector<8x256xf32>
    %73 = arith.addf %72, %70 : vector<8x256xf32>
    %c0_27 = arith.constant 0 : index
    %c0_28 = arith.constant 0 : index
    %c1_29 = arith.constant 1 : index
    %c0_30 = arith.constant 0 : index
    %74 = vector.load %arg7[%c0_27, %c0_28, %c1_29, %c0_30] : memref<1x8x16x256xf32, #tpu.memory_space<vmem>>, vector<1x8x1x256xf32>
    %75 = vector.shape_cast %74 : vector<1x8x1x256xf32> to vector<8x256xf32>
    %76 = vector.shape_cast %73 : vector<8x256xf32> to vector<1x8x1x256xf32>
    tpu.vector_store %arg7[%c0_27, %c0_28, %c1_29, %c0_30], %76 {strides = array<i32>} : memref<1x8x16x256xf32, #tpu.memory_space<vmem>>, vector<1x8x1x256xf32>,
    %c0_31 = arith.constant 0 : index
    %c0_32 = arith.constant 0 : index
    %c2 = arith.constant 2 : index
    %c0_33 = arith.constant 0 : index
    %77 = vector.load %arg2[%c0_31, %c0_32, %c2, %c0_33] : memref<1x4x16x64xf32, #tpu.memory_space<vmem>>, vector<1x4x1x64xf32>
    %78 = vector.shape_cast %77 : vector<1x4x1x64xf32> to vector<4x64xf32>
    %cst_34 = arith.constant 0.000000e+00 : f32
    %79 = vector.broadcast %cst_34 : f32 to vector<8x64xf32>
    %80 = vector.extract_strided_slice %0 {offsets = [0, 0], sizes = [8, 1], strides = [1, 1]} : vector<8x4xf32> to vector<8x1xf32>
    %81 = vector.extract_strided_slice %78 {offsets = [0, 0], sizes = [1, 64], strides = [1, 1]} : vector<4x64xf32> to vector<1x64xf32>
    %82 = vector.broadcast %80 : vector<8x1xf32> to vector<8x64xf32>
    %83 = vector.broadcast %81 : vector<1x64xf32> to vector<8x64xf32>
    %84 = arith.mulf %82, %83 : vector<8x64xf32>
    %85 = arith.addf %79, %84 : vector<8x64xf32>
    %86 = vector.extract_strided_slice %0 {offsets = [0, 1], sizes = [8, 1], strides = [1, 1]} : vector<8x4xf32> to vector<8x1xf32>
    %87 = vector.extract_strided_slice %78 {offsets = [1, 0], sizes = [1, 64], strides = [1, 1]} : vector<4x64xf32> to vector<1x64xf32>
    %88 = vector.broadcast %86 : vector<8x1xf32> to vector<8x64xf32>
    %89 = vector.broadcast %87 : vector<1x64xf32> to vector<8x64xf32>
    %90 = arith.mulf %88, %89 : vector<8x64xf32>
    %91 = arith.addf %85, %90 : vector<8x64xf32>
    %92 = vector.extract_strided_slice %0 {offsets = [0, 2], sizes = [8, 1], strides = [1, 1]} : vector<8x4xf32> to vector<8x1xf32>
    %93 = vector.extract_strided_slice %78 {offsets = [2, 0], sizes = [1, 64], strides = [1, 1]} : vector<4x64xf32> to vector<1x64xf32>
    %94 = vector.broadcast %92 : vector<8x1xf32> to vector<8x64xf32>
    %95 = vector.broadcast %93 : vector<1x64xf32> to vector<8x64xf32>
    %96 = arith.mulf %94, %95 : vector<8x64xf32>
    %97 = arith.addf %91, %96 : vector<8x64xf32>
    %98 = vector.extract_strided_slice %0 {offsets = [0, 3], sizes = [8, 1], strides = [1, 1]} : vector<8x4xf32> to vector<8x1xf32>
    %99 = vector.extract_strided_slice %78 {offsets = [3, 0], sizes = [1, 64], strides = [1, 1]} : vector<4x64xf32> to vector<1x64xf32>
    %100 = vector.broadcast %98 : vector<8x1xf32> to vector<8x64xf32>
    %101 = vector.broadcast %99 : vector<1x64xf32> to vector<8x64xf32>
    %102 = arith.mulf %100, %101 : vector<8x64xf32>
    %103 = arith.addf %97, %102 : vector<8x64xf32>
    %104 = vector.broadcast %1 : vector<8x1xf32> to vector<8x64xf32>
    %105 = arith.addf %103, %104 : vector<8x64xf32>
    %cst_35 = arith.constant dense<0.000000e+00> : vector<8x128xf32>
    %106 = tpu.matmul %105, %2, %cst_35 {dimension_numbers = #tpu.dot_dimension_numbers<[1], [0], [0], [1], [0, 0, 1, 1], [], []>} : vector<8x64xf32>, vector<64x128xf32>, vector<8x128xf32> -> vector<8x128xf32>
    %107 = tpu.concatenate %106, %106 in 1 : vector<8x128xf32>, vector<8x128xf32> -> vector<8x256xf32>
    %c0_36 = arith.constant 0 : index
    %c0_37 = arith.constant 0 : index
    %c2_38 = arith.constant 2 : index
    %c0_39 = arith.constant 0 : index
    %108 = vector.load %arg6[%c0_36, %c0_37, %c2_38, %c0_39] : memref<1x8x16x256xf32, #tpu.memory_space<vmem>>, vector<1x8x1x256xf32>
    %109 = vector.shape_cast %108 : vector<1x8x1x256xf32> to vector<8x256xf32>
    %110 = arith.addf %109, %107 : vector<8x256xf32>
    %c0_40 = arith.constant 0 : index
    %c0_41 = arith.constant 0 : index
    %c2_42 = arith.constant 2 : index
    %c0_43 = arith.constant 0 : index
    %111 = vector.load %arg7[%c0_40, %c0_41, %c2_42, %c0_43] : memref<1x8x16x256xf32, #tpu.memory_space<vmem>>, vector<1x8x1x256xf32>
    %112 = vector.shape_cast %111 : vector<1x8x1x256xf32> to vector<8x256xf32>
    %113 = vector.shape_cast %110 : vector<8x256xf32> to vector<1x8x1x256xf32>
    tpu.vector_store %arg7[%c0_40, %c0_41, %c2_42, %c0_43], %113 {strides = array<i32>} : memref<1x8x16x256xf32, #tpu.memory_space<vmem>>, vector<1x8x1x256xf32>,
    %c0_44 = arith.constant 0 : index
    %c0_45 = arith.constant 0 : index
    %c3 = arith.constant 3 : index
    %c0_46 = arith.constant 0 : index
    %114 = vector.load %arg2[%c0_44, %c0_45, %c3, %c0_46] : memref<1x4x16x64xf32, #tpu.memory_space<vmem>>, vector<1x4x1x64xf32>
    %115 = vector.shape_cast %114 : vector<1x4x1x64xf32> to vector<4x64xf32>
    %cst_47 = arith.constant 0.000000e+00 : f32
    %116 = vector.broadcast %cst_47 : f32 to vector<8x64xf32>
    %117 = vector.extract_strided_slice %0 {offsets = [0, 0], sizes = [8, 1], strides = [1, 1]} : vector<8x4xf32> to vector<8x1xf32>
    %118 = vector.extract_strided_slice %115 {offsets = [0, 0], sizes = [1, 64], strides = [1, 1]} : vector<4x64xf32> to vector<1x64xf32>
    %119 = vector.broadcast %117 : vector<8x1xf32> to vector<8x64xf32>
    %120 = vector.broadcast %118 : vector<1x64xf32> to vector<8x64xf32>
    %121 = arith.mulf %119, %120 : vector<8x64xf32>
    %122 = arith.addf %116, %121 : vector<8x64xf32>
    %123 = vector.extract_strided_slice %0 {offsets = [0, 1], sizes = [8, 1], strides = [1, 1]} : vector<8x4xf32> to vector<8x1xf32>
    %124 = vector.extract_strided_slice %115 {offsets = [1, 0], sizes = [1, 64], strides = [1, 1]} : vector<4x64xf32> to vector<1x64xf32>
    %125 = vector.broadcast %123 : vector<8x1xf32> to vector<8x64xf32>
    %126 = vector.broadcast %124 : vector<1x64xf32> to vector<8x64xf32>
    %127 = arith.mulf %125, %126 : vector<8x64xf32>
    %128 = arith.addf %122, %127 : vector<8x64xf32>
    %129 = vector.extract_strided_slice %0 {offsets = [0, 2], sizes = [8, 1], strides = [1, 1]} : vector<8x4xf32> to vector<8x1xf32>
    %130 = vector.extract_strided_slice %115 {offsets = [2, 0], sizes = [1, 64], strides = [1, 1]} : vector<4x64xf32> to vector<1x64xf32>
    %131 = vector.broadcast %129 : vector<8x1xf32> to vector<8x64xf32>
    %132 = vector.broadcast %130 : vector<1x64xf32> to vector<8x64xf32>
    %133 = arith.mulf %131, %132 : vector<8x64xf32>
    %134 = arith.addf %128, %133 : vector<8x64xf32>
    %135 = vector.extract_strided_slice %0 {offsets = [0, 3], sizes = [8, 1], strides = [1, 1]} : vector<8x4xf32> to vector<8x1xf32>
    %136 = vector.extract_strided_slice %115 {offsets = [3, 0], sizes = [1, 64], strides = [1, 1]} : vector<4x64xf32> to vector<1x64xf32>
    %137 = vector.broadcast %135 : vector<8x1xf32> to vector<8x64xf32>
    %138 = vector.broadcast %136 : vector<1x64xf32> to vector<8x64xf32>
    %139 = arith.mulf %137, %138 : vector<8x64xf32>
    %140 = arith.addf %134, %139 : vector<8x64xf32>
    %141 = vector.broadcast %1 : vector<8x1xf32> to vector<8x64xf32>
    %142 = arith.addf %140, %141 : vector<8x64xf32>
    %cst_48 = arith.constant dense<0.000000e+00> : vector<8x128xf32>
    %143 = tpu.matmul %142, %2, %cst_48 {dimension_numbers = #tpu.dot_dimension_numbers<[1], [0], [0], [1], [0, 0, 1, 1], [], []>} : vector<8x64xf32>, vector<64x128xf32>, vector<8x128xf32> -> vector<8x128xf32>
    %144 = tpu.concatenate %143, %143 in 1 : vector<8x128xf32>, vector<8x128xf32> -> vector<8x256xf32>
    %c0_49 = arith.constant 0 : index
    %c0_50 = arith.constant 0 : index
    %c3_51 = arith.constant 3 : index
    %c0_52 = arith.constant 0 : index
    %145 = vector.load %arg6[%c0_49, %c0_50, %c3_51, %c0_52] : memref<1x8x16x256xf32, #tpu.memory_space<vmem>>, vector<1x8x1x256xf32>
    %146 = vector.shape_cast %145 : vector<1x8x1x256xf32> to vector<8x256xf32>
    %147 = arith.addf %146, %144 : vector<8x256xf32>
    %c0_53 = arith.constant 0 : index
    %c0_54 = arith.constant 0 : index
    %c3_55 = arith.constant 3 : index
    %c0_56 = arith.constant 0 : index
    %148 = vector.load %arg7[%c0_53, %c0_54, %c3_55, %c0_56] : memref<1x8x16x256xf32, #tpu.memory_space<vmem>>, vector<1x8x1x256xf32>
    %149 = vector.shape_cast %148 : vector<1x8x1x256xf32> to vector<8x256xf32>
    %150 = vector.shape_cast %147 : vector<8x256xf32> to vector<1x8x1x256xf32>
    tpu.vector_store %arg7[%c0_53, %c0_54, %c3_55, %c0_56], %150 {strides = array<i32>} : memref<1x8x16x256xf32, #tpu.memory_space<vmem>>, vector<1x8x1x256xf32>,
    %c0_57 = arith.constant 0 : index
    %c0_58 = arith.constant 0 : index
    %c4 = arith.constant 4 : index
    %c0_59 = arith.constant 0 : index
    %151 = vector.load %arg2[%c0_57, %c0_58, %c4, %c0_59] : memref<1x4x16x64xf32, #tpu.memory_space<vmem>>, vector<1x4x1x64xf32>
    %152 = vector.shape_cast %151 : vector<1x4x1x64xf32> to vector<4x64xf32>
    %cst_60 = arith.constant 0.000000e+00 : f32
    %153 = vector.broadcast %cst_60 : f32 to vector<8x64xf32>
    %154 = vector.extract_strided_slice %0 {offsets = [0, 0], sizes = [8, 1], strides = [1, 1]} : vector<8x4xf32> to vector<8x1xf32>
    %155 = vector.extract_strided_slice %152 {offsets = [0, 0], sizes = [1, 64], strides = [1, 1]} : vector<4x64xf32> to vector<1x64xf32>
    %156 = vector.broadcast %154 : vector<8x1xf32> to vector<8x64xf32>
    %157 = vector.broadcast %155 : vector<1x64xf32> to vector<8x64xf32>
    %158 = arith.mulf %156, %157 : vector<8x64xf32>
    %159 = arith.addf %153, %158 : vector<8x64xf32>
    %160 = vector.extract_strided_slice %0 {offsets = [0, 1], sizes = [8, 1], strides = [1, 1]} : vector<8x4xf32> to vector<8x1xf32>
    %161 = vector.extract_strided_slice %152 {offsets = [1, 0], sizes = [1, 64], strides = [1, 1]} : vector<4x64xf32> to vector<1x64xf32>
    %162 = vector.broadcast %160 : vector<8x1xf32> to vector<8x64xf32>
    %163 = vector.broadcast %161 : vector<1x64xf32> to vector<8x64xf32>
    %164 = arith.mulf %162, %163 : vector<8x64xf32>
    %165 = arith.addf %159, %164 : vector<8x64xf32>
    %166 = vector.extract_strided_slice %0 {offsets = [0, 2], sizes = [8, 1], strides = [1, 1]} : vector<8x4xf32> to vector<8x1xf32>
    %167 = vector.extract_strided_slice %152 {offsets = [2, 0], sizes = [1, 64], strides = [1, 1]} : vector<4x64xf32> to vector<1x64xf32>
    %168 = vector.broadcast %166 : vector<8x1xf32> to vector<8x64xf32>
    %169 = vector.broadcast %167 : vector<1x64xf32> to vector<8x64xf32>
    %170 = arith.mulf %168, %169 : vector<8x64xf32>
    %171 = arith.addf %165, %170 : vector<8x64xf32>
    %172 = vector.extract_strided_slice %0 {offsets = [0, 3], sizes = [8, 1], strides = [1, 1]} : vector<8x4xf32> to vector<8x1xf32>
    %173 = vector.extract_strided_slice %152 {offsets = [3, 0], sizes = [1, 64], strides = [1, 1]} : vector<4x64xf32> to vector<1x64xf32>
    %174 = vector.broadcast %172 : vector<8x1xf32> to vector<8x64xf32>
    %175 = vector.broadcast %173 : vector<1x64xf32> to vector<8x64xf32>
    %176 = arith.mulf %174, %175 : vector<8x64xf32>
    %177 = arith.addf %171, %176 : vector<8x64xf32>
    %178 = vector.broadcast %1 : vector<8x1xf32> to vector<8x64xf32>
    %179 = arith.addf %177, %178 : vector<8x64xf32>
    %cst_61 = arith.constant dense<0.000000e+00> : vector<8x128xf32>
    %180 = tpu.matmul %179, %2, %cst_61 {dimension_numbers = #tpu.dot_dimension_numbers<[1], [0], [0], [1], [0, 0, 1, 1], [], []>} : vector<8x64xf32>, vector<64x128xf32>, vector<8x128xf32> -> vector<8x128xf32>
    %181 = tpu.concatenate %180, %180 in 1 : vector<8x128xf32>, vector<8x128xf32> -> vector<8x256xf32>
    %c0_62 = arith.constant 0 : index
    %c0_63 = arith.constant 0 : index
    %c4_64 = arith.constant 4 : index
    %c0_65 = arith.constant 0 : index
    %182 = vector.load %arg6[%c0_62, %c0_63, %c4_64, %c0_65] : memref<1x8x16x256xf32, #tpu.memory_space<vmem>>, vector<1x8x1x256xf32>
    %183 = vector.shape_cast %182 : vector<1x8x1x256xf32> to vector<8x256xf32>
    %184 = arith.addf %183, %181 : vector<8x256xf32>
    %c0_66 = arith.constant 0 : index
    %c0_67 = arith.constant 0 : index
    %c4_68 = arith.constant 4 : index
    %c0_69 = arith.constant 0 : index
    %185 = vector.load %arg7[%c0_66, %c0_67, %c4_68, %c0_69] : memref<1x8x16x256xf32, #tpu.memory_space<vmem>>, vector<1x8x1x256xf32>
    %186 = vector.shape_cast %185 : vector<1x8x1x256xf32> to vector<8x256xf32>
    %187 = vector.shape_cast %184 : vector<8x256xf32> to vector<1x8x1x256xf32>
    tpu.vector_store %arg7[%c0_66, %c0_67, %c4_68, %c0_69], %187 {strides = array<i32>} : memref<1x8x16x256xf32, #tpu.memory_space<vmem>>, vector<1x8x1x256xf32>,
    %c0_70 = arith.constant 0 : index
    %c0_71 = arith.constant 0 : index
    %c5 = arith.constant 5 : index
    %c0_72 = arith.constant 0 : index
    %188 = vector.load %arg2[%c0_70, %c0_71, %c5, %c0_72] : memref<1x4x16x64xf32, #tpu.memory_space<vmem>>, vector<1x4x1x64xf32>
    %189 = vector.shape_cast %188 : vector<1x4x1x64xf32> to vector<4x64xf32>
    %cst_73 = arith.constant 0.000000e+00 : f32
    %190 = vector.broadcast %cst_73 : f32 to vector<8x64xf32>
    %191 = vector.extract_strided_slice %0 {offsets = [0, 0], sizes = [8, 1], strides = [1, 1]} : vector<8x4xf32> to vector<8x1xf32>
    %192 = vector.extract_strided_slice %189 {offsets = [0, 0], sizes = [1, 64], strides = [1, 1]} : vector<4x64xf32> to vector<1x64xf32>
    %193 = vector.broadcast %191 : vector<8x1xf32> to vector<8x64xf32>
    %194 = vector.broadcast %192 : vector<1x64xf32> to vector<8x64xf32>
    %195 = arith.mulf %193, %194 : vector<8x64xf32>
    %196 = arith.addf %190, %195 : vector<8x64xf32>
    %197 = vector.extract_strided_slice %0 {offsets = [0, 1], sizes = [8, 1], strides = [1, 1]} : vector<8x4xf32> to vector<8x1xf32>
    %198 = vector.extract_strided_slice %189 {offsets = [1, 0], sizes = [1, 64], strides = [1, 1]} : vector<4x64xf32> to vector<1x64xf32>
    %199 = vector.broadcast %197 : vector<8x1xf32> to vector<8x64xf32>
    %200 = vector.broadcast %198 : vector<1x64xf32> to vector<8x64xf32>
    %201 = arith.mulf %199, %200 : vector<8x64xf32>
    %202 = arith.addf %196, %201 : vector<8x64xf32>
    %203 = vector.extract_strided_slice %0 {offsets = [0, 2], sizes = [8, 1], strides = [1, 1]} : vector<8x4xf32> to vector<8x1xf32>
    %204 = vector.extract_strided_slice %189 {offsets = [2, 0], sizes = [1, 64], strides = [1, 1]} : vector<4x64xf32> to vector<1x64xf32>
    %205 = vector.broadcast %203 : vector<8x1xf32> to vector<8x64xf32>
    %206 = vector.broadcast %204 : vector<1x64xf32> to vector<8x64xf32>
    %207 = arith.mulf %205, %206 : vector<8x64xf32>
    %208 = arith.addf %202, %207 : vector<8x64xf32>
    %209 = vector.extract_strided_slice %0 {offsets = [0, 3], sizes = [8, 1], strides = [1, 1]} : vector<8x4xf32> to vector<8x1xf32>
    %210 = vector.extract_strided_slice %189 {offsets = [3, 0], sizes = [1, 64], strides = [1, 1]} : vector<4x64xf32> to vector<1x64xf32>
    %211 = vector.broadcast %209 : vector<8x1xf32> to vector<8x64xf32>
    %212 = vector.broadcast %210 : vector<1x64xf32> to vector<8x64xf32>
    %213 = arith.mulf %211, %212 : vector<8x64xf32>
    %214 = arith.addf %208, %213 : vector<8x64xf32>
    %215 = vector.broadcast %1 : vector<8x1xf32> to vector<8x64xf32>
    %216 = arith.addf %214, %215 : vector<8x64xf32>
    %cst_74 = arith.constant dense<0.000000e+00> : vector<8x128xf32>
    %217 = tpu.matmul %216, %2, %cst_74 {dimension_numbers = #tpu.dot_dimension_numbers<[1], [0], [0], [1], [0, 0, 1, 1], [], []>} : vector<8x64xf32>, vector<64x128xf32>, vector<8x128xf32> -> vector<8x128xf32>
    %218 = tpu.concatenate %217, %217 in 1 : vector<8x128xf32>, vector<8x128xf32> -> vector<8x256xf32>
    %c0_75 = arith.constant 0 : index
    %c0_76 = arith.constant 0 : index
    %c5_77 = arith.constant 5 : index
    %c0_78 = arith.constant 0 : index
    %219 = vector.load %arg6[%c0_75, %c0_76, %c5_77, %c0_78] : memref<1x8x16x256xf32, #tpu.memory_space<vmem>>, vector<1x8x1x256xf32>
    %220 = vector.shape_cast %219 : vector<1x8x1x256xf32> to vector<8x256xf32>
    %221 = arith.addf %220, %218 : vector<8x256xf32>
    %c0_79 = arith.constant 0 : index
    %c0_80 = arith.constant 0 : index
    %c5_81 = arith.constant 5 : index
    %c0_82 = arith.constant 0 : index
    %222 = vector.load %arg7[%c0_79, %c0_80, %c5_81, %c0_82] : memref<1x8x16x256xf32, #tpu.memory_space<vmem>>, vector<1x8x1x256xf32>
    %223 = vector.shape_cast %222 : vector<1x8x1x256xf32> to vector<8x256xf32>
    %224 = vector.shape_cast %221 : vector<8x256xf32> to vector<1x8x1x256xf32>
    tpu.vector_store %arg7[%c0_79, %c0_80, %c5_81, %c0_82], %224 {strides = array<i32>} : memref<1x8x16x256xf32, #tpu.memory_space<vmem>>, vector<1x8x1x256xf32>,
    %c0_83 = arith.constant 0 : index
    %c0_84 = arith.constant 0 : index
    %c6 = arith.constant 6 : index
    %c0_85 = arith.constant 0 : index
    %225 = vector.load %arg2[%c0_83, %c0_84, %c6, %c0_85] : memref<1x4x16x64xf32, #tpu.memory_space<vmem>>, vector<1x4x1x64xf32>
    %226 = vector.shape_cast %225 : vector<1x4x1x64xf32> to vector<4x64xf32>
    %cst_86 = arith.constant 0.000000e+00 : f32
    %227 = vector.broadcast %cst_86 : f32 to vector<8x64xf32>
    %228 = vector.extract_strided_slice %0 {offsets = [0, 0], sizes = [8, 1], strides = [1, 1]} : vector<8x4xf32> to vector<8x1xf32>
    %229 = vector.extract_strided_slice %226 {offsets = [0, 0], sizes = [1, 64], strides = [1, 1]} : vector<4x64xf32> to vector<1x64xf32>
    %230 = vector.broadcast %228 : vector<8x1xf32> to vector<8x64xf32>
    %231 = vector.broadcast %229 : vector<1x64xf32> to vector<8x64xf32>
    %232 = arith.mulf %230, %231 : vector<8x64xf32>
    %233 = arith.addf %227, %232 : vector<8x64xf32>
    %234 = vector.extract_strided_slice %0 {offsets = [0, 1], sizes = [8, 1], strides = [1, 1]} : vector<8x4xf32> to vector<8x1xf32>
    %235 = vector.extract_strided_slice %226 {offsets = [1, 0], sizes = [1, 64], strides = [1, 1]} : vector<4x64xf32> to vector<1x64xf32>
    %236 = vector.broadcast %234 : vector<8x1xf32> to vector<8x64xf32>
    %237 = vector.broadcast %235 : vector<1x64xf32> to vector<8x64xf32>
    %238 = arith.mulf %236, %237 : vector<8x64xf32>
    %239 = arith.addf %233, %238 : vector<8x64xf32>
    %240 = vector.extract_strided_slice %0 {offsets = [0, 2], sizes = [8, 1], strides = [1, 1]} : vector<8x4xf32> to vector<8x1xf32>
    %241 = vector.extract_strided_slice %226 {offsets = [2, 0], sizes = [1, 64], strides = [1, 1]} : vector<4x64xf32> to vector<1x64xf32>
    %242 = vector.broadcast %240 : vector<8x1xf32> to vector<8x64xf32>
    %243 = vector.broadcast %241 : vector<1x64xf32> to vector<8x64xf32>
    %244 = arith.mulf %242, %243 : vector<8x64xf32>
    %245 = arith.addf %239, %244 : vector<8x64xf32>
    %246 = vector.extract_strided_slice %0 {offsets = [0, 3], sizes = [8, 1], strides = [1, 1]} : vector<8x4xf32> to vector<8x1xf32>
    %247 = vector.extract_strided_slice %226 {offsets = [3, 0], sizes = [1, 64], strides = [1, 1]} : vector<4x64xf32> to vector<1x64xf32>
    %248 = vector.broadcast %246 : vector<8x1xf32> to vector<8x64xf32>
    %249 = vector.broadcast %247 : vector<1x64xf32> to vector<8x64xf32>
    %250 = arith.mulf %248, %249 : vector<8x64xf32>
    %251 = arith.addf %245, %250 : vector<8x64xf32>
    %252 = vector.broadcast %1 : vector<8x1xf32> to vector<8x64xf32>
    %253 = arith.addf %251, %252 : vector<8x64xf32>
    %cst_87 = arith.constant dense<0.000000e+00> : vector<8x128xf32>
    %254 = tpu.matmul %253, %2, %cst_87 {dimension_numbers = #tpu.dot_dimension_numbers<[1], [0], [0], [1], [0, 0, 1, 1], [], []>} : vector<8x64xf32>, vector<64x128xf32>, vector<8x128xf32> -> vector<8x128xf32>
    %255 = tpu.concatenate %254, %254 in 1 : vector<8x128xf32>, vector<8x128xf32> -> vector<8x256xf32>
    %c0_88 = arith.constant 0 : index
    %c0_89 = arith.constant 0 : index
    %c6_90 = arith.constant 6 : index
    %c0_91 = arith.constant 0 : index
    %256 = vector.load %arg6[%c0_88, %c0_89, %c6_90, %c0_91] : memref<1x8x16x256xf32, #tpu.memory_space<vmem>>, vector<1x8x1x256xf32>
    %257 = vector.shape_cast %256 : vector<1x8x1x256xf32> to vector<8x256xf32>
    %258 = arith.addf %257, %255 : vector<8x256xf32>
    %c0_92 = arith.constant 0 : index
    %c0_93 = arith.constant 0 : index
    %c6_94 = arith.constant 6 : index
    %c0_95 = arith.constant 0 : index
    %259 = vector.load %arg7[%c0_92, %c0_93, %c6_94, %c0_95] : memref<1x8x16x256xf32, #tpu.memory_space<vmem>>, vector<1x8x1x256xf32>
    %260 = vector.shape_cast %259 : vector<1x8x1x256xf32> to vector<8x256xf32>
    %261 = vector.shape_cast %258 : vector<8x256xf32> to vector<1x8x1x256xf32>
    tpu.vector_store %arg7[%c0_92, %c0_93, %c6_94, %c0_95], %261 {strides = array<i32>} : memref<1x8x16x256xf32, #tpu.memory_space<vmem>>, vector<1x8x1x256xf32>,
    %c0_96 = arith.constant 0 : index
    %c0_97 = arith.constant 0 : index
    %c7 = arith.constant 7 : index
    %c0_98 = arith.constant 0 : index
    %262 = vector.load %arg2[%c0_96, %c0_97, %c7, %c0_98] : memref<1x4x16x64xf32, #tpu.memory_space<vmem>>, vector<1x4x1x64xf32>
    %263 = vector.shape_cast %262 : vector<1x4x1x64xf32> to vector<4x64xf32>
    %cst_99 = arith.constant 0.000000e+00 : f32
    %264 = vector.broadcast %cst_99 : f32 to vector<8x64xf32>
    %265 = vector.extract_strided_slice %0 {offsets = [0, 0], sizes = [8, 1], strides = [1, 1]} : vector<8x4xf32> to vector<8x1xf32>
    %266 = vector.extract_strided_slice %263 {offsets = [0, 0], sizes = [1, 64], strides = [1, 1]} : vector<4x64xf32> to vector<1x64xf32>
    %267 = vector.broadcast %265 : vector<8x1xf32> to vector<8x64xf32>
    %268 = vector.broadcast %266 : vector<1x64xf32> to vector<8x64xf32>
    %269 = arith.mulf %267, %268 : vector<8x64xf32>
    %270 = arith.addf %264, %269 : vector<8x64xf32>
    %271 = vector.extract_strided_slice %0 {offsets = [0, 1], sizes = [8, 1], strides = [1, 1]} : vector<8x4xf32> to vector<8x1xf32>
    %272 = vector.extract_strided_slice %263 {offsets = [1, 0], sizes = [1, 64], strides = [1, 1]} : vector<4x64xf32> to vector<1x64xf32>
    %273 = vector.broadcast %271 : vector<8x1xf32> to vector<8x64xf32>
    %274 = vector.broadcast %272 : vector<1x64xf32> to vector<8x64xf32>
    %275 = arith.mulf %273, %274 : vector<8x64xf32>
    %276 = arith.addf %270, %275 : vector<8x64xf32>
    %277 = vector.extract_strided_slice %0 {offsets = [0, 2], sizes = [8, 1], strides = [1, 1]} : vector<8x4xf32> to vector<8x1xf32>
    %278 = vector.extract_strided_slice %263 {offsets = [2, 0], sizes = [1, 64], strides = [1, 1]} : vector<4x64xf32> to vector<1x64xf32>
    %279 = vector.broadcast %277 : vector<8x1xf32> to vector<8x64xf32>
    %280 = vector.broadcast %278 : vector<1x64xf32> to vector<8x64xf32>
    %281 = arith.mulf %279, %280 : vector<8x64xf32>
    %282 = arith.addf %276, %281 : vector<8x64xf32>
    %283 = vector.extract_strided_slice %0 {offsets = [0, 3], sizes = [8, 1], strides = [1, 1]} : vector<8x4xf32> to vector<8x1xf32>
    %284 = vector.extract_strided_slice %263 {offsets = [3, 0], sizes = [1, 64], strides = [1, 1]} : vector<4x64xf32> to vector<1x64xf32>
    %285 = vector.broadcast %283 : vector<8x1xf32> to vector<8x64xf32>
    %286 = vector.broadcast %284 : vector<1x64xf32> to vector<8x64xf32>
    %287 = arith.mulf %285, %286 : vector<8x64xf32>
    %288 = arith.addf %282, %287 : vector<8x64xf32>
    %289 = vector.broadcast %1 : vector<8x1xf32> to vector<8x64xf32>
    %290 = arith.addf %288, %289 : vector<8x64xf32>
    %cst_100 = arith.constant dense<0.000000e+00> : vector<8x128xf32>
    %291 = tpu.matmul %290, %2, %cst_100 {dimension_numbers = #tpu.dot_dimension_numbers<[1], [0], [0], [1], [0, 0, 1, 1], [], []>} : vector<8x64xf32>, vector<64x128xf32>, vector<8x128xf32> -> vector<8x128xf32>
    %292 = tpu.concatenate %291, %291 in 1 : vector<8x128xf32>, vector<8x128xf32> -> vector<8x256xf32>
    %c0_101 = arith.constant 0 : index
    %c0_102 = arith.constant 0 : index
    %c7_103 = arith.constant 7 : index
    %c0_104 = arith.constant 0 : index
    %293 = vector.load %arg6[%c0_101, %c0_102, %c7_103, %c0_104] : memref<1x8x16x256xf32, #tpu.memory_space<vmem>>, vector<1x8x1x256xf32>
    %294 = vector.shape_cast %293 : vector<1x8x1x256xf32> to vector<8x256xf32>
    %295 = arith.addf %294, %292 : vector<8x256xf32>
    %c0_105 = arith.constant 0 : index
    %c0_106 = arith.constant 0 : index
    %c7_107 = arith.constant 7 : index
    %c0_108 = arith.constant 0 : index
    %296 = vector.load %arg7[%c0_105, %c0_106, %c7_107, %c0_108] : memref<1x8x16x256xf32, #tpu.memory_space<vmem>>, vector<1x8x1x256xf32>
    %297 = vector.shape_cast %296 : vector<1x8x1x256xf32> to vector<8x256xf32>
    %298 = vector.shape_cast %295 : vector<8x256xf32> to vector<1x8x1x256xf32>
    tpu.vector_store %arg7[%c0_105, %c0_106, %c7_107, %c0_108], %298 {strides = array<i32>} : memref<1x8x16x256xf32, #tpu.memory_space<vmem>>, vector<1x8x1x256xf32>,
    %c0_109 = arith.constant 0 : index
    %c0_110 = arith.constant 0 : index
    %c8 = arith.constant 8 : index
    %c0_111 = arith.constant 0 : index
    %299 = vector.load %arg2[%c0_109, %c0_110, %c8, %c0_111] : memref<1x4x16x64xf32, #tpu.memory_space<vmem>>, vector<1x4x1x64xf32>
    %300 = vector.shape_cast %299 : vector<1x4x1x64xf32> to vector<4x64xf32>
    %cst_112 = arith.constant 0.000000e+00 : f32
    %301 = vector.broadcast %cst_112 : f32 to vector<8x64xf32>
    %302 = vector.extract_strided_slice %0 {offsets = [0, 0], sizes = [8, 1], strides = [1, 1]} : vector<8x4xf32> to vector<8x1xf32>
    %303 = vector.extract_strided_slice %300 {offsets = [0, 0], sizes = [1, 64], strides = [1, 1]} : vector<4x64xf32> to vector<1x64xf32>
    %304 = vector.broadcast %302 : vector<8x1xf32> to vector<8x64xf32>
    %305 = vector.broadcast %303 : vector<1x64xf32> to vector<8x64xf32>
    %306 = arith.mulf %304, %305 : vector<8x64xf32>
    %307 = arith.addf %301, %306 : vector<8x64xf32>
    %308 = vector.extract_strided_slice %0 {offsets = [0, 1], sizes = [8, 1], strides = [1, 1]} : vector<8x4xf32> to vector<8x1xf32>
    %309 = vector.extract_strided_slice %300 {offsets = [1, 0], sizes = [1, 64], strides = [1, 1]} : vector<4x64xf32> to vector<1x64xf32>
    %310 = vector.broadcast %308 : vector<8x1xf32> to vector<8x64xf32>
    %311 = vector.broadcast %309 : vector<1x64xf32> to vector<8x64xf32>
    %312 = arith.mulf %310, %311 : vector<8x64xf32>
    %313 = arith.addf %307, %312 : vector<8x64xf32>
    %314 = vector.extract_strided_slice %0 {offsets = [0, 2], sizes = [8, 1], strides = [1, 1]} : vector<8x4xf32> to vector<8x1xf32>
    %315 = vector.extract_strided_slice %300 {offsets = [2, 0], sizes = [1, 64], strides = [1, 1]} : vector<4x64xf32> to vector<1x64xf32>
    %316 = vector.broadcast %314 : vector<8x1xf32> to vector<8x64xf32>
    %317 = vector.broadcast %315 : vector<1x64xf32> to vector<8x64xf32>
    %318 = arith.mulf %316, %317 : vector<8x64xf32>
    %319 = arith.addf %313, %318 : vector<8x64xf32>
    %320 = vector.extract_strided_slice %0 {offsets = [0, 3], sizes = [8, 1], strides = [1, 1]} : vector<8x4xf32> to vector<8x1xf32>
    %321 = vector.extract_strided_slice %300 {offsets = [3, 0], sizes = [1, 64], strides = [1, 1]} : vector<4x64xf32> to vector<1x64xf32>
    %322 = vector.broadcast %320 : vector<8x1xf32> to vector<8x64xf32>
    %323 = vector.broadcast %321 : vector<1x64xf32> to vector<8x64xf32>
    %324 = arith.mulf %322, %323 : vector<8x64xf32>
    %325 = arith.addf %319, %324 : vector<8x64xf32>
    %326 = vector.broadcast %1 : vector<8x1xf32> to vector<8x64xf32>
    %327 = arith.addf %325, %326 : vector<8x64xf32>
    %cst_113 = arith.constant dense<0.000000e+00> : vector<8x128xf32>
    %328 = tpu.matmul %327, %2, %cst_113 {dimension_numbers = #tpu.dot_dimension_numbers<[1], [0], [0], [1], [0, 0, 1, 1], [], []>} : vector<8x64xf32>, vector<64x128xf32>, vector<8x128xf32> -> vector<8x128xf32>
    %329 = tpu.concatenate %328, %328 in 1 : vector<8x128xf32>, vector<8x128xf32> -> vector<8x256xf32>
    %c0_114 = arith.constant 0 : index
    %c0_115 = arith.constant 0 : index
    %c8_116 = arith.constant 8 : index
    %c0_117 = arith.constant 0 : index
    %330 = vector.load %arg6[%c0_114, %c0_115, %c8_116, %c0_117] : memref<1x8x16x256xf32, #tpu.memory_space<vmem>>, vector<1x8x1x256xf32>
    %331 = vector.shape_cast %330 : vector<1x8x1x256xf32> to vector<8x256xf32>
    %332 = arith.addf %331, %329 : vector<8x256xf32>
    %c0_118 = arith.constant 0 : index
    %c0_119 = arith.constant 0 : index
    %c8_120 = arith.constant 8 : index
    %c0_121 = arith.constant 0 : index
    %333 = vector.load %arg7[%c0_118, %c0_119, %c8_120, %c0_121] : memref<1x8x16x256xf32, #tpu.memory_space<vmem>>, vector<1x8x1x256xf32>
    %334 = vector.shape_cast %333 : vector<1x8x1x256xf32> to vector<8x256xf32>
    %335 = vector.shape_cast %332 : vector<8x256xf32> to vector<1x8x1x256xf32>
    tpu.vector_store %arg7[%c0_118, %c0_119, %c8_120, %c0_121], %335 {strides = array<i32>} : memref<1x8x16x256xf32, #tpu.memory_space<vmem>>, vector<1x8x1x256xf32>,
    %c0_122 = arith.constant 0 : index
    %c0_123 = arith.constant 0 : index
    %c9 = arith.constant 9 : index
    %c0_124 = arith.constant 0 : index
    %336 = vector.load %arg2[%c0_122, %c0_123, %c9, %c0_124] : memref<1x4x16x64xf32, #tpu.memory_space<vmem>>, vector<1x4x1x64xf32>
    %337 = vector.shape_cast %336 : vector<1x4x1x64xf32> to vector<4x64xf32>
    %cst_125 = arith.constant 0.000000e+00 : f32
    %338 = vector.broadcast %cst_125 : f32 to vector<8x64xf32>
    %339 = vector.extract_strided_slice %0 {offsets = [0, 0], sizes = [8, 1], strides = [1, 1]} : vector<8x4xf32> to vector<8x1xf32>
    %340 = vector.extract_strided_slice %337 {offsets = [0, 0], sizes = [1, 64], strides = [1, 1]} : vector<4x64xf32> to vector<1x64xf32>
    %341 = vector.broadcast %339 : vector<8x1xf32> to vector<8x64xf32>
    %342 = vector.broadcast %340 : vector<1x64xf32> to vector<8x64xf32>
    %343 = arith.mulf %341, %342 : vector<8x64xf32>
    %344 = arith.addf %338, %343 : vector<8x64xf32>
    %345 = vector.extract_strided_slice %0 {offsets = [0, 1], sizes = [8, 1], strides = [1, 1]} : vector<8x4xf32> to vector<8x1xf32>
    %346 = vector.extract_strided_slice %337 {offsets = [1, 0], sizes = [1, 64], strides = [1, 1]} : vector<4x64xf32> to vector<1x64xf32>
    %347 = vector.broadcast %345 : vector<8x1xf32> to vector<8x64xf32>
    %348 = vector.broadcast %346 : vector<1x64xf32> to vector<8x64xf32>
    %349 = arith.mulf %347, %348 : vector<8x64xf32>
    %350 = arith.addf %344, %349 : vector<8x64xf32>
    %351 = vector.extract_strided_slice %0 {offsets = [0, 2], sizes = [8, 1], strides = [1, 1]} : vector<8x4xf32> to vector<8x1xf32>
    %352 = vector.extract_strided_slice %337 {offsets = [2, 0], sizes = [1, 64], strides = [1, 1]} : vector<4x64xf32> to vector<1x64xf32>
    %353 = vector.broadcast %351 : vector<8x1xf32> to vector<8x64xf32>
    %354 = vector.broadcast %352 : vector<1x64xf32> to vector<8x64xf32>
    %355 = arith.mulf %353, %354 : vector<8x64xf32>
    %356 = arith.addf %350, %355 : vector<8x64xf32>
    %357 = vector.extract_strided_slice %0 {offsets = [0, 3], sizes = [8, 1], strides = [1, 1]} : vector<8x4xf32> to vector<8x1xf32>
    %358 = vector.extract_strided_slice %337 {offsets = [3, 0], sizes = [1, 64], strides = [1, 1]} : vector<4x64xf32> to vector<1x64xf32>
    %359 = vector.broadcast %357 : vector<8x1xf32> to vector<8x64xf32>
    %360 = vector.broadcast %358 : vector<1x64xf32> to vector<8x64xf32>
    %361 = arith.mulf %359, %360 : vector<8x64xf32>
    %362 = arith.addf %356, %361 : vector<8x64xf32>
    %363 = vector.broadcast %1 : vector<8x1xf32> to vector<8x64xf32>
    %364 = arith.addf %362, %363 : vector<8x64xf32>
    %cst_126 = arith.constant dense<0.000000e+00> : vector<8x128xf32>
    %365 = tpu.matmul %364, %2, %cst_126 {dimension_numbers = #tpu.dot_dimension_numbers<[1], [0], [0], [1], [0, 0, 1, 1], [], []>} : vector<8x64xf32>, vector<64x128xf32>, vector<8x128xf32> -> vector<8x128xf32>
    %366 = tpu.concatenate %365, %365 in 1 : vector<8x128xf32>, vector<8x128xf32> -> vector<8x256xf32>
    %c0_127 = arith.constant 0 : index
    %c0_128 = arith.constant 0 : index
    %c9_129 = arith.constant 9 : index
    %c0_130 = arith.constant 0 : index
    %367 = vector.load %arg6[%c0_127, %c0_128, %c9_129, %c0_130] : memref<1x8x16x256xf32, #tpu.memory_space<vmem>>, vector<1x8x1x256xf32>
    %368 = vector.shape_cast %367 : vector<1x8x1x256xf32> to vector<8x256xf32>
    %369 = arith.addf %368, %366 : vector<8x256xf32>
    %c0_131 = arith.constant 0 : index
    %c0_132 = arith.constant 0 : index
    %c9_133 = arith.constant 9 : index
    %c0_134 = arith.constant 0 : index
    %370 = vector.load %arg7[%c0_131, %c0_132, %c9_133, %c0_134] : memref<1x8x16x256xf32, #tpu.memory_space<vmem>>, vector<1x8x1x256xf32>
    %371 = vector.shape_cast %370 : vector<1x8x1x256xf32> to vector<8x256xf32>
    %372 = vector.shape_cast %369 : vector<8x256xf32> to vector<1x8x1x256xf32>
    tpu.vector_store %arg7[%c0_131, %c0_132, %c9_133, %c0_134], %372 {strides = array<i32>} : memref<1x8x16x256xf32, #tpu.memory_space<vmem>>, vector<1x8x1x256xf32>,
    %c0_135 = arith.constant 0 : index
    %c0_136 = arith.constant 0 : index
    %c10 = arith.constant 10 : index
    %c0_137 = arith.constant 0 : index
    %373 = vector.load %arg2[%c0_135, %c0_136, %c10, %c0_137] : memref<1x4x16x64xf32, #tpu.memory_space<vmem>>, vector<1x4x1x64xf32>
    %374 = vector.shape_cast %373 : vector<1x4x1x64xf32> to vector<4x64xf32>
    %cst_138 = arith.constant 0.000000e+00 : f32
    %375 = vector.broadcast %cst_138 : f32 to vector<8x64xf32>
    %376 = vector.extract_strided_slice %0 {offsets = [0, 0], sizes = [8, 1], strides = [1, 1]} : vector<8x4xf32> to vector<8x1xf32>
    %377 = vector.extract_strided_slice %374 {offsets = [0, 0], sizes = [1, 64], strides = [1, 1]} : vector<4x64xf32> to vector<1x64xf32>
    %378 = vector.broadcast %376 : vector<8x1xf32> to vector<8x64xf32>
    %379 = vector.broadcast %377 : vector<1x64xf32> to vector<8x64xf32>
    %380 = arith.mulf %378, %379 : vector<8x64xf32>
    %381 = arith.addf %375, %380 : vector<8x64xf32>
    %382 = vector.extract_strided_slice %0 {offsets = [0, 1], sizes = [8, 1], strides = [1, 1]} : vector<8x4xf32> to vector<8x1xf32>
    %383 = vector.extract_strided_slice %374 {offsets = [1, 0], sizes = [1, 64], strides = [1, 1]} : vector<4x64xf32> to vector<1x64xf32>
    %384 = vector.broadcast %382 : vector<8x1xf32> to vector<8x64xf32>
    %385 = vector.broadcast %383 : vector<1x64xf32> to vector<8x64xf32>
    %386 = arith.mulf %384, %385 : vector<8x64xf32>
    %387 = arith.addf %381, %386 : vector<8x64xf32>
    %388 = vector.extract_strided_slice %0 {offsets = [0, 2], sizes = [8, 1], strides = [1, 1]} : vector<8x4xf32> to vector<8x1xf32>
    %389 = vector.extract_strided_slice %374 {offsets = [2, 0], sizes = [1, 64], strides = [1, 1]} : vector<4x64xf32> to vector<1x64xf32>
    %390 = vector.broadcast %388 : vector<8x1xf32> to vector<8x64xf32>
    %391 = vector.broadcast %389 : vector<1x64xf32> to vector<8x64xf32>
    %392 = arith.mulf %390, %391 : vector<8x64xf32>
    %393 = arith.addf %387, %392 : vector<8x64xf32>
    %394 = vector.extract_strided_slice %0 {offsets = [0, 3], sizes = [8, 1], strides = [1, 1]} : vector<8x4xf32> to vector<8x1xf32>
    %395 = vector.extract_strided_slice %374 {offsets = [3, 0], sizes = [1, 64], strides = [1, 1]} : vector<4x64xf32> to vector<1x64xf32>
    %396 = vector.broadcast %394 : vector<8x1xf32> to vector<8x64xf32>
    %397 = vector.broadcast %395 : vector<1x64xf32> to vector<8x64xf32>
    %398 = arith.mulf %396, %397 : vector<8x64xf32>
    %399 = arith.addf %393, %398 : vector<8x64xf32>
    %400 = vector.broadcast %1 : vector<8x1xf32> to vector<8x64xf32>
    %401 = arith.addf %399, %400 : vector<8x64xf32>
    %cst_139 = arith.constant dense<0.000000e+00> : vector<8x128xf32>
    %402 = tpu.matmul %401, %2, %cst_139 {dimension_numbers = #tpu.dot_dimension_numbers<[1], [0], [0], [1], [0, 0, 1, 1], [], []>} : vector<8x64xf32>, vector<64x128xf32>, vector<8x128xf32> -> vector<8x128xf32>
    %403 = tpu.concatenate %402, %402 in 1 : vector<8x128xf32>, vector<8x128xf32> -> vector<8x256xf32>
    %c0_140 = arith.constant 0 : index
    %c0_141 = arith.constant 0 : index
    %c10_142 = arith.constant 10 : index
    %c0_143 = arith.constant 0 : index
    %404 = vector.load %arg6[%c0_140, %c0_141, %c10_142, %c0_143] : memref<1x8x16x256xf32, #tpu.memory_space<vmem>>, vector<1x8x1x256xf32>
    %405 = vector.shape_cast %404 : vector<1x8x1x256xf32> to vector<8x256xf32>
    %406 = arith.addf %405, %403 : vector<8x256xf32>
    %c0_144 = arith.constant 0 : index
    %c0_145 = arith.constant 0 : index
    %c10_146 = arith.constant 10 : index
    %c0_147 = arith.constant 0 : index
    %407 = vector.load %arg7[%c0_144, %c0_145, %c10_146, %c0_147] : memref<1x8x16x256xf32, #tpu.memory_space<vmem>>, vector<1x8x1x256xf32>
    %408 = vector.shape_cast %407 : vector<1x8x1x256xf32> to vector<8x256xf32>
    %409 = vector.shape_cast %406 : vector<8x256xf32> to vector<1x8x1x256xf32>
    tpu.vector_store %arg7[%c0_144, %c0_145, %c10_146, %c0_147], %409 {strides = array<i32>} : memref<1x8x16x256xf32, #tpu.memory_space<vmem>>, vector<1x8x1x256xf32>,
    %c0_148 = arith.constant 0 : index
    %c0_149 = arith.constant 0 : index
    %c11 = arith.constant 11 : index
    %c0_150 = arith.constant 0 : index
    %410 = vector.load %arg2[%c0_148, %c0_149, %c11, %c0_150] : memref<1x4x16x64xf32, #tpu.memory_space<vmem>>, vector<1x4x1x64xf32>
    %411 = vector.shape_cast %410 : vector<1x4x1x64xf32> to vector<4x64xf32>
    %cst_151 = arith.constant 0.000000e+00 : f32
    %412 = vector.broadcast %cst_151 : f32 to vector<8x64xf32>
    %413 = vector.extract_strided_slice %0 {offsets = [0, 0], sizes = [8, 1], strides = [1, 1]} : vector<8x4xf32> to vector<8x1xf32>
    %414 = vector.extract_strided_slice %411 {offsets = [0, 0], sizes = [1, 64], strides = [1, 1]} : vector<4x64xf32> to vector<1x64xf32>
    %415 = vector.broadcast %413 : vector<8x1xf32> to vector<8x64xf32>
    %416 = vector.broadcast %414 : vector<1x64xf32> to vector<8x64xf32>
    %417 = arith.mulf %415, %416 : vector<8x64xf32>
    %418 = arith.addf %412, %417 : vector<8x64xf32>
    %419 = vector.extract_strided_slice %0 {offsets = [0, 1], sizes = [8, 1], strides = [1, 1]} : vector<8x4xf32> to vector<8x1xf32>
    %420 = vector.extract_strided_slice %411 {offsets = [1, 0], sizes = [1, 64], strides = [1, 1]} : vector<4x64xf32> to vector<1x64xf32>
    %421 = vector.broadcast %419 : vector<8x1xf32> to vector<8x64xf32>
    %422 = vector.broadcast %420 : vector<1x64xf32> to vector<8x64xf32>
    %423 = arith.mulf %421, %422 : vector<8x64xf32>
    %424 = arith.addf %418, %423 : vector<8x64xf32>
    %425 = vector.extract_strided_slice %0 {offsets = [0, 2], sizes = [8, 1], strides = [1, 1]} : vector<8x4xf32> to vector<8x1xf32>
    %426 = vector.extract_strided_slice %411 {offsets = [2, 0], sizes = [1, 64], strides = [1, 1]} : vector<4x64xf32> to vector<1x64xf32>
    %427 = vector.broadcast %425 : vector<8x1xf32> to vector<8x64xf32>
    %428 = vector.broadcast %426 : vector<1x64xf32> to vector<8x64xf32>
    %429 = arith.mulf %427, %428 : vector<8x64xf32>
    %430 = arith.addf %424, %429 : vector<8x64xf32>
    %431 = vector.extract_strided_slice %0 {offsets = [0, 3], sizes = [8, 1], strides = [1, 1]} : vector<8x4xf32> to vector<8x1xf32>
    %432 = vector.extract_strided_slice %411 {offsets = [3, 0], sizes = [1, 64], strides = [1, 1]} : vector<4x64xf32> to vector<1x64xf32>
    %433 = vector.broadcast %431 : vector<8x1xf32> to vector<8x64xf32>
    %434 = vector.broadcast %432 : vector<1x64xf32> to vector<8x64xf32>
    %435 = arith.mulf %433, %434 : vector<8x64xf32>
    %436 = arith.addf %430, %435 : vector<8x64xf32>
    %437 = vector.broadcast %1 : vector<8x1xf32> to vector<8x64xf32>
    %438 = arith.addf %436, %437 : vector<8x64xf32>
    %cst_152 = arith.constant dense<0.000000e+00> : vector<8x128xf32>
    %439 = tpu.matmul %438, %2, %cst_152 {dimension_numbers = #tpu.dot_dimension_numbers<[1], [0], [0], [1], [0, 0, 1, 1], [], []>} : vector<8x64xf32>, vector<64x128xf32>, vector<8x128xf32> -> vector<8x128xf32>
    %440 = tpu.concatenate %439, %439 in 1 : vector<8x128xf32>, vector<8x128xf32> -> vector<8x256xf32>
    %c0_153 = arith.constant 0 : index
    %c0_154 = arith.constant 0 : index
    %c11_155 = arith.constant 11 : index
    %c0_156 = arith.constant 0 : index
    %441 = vector.load %arg6[%c0_153, %c0_154, %c11_155, %c0_156] : memref<1x8x16x256xf32, #tpu.memory_space<vmem>>, vector<1x8x1x256xf32>
    %442 = vector.shape_cast %441 : vector<1x8x1x256xf32> to vector<8x256xf32>
    %443 = arith.addf %442, %440 : vector<8x256xf32>
    %c0_157 = arith.constant 0 : index
    %c0_158 = arith.constant 0 : index
    %c11_159 = arith.constant 11 : index
    %c0_160 = arith.constant 0 : index
    %444 = vector.load %arg7[%c0_157, %c0_158, %c11_159, %c0_160] : memref<1x8x16x256xf32, #tpu.memory_space<vmem>>, vector<1x8x1x256xf32>
    %445 = vector.shape_cast %444 : vector<1x8x1x256xf32> to vector<8x256xf32>
    %446 = vector.shape_cast %443 : vector<8x256xf32> to vector<1x8x1x256xf32>
    tpu.vector_store %arg7[%c0_157, %c0_158, %c11_159, %c0_160], %446 {strides = array<i32>} : memref<1x8x16x256xf32, #tpu.memory_space<vmem>>, vector<1x8x1x256xf32>,
    %c0_161 = arith.constant 0 : index
    %c0_162 = arith.constant 0 : index
    %c12 = arith.constant 12 : index
    %c0_163 = arith.constant 0 : index
    %447 = vector.load %arg2[%c0_161, %c0_162, %c12, %c0_163] : memref<1x4x16x64xf32, #tpu.memory_space<vmem>>, vector<1x4x1x64xf32>
    %448 = vector.shape_cast %447 : vector<1x4x1x64xf32> to vector<4x64xf32>
    %cst_164 = arith.constant 0.000000e+00 : f32
    %449 = vector.broadcast %cst_164 : f32 to vector<8x64xf32>
    %450 = vector.extract_strided_slice %0 {offsets = [0, 0], sizes = [8, 1], strides = [1, 1]} : vector<8x4xf32> to vector<8x1xf32>
    %451 = vector.extract_strided_slice %448 {offsets = [0, 0], sizes = [1, 64], strides = [1, 1]} : vector<4x64xf32> to vector<1x64xf32>
    %452 = vector.broadcast %450 : vector<8x1xf32> to vector<8x64xf32>
    %453 = vector.broadcast %451 : vector<1x64xf32> to vector<8x64xf32>
    %454 = arith.mulf %452, %453 : vector<8x64xf32>
    %455 = arith.addf %449, %454 : vector<8x64xf32>
    %456 = vector.extract_strided_slice %0 {offsets = [0, 1], sizes = [8, 1], strides = [1, 1]} : vector<8x4xf32> to vector<8x1xf32>
    %457 = vector.extract_strided_slice %448 {offsets = [1, 0], sizes = [1, 64], strides = [1, 1]} : vector<4x64xf32> to vector<1x64xf32>
    %458 = vector.broadcast %456 : vector<8x1xf32> to vector<8x64xf32>
    %459 = vector.broadcast %457 : vector<1x64xf32> to vector<8x64xf32>
    %460 = arith.mulf %458, %459 : vector<8x64xf32>
    %461 = arith.addf %455, %460 : vector<8x64xf32>
    %462 = vector.extract_strided_slice %0 {offsets = [0, 2], sizes = [8, 1], strides = [1, 1]} : vector<8x4xf32> to vector<8x1xf32>
    %463 = vector.extract_strided_slice %448 {offsets = [2, 0], sizes = [1, 64], strides = [1, 1]} : vector<4x64xf32> to vector<1x64xf32>
    %464 = vector.broadcast %462 : vector<8x1xf32> to vector<8x64xf32>
    %465 = vector.broadcast %463 : vector<1x64xf32> to vector<8x64xf32>
    %466 = arith.mulf %464, %465 : vector<8x64xf32>
    %467 = arith.addf %461, %466 : vector<8x64xf32>
    %468 = vector.extract_strided_slice %0 {offsets = [0, 3], sizes = [8, 1], strides = [1, 1]} : vector<8x4xf32> to vector<8x1xf32>
    %469 = vector.extract_strided_slice %448 {offsets = [3, 0], sizes = [1, 64], strides = [1, 1]} : vector<4x64xf32> to vector<1x64xf32>
    %470 = vector.broadcast %468 : vector<8x1xf32> to vector<8x64xf32>
    %471 = vector.broadcast %469 : vector<1x64xf32> to vector<8x64xf32>
    %472 = arith.mulf %470, %471 : vector<8x64xf32>
    %473 = arith.addf %467, %472 : vector<8x64xf32>
    %474 = vector.broadcast %1 : vector<8x1xf32> to vector<8x64xf32>
    %475 = arith.addf %473, %474 : vector<8x64xf32>
    %cst_165 = arith.constant dense<0.000000e+00> : vector<8x128xf32>
    %476 = tpu.matmul %475, %2, %cst_165 {dimension_numbers = #tpu.dot_dimension_numbers<[1], [0], [0], [1], [0, 0, 1, 1], [], []>} : vector<8x64xf32>, vector<64x128xf32>, vector<8x128xf32> -> vector<8x128xf32>
    %477 = tpu.concatenate %476, %476 in 1 : vector<8x128xf32>, vector<8x128xf32> -> vector<8x256xf32>
    %c0_166 = arith.constant 0 : index
    %c0_167 = arith.constant 0 : index
    %c12_168 = arith.constant 12 : index
    %c0_169 = arith.constant 0 : index
    %478 = vector.load %arg6[%c0_166, %c0_167, %c12_168, %c0_169] : memref<1x8x16x256xf32, #tpu.memory_space<vmem>>, vector<1x8x1x256xf32>
    %479 = vector.shape_cast %478 : vector<1x8x1x256xf32> to vector<8x256xf32>
    %480 = arith.addf %479, %477 : vector<8x256xf32>
    %c0_170 = arith.constant 0 : index
    %c0_171 = arith.constant 0 : index
    %c12_172 = arith.constant 12 : index
    %c0_173 = arith.constant 0 : index
    %481 = vector.load %arg7[%c0_170, %c0_171, %c12_172, %c0_173] : memref<1x8x16x256xf32, #tpu.memory_space<vmem>>, vector<1x8x1x256xf32>
    %482 = vector.shape_cast %481 : vector<1x8x1x256xf32> to vector<8x256xf32>
    %483 = vector.shape_cast %480 : vector<8x256xf32> to vector<1x8x1x256xf32>
    tpu.vector_store %arg7[%c0_170, %c0_171, %c12_172, %c0_173], %483 {strides = array<i32>} : memref<1x8x16x256xf32, #tpu.memory_space<vmem>>, vector<1x8x1x256xf32>,
    %c0_174 = arith.constant 0 : index
    %c0_175 = arith.constant 0 : index
    %c13 = arith.constant 13 : index
    %c0_176 = arith.constant 0 : index
    %484 = vector.load %arg2[%c0_174, %c0_175, %c13, %c0_176] : memref<1x4x16x64xf32, #tpu.memory_space<vmem>>, vector<1x4x1x64xf32>
    %485 = vector.shape_cast %484 : vector<1x4x1x64xf32> to vector<4x64xf32>
    %cst_177 = arith.constant 0.000000e+00 : f32
    %486 = vector.broadcast %cst_177 : f32 to vector<8x64xf32>
    %487 = vector.extract_strided_slice %0 {offsets = [0, 0], sizes = [8, 1], strides = [1, 1]} : vector<8x4xf32> to vector<8x1xf32>
    %488 = vector.extract_strided_slice %485 {offsets = [0, 0], sizes = [1, 64], strides = [1, 1]} : vector<4x64xf32> to vector<1x64xf32>
    %489 = vector.broadcast %487 : vector<8x1xf32> to vector<8x64xf32>
    %490 = vector.broadcast %488 : vector<1x64xf32> to vector<8x64xf32>
    %491 = arith.mulf %489, %490 : vector<8x64xf32>
    %492 = arith.addf %486, %491 : vector<8x64xf32>
    %493 = vector.extract_strided_slice %0 {offsets = [0, 1], sizes = [8, 1], strides = [1, 1]} : vector<8x4xf32> to vector<8x1xf32>
    %494 = vector.extract_strided_slice %485 {offsets = [1, 0], sizes = [1, 64], strides = [1, 1]} : vector<4x64xf32> to vector<1x64xf32>
    %495 = vector.broadcast %493 : vector<8x1xf32> to vector<8x64xf32>
    %496 = vector.broadcast %494 : vector<1x64xf32> to vector<8x64xf32>
    %497 = arith.mulf %495, %496 : vector<8x64xf32>
    %498 = arith.addf %492, %497 : vector<8x64xf32>
    %499 = vector.extract_strided_slice %0 {offsets = [0, 2], sizes = [8, 1], strides = [1, 1]} : vector<8x4xf32> to vector<8x1xf32>
    %500 = vector.extract_strided_slice %485 {offsets = [2, 0], sizes = [1, 64], strides = [1, 1]} : vector<4x64xf32> to vector<1x64xf32>
    %501 = vector.broadcast %499 : vector<8x1xf32> to vector<8x64xf32>
    %502 = vector.broadcast %500 : vector<1x64xf32> to vector<8x64xf32>
    %503 = arith.mulf %501, %502 : vector<8x64xf32>
    %504 = arith.addf %498, %503 : vector<8x64xf32>
    %505 = vector.extract_strided_slice %0 {offsets = [0, 3], sizes = [8, 1], strides = [1, 1]} : vector<8x4xf32> to vector<8x1xf32>
    %506 = vector.extract_strided_slice %485 {offsets = [3, 0], sizes = [1, 64], strides = [1, 1]} : vector<4x64xf32> to vector<1x64xf32>
    %507 = vector.broadcast %505 : vector<8x1xf32> to vector<8x64xf32>
    %508 = vector.broadcast %506 : vector<1x64xf32> to vector<8x64xf32>
    %509 = arith.mulf %507, %508 : vector<8x64xf32>
    %510 = arith.addf %504, %509 : vector<8x64xf32>
    %511 = vector.broadcast %1 : vector<8x1xf32> to vector<8x64xf32>
    %512 = arith.addf %510, %511 : vector<8x64xf32>
    %cst_178 = arith.constant dense<0.000000e+00> : vector<8x128xf32>
    %513 = tpu.matmul %512, %2, %cst_178 {dimension_numbers = #tpu.dot_dimension_numbers<[1], [0], [0], [1], [0, 0, 1, 1], [], []>} : vector<8x64xf32>, vector<64x128xf32>, vector<8x128xf32> -> vector<8x128xf32>
    %514 = tpu.concatenate %513, %513 in 1 : vector<8x128xf32>, vector<8x128xf32> -> vector<8x256xf32>
    %c0_179 = arith.constant 0 : index
    %c0_180 = arith.constant 0 : index
    %c13_181 = arith.constant 13 : index
    %c0_182 = arith.constant 0 : index
    %515 = vector.load %arg6[%c0_179, %c0_180, %c13_181, %c0_182] : memref<1x8x16x256xf32, #tpu.memory_space<vmem>>, vector<1x8x1x256xf32>
    %516 = vector.shape_cast %515 : vector<1x8x1x256xf32> to vector<8x256xf32>
    %517 = arith.addf %516, %514 : vector<8x256xf32>
    %c0_183 = arith.constant 0 : index
    %c0_184 = arith.constant 0 : index
    %c13_185 = arith.constant 13 : index
    %c0_186 = arith.constant 0 : index
    %518 = vector.load %arg7[%c0_183, %c0_184, %c13_185, %c0_186] : memref<1x8x16x256xf32, #tpu.memory_space<vmem>>, vector<1x8x1x256xf32>
    %519 = vector.shape_cast %518 : vector<1x8x1x256xf32> to vector<8x256xf32>
    %520 = vector.shape_cast %517 : vector<8x256xf32> to vector<1x8x1x256xf32>
    tpu.vector_store %arg7[%c0_183, %c0_184, %c13_185, %c0_186], %520 {strides = array<i32>} : memref<1x8x16x256xf32, #tpu.memory_space<vmem>>, vector<1x8x1x256xf32>,
    %c0_187 = arith.constant 0 : index
    %c0_188 = arith.constant 0 : index
    %c14 = arith.constant 14 : index
    %c0_189 = arith.constant 0 : index
    %521 = vector.load %arg2[%c0_187, %c0_188, %c14, %c0_189] : memref<1x4x16x64xf32, #tpu.memory_space<vmem>>, vector<1x4x1x64xf32>
    %522 = vector.shape_cast %521 : vector<1x4x1x64xf32> to vector<4x64xf32>
    %cst_190 = arith.constant 0.000000e+00 : f32
    %523 = vector.broadcast %cst_190 : f32 to vector<8x64xf32>
    %524 = vector.extract_strided_slice %0 {offsets = [0, 0], sizes = [8, 1], strides = [1, 1]} : vector<8x4xf32> to vector<8x1xf32>
    %525 = vector.extract_strided_slice %522 {offsets = [0, 0], sizes = [1, 64], strides = [1, 1]} : vector<4x64xf32> to vector<1x64xf32>
    %526 = vector.broadcast %524 : vector<8x1xf32> to vector<8x64xf32>
    %527 = vector.broadcast %525 : vector<1x64xf32> to vector<8x64xf32>
    %528 = arith.mulf %526, %527 : vector<8x64xf32>
    %529 = arith.addf %523, %528 : vector<8x64xf32>
    %530 = vector.extract_strided_slice %0 {offsets = [0, 1], sizes = [8, 1], strides = [1, 1]} : vector<8x4xf32> to vector<8x1xf32>
    %531 = vector.extract_strided_slice %522 {offsets = [1, 0], sizes = [1, 64], strides = [1, 1]} : vector<4x64xf32> to vector<1x64xf32>
    %532 = vector.broadcast %530 : vector<8x1xf32> to vector<8x64xf32>
    %533 = vector.broadcast %531 : vector<1x64xf32> to vector<8x64xf32>
    %534 = arith.mulf %532, %533 : vector<8x64xf32>
    %535 = arith.addf %529, %534 : vector<8x64xf32>
    %536 = vector.extract_strided_slice %0 {offsets = [0, 2], sizes = [8, 1], strides = [1, 1]} : vector<8x4xf32> to vector<8x1xf32>
    %537 = vector.extract_strided_slice %522 {offsets = [2, 0], sizes = [1, 64], strides = [1, 1]} : vector<4x64xf32> to vector<1x64xf32>
    %538 = vector.broadcast %536 : vector<8x1xf32> to vector<8x64xf32>
    %539 = vector.broadcast %537 : vector<1x64xf32> to vector<8x64xf32>
    %540 = arith.mulf %538, %539 : vector<8x64xf32>
    %541 = arith.addf %535, %540 : vector<8x64xf32>
    %542 = vector.extract_strided_slice %0 {offsets = [0, 3], sizes = [8, 1], strides = [1, 1]} : vector<8x4xf32> to vector<8x1xf32>
    %543 = vector.extract_strided_slice %522 {offsets = [3, 0], sizes = [1, 64], strides = [1, 1]} : vector<4x64xf32> to vector<1x64xf32>
    %544 = vector.broadcast %542 : vector<8x1xf32> to vector<8x64xf32>
    %545 = vector.broadcast %543 : vector<1x64xf32> to vector<8x64xf32>
    %546 = arith.mulf %544, %545 : vector<8x64xf32>
    %547 = arith.addf %541, %546 : vector<8x64xf32>
    %548 = vector.broadcast %1 : vector<8x1xf32> to vector<8x64xf32>
    %549 = arith.addf %547, %548 : vector<8x64xf32>
    %cst_191 = arith.constant dense<0.000000e+00> : vector<8x128xf32>
    %550 = tpu.matmul %549, %2, %cst_191 {dimension_numbers = #tpu.dot_dimension_numbers<[1], [0], [0], [1], [0, 0, 1, 1], [], []>} : vector<8x64xf32>, vector<64x128xf32>, vector<8x128xf32> -> vector<8x128xf32>
    %551 = tpu.concatenate %550, %550 in 1 : vector<8x128xf32>, vector<8x128xf32> -> vector<8x256xf32>
    %c0_192 = arith.constant 0 : index
    %c0_193 = arith.constant 0 : index
    %c14_194 = arith.constant 14 : index
    %c0_195 = arith.constant 0 : index
    %552 = vector.load %arg6[%c0_192, %c0_193, %c14_194, %c0_195] : memref<1x8x16x256xf32, #tpu.memory_space<vmem>>, vector<1x8x1x256xf32>
    %553 = vector.shape_cast %552 : vector<1x8x1x256xf32> to vector<8x256xf32>
    %554 = arith.addf %553, %551 : vector<8x256xf32>
    %c0_196 = arith.constant 0 : index
    %c0_197 = arith.constant 0 : index
    %c14_198 = arith.constant 14 : index
    %c0_199 = arith.constant 0 : index
    %555 = vector.load %arg7[%c0_196, %c0_197, %c14_198, %c0_199] : memref<1x8x16x256xf32, #tpu.memory_space<vmem>>, vector<1x8x1x256xf32>
    %556 = vector.shape_cast %555 : vector<1x8x1x256xf32> to vector<8x256xf32>
    %557 = vector.shape_cast %554 : vector<8x256xf32> to vector<1x8x1x256xf32>
    tpu.vector_store %arg7[%c0_196, %c0_197, %c14_198, %c0_199], %557 {strides = array<i32>} : memref<1x8x16x256xf32, #tpu.memory_space<vmem>>, vector<1x8x1x256xf32>,
    %c0_200 = arith.constant 0 : index
    %c0_201 = arith.constant 0 : index
    %c15 = arith.constant 15 : index
    %c0_202 = arith.constant 0 : index
    %558 = vector.load %arg2[%c0_200, %c0_201, %c15, %c0_202] : memref<1x4x16x64xf32, #tpu.memory_space<vmem>>, vector<1x4x1x64xf32>
    %559 = vector.shape_cast %558 : vector<1x4x1x64xf32> to vector<4x64xf32>
    %cst_203 = arith.constant 0.000000e+00 : f32
    %560 = vector.broadcast %cst_203 : f32 to vector<8x64xf32>
    %561 = vector.extract_strided_slice %0 {offsets = [0, 0], sizes = [8, 1], strides = [1, 1]} : vector<8x4xf32> to vector<8x1xf32>
    %562 = vector.extract_strided_slice %559 {offsets = [0, 0], sizes = [1, 64], strides = [1, 1]} : vector<4x64xf32> to vector<1x64xf32>
    %563 = vector.broadcast %561 : vector<8x1xf32> to vector<8x64xf32>
    %564 = vector.broadcast %562 : vector<1x64xf32> to vector<8x64xf32>
    %565 = arith.mulf %563, %564 : vector<8x64xf32>
    %566 = arith.addf %560, %565 : vector<8x64xf32>
    %567 = vector.extract_strided_slice %0 {offsets = [0, 1], sizes = [8, 1], strides = [1, 1]} : vector<8x4xf32> to vector<8x1xf32>
    %568 = vector.extract_strided_slice %559 {offsets = [1, 0], sizes = [1, 64], strides = [1, 1]} : vector<4x64xf32> to vector<1x64xf32>
    %569 = vector.broadcast %567 : vector<8x1xf32> to vector<8x64xf32>
    %570 = vector.broadcast %568 : vector<1x64xf32> to vector<8x64xf32>
    %571 = arith.mulf %569, %570 : vector<8x64xf32>
    %572 = arith.addf %566, %571 : vector<8x64xf32>
    %573 = vector.extract_strided_slice %0 {offsets = [0, 2], sizes = [8, 1], strides = [1, 1]} : vector<8x4xf32> to vector<8x1xf32>
    %574 = vector.extract_strided_slice %559 {offsets = [2, 0], sizes = [1, 64], strides = [1, 1]} : vector<4x64xf32> to vector<1x64xf32>
    %575 = vector.broadcast %573 : vector<8x1xf32> to vector<8x64xf32>
    %576 = vector.broadcast %574 : vector<1x64xf32> to vector<8x64xf32>
    %577 = arith.mulf %575, %576 : vector<8x64xf32>
    %578 = arith.addf %572, %577 : vector<8x64xf32>
    %579 = vector.extract_strided_slice %0 {offsets = [0, 3], sizes = [8, 1], strides = [1, 1]} : vector<8x4xf32> to vector<8x1xf32>
    %580 = vector.extract_strided_slice %559 {offsets = [3, 0], sizes = [1, 64], strides = [1, 1]} : vector<4x64xf32> to vector<1x64xf32>
    %581 = vector.broadcast %579 : vector<8x1xf32> to vector<8x64xf32>
    %582 = vector.broadcast %580 : vector<1x64xf32> to vector<8x64xf32>
    %583 = arith.mulf %581, %582 : vector<8x64xf32>
    %584 = arith.addf %578, %583 : vector<8x64xf32>
    %585 = vector.broadcast %1 : vector<8x1xf32> to vector<8x64xf32>
    %586 = arith.addf %584, %585 : vector<8x64xf32>
    %cst_204 = arith.constant dense<0.000000e+00> : vector<8x128xf32>
    %587 = tpu.matmul %586, %2, %cst_204 {dimension_numbers = #tpu.dot_dimension_numbers<[1], [0], [0], [1], [0, 0, 1, 1], [], []>} : vector<8x64xf32>, vector<64x128xf32>, vector<8x128xf32> -> vector<8x128xf32>
    %588 = tpu.concatenate %587, %587 in 1 : vector<8x128xf32>, vector<8x128xf32> -> vector<8x256xf32>
    %c0_205 = arith.constant 0 : index
    %c0_206 = arith.constant 0 : index
    %c15_207 = arith.constant 15 : index
    %c0_208 = arith.constant 0 : index
    %589 = vector.load %arg6[%c0_205, %c0_206, %c15_207, %c0_208] : memref<1x8x16x256xf32, #tpu.memory_space<vmem>>, vector<1x8x1x256xf32>
    %590 = vector.shape_cast %589 : vector<1x8x1x256xf32> to vector<8x256xf32>
    %591 = arith.addf %590, %588 : vector<8x256xf32>
    %c0_209 = arith.constant 0 : index
    %c0_210 = arith.constant 0 : index
    %c15_211 = arith.constant 15 : index
    %c0_212 = arith.constant 0 : index
    %592 = vector.load %arg7[%c0_209, %c0_210, %c15_211, %c0_212] : memref<1x8x16x256xf32, #tpu.memory_space<vmem>>, vector<1x8x1x256xf32>
    %593 = vector.shape_cast %592 : vector<1x8x1x256xf32> to vector<8x256xf32>
    %594 = vector.shape_cast %591 : vector<8x256xf32> to vector<1x8x1x256xf32>
    tpu.vector_store %arg7[%c0_209, %c0_210, %c15_211, %c0_212], %594 {strides = array<i32>} : memref<1x8x16x256xf32, #tpu.memory_space<vmem>>, vector<1x8x1x256xf32>,
    return
  }
  func.func @transform_0(%arg0: i32, %arg1: i32) -> (i32, i32, i32, i32) {
    %c0_i32 = arith.constant 0 : i32
    %c0_i32_0 = arith.constant 0 : i32
    %c0_i32_1 = arith.constant 0 : i32
    return %arg0, %c0_i32, %arg1, %c0_i32_0 : i32, i32, i32, i32
  }
  func.func @transform_1(%arg0: i32, %arg1: i32) -> (i32, i32) {
    %c0_i32 = arith.constant 0 : i32
    %c0_i32_0 = arith.constant 0 : i32
    %c0_i32_1 = arith.constant 0 : i32
    return %c0_i32, %c0_i32_0 : i32, i32
  }
  func.func @transform_2(%arg0: i32, %arg1: i32) -> (i32, i32) {
    %c0_i32 = arith.constant 0 : i32
    %c0_i32_0 = arith.constant 0 : i32
    %c0_i32_1 = arith.constant 0 : i32
    return %c0_i32, %c0_i32_0 : i32, i32
  }
  func.func @transform_3(%arg0: i32, %arg1: i32) -> (i32, i32) {
    %c0_i32 = arith.constant 0 : i32
    %c0_i32_0 = arith.constant 0 : i32
    %c0_i32_1 = arith.constant 0 : i32
    return %c0_i32, %c0_i32_0 : i32, i32
  }
  func.func @transform_4(%arg0: i32, %arg1: i32) -> (i32, i32, i32, i32) {
    %c0_i32 = arith.constant 0 : i32
    %c0_i32_0 = arith.constant 0 : i32
    %c0_i32_1 = arith.constant 0 : i32
    return %arg0, %c0_i32, %arg1, %c0_i32_0 : i32, i32, i32, i32
  }
  func.func @transform_5(%arg0: i32, %arg1: i32) -> (i32, i32, i32, i32) {
    %c0_i32 = arith.constant 0 : i32
    %c0_i32_0 = arith.constant 0 : i32
    %c0_i32_1 = arith.constant 0 : i32
    return %arg0, %c0_i32, %arg1, %c0_i32_0 : i32, i32, i32, i32
  }
}

</mosaic_0001>

<llo_original>
// kernel: u_shortcut_process.1
$region0: #{u_shortcut_process.1}
  #allocation0 [shape = 'u32[]', space=smem, size = 0x4, offset = 0x4, fixed_abs, tag = 'smem constant byte address 0x4 - core index']
  #allocation1 [shape = 'u32[144,128]{1,0:T(1,128)}', space=vmem, size = 0x12000, scoped, tag = 'internal scratch']
  %s0 = inlined_call_operand.vmem [shape: f32[2,4,32,64], index: 0, kind: input, shape index: {}]
  %s1 = inlined_call_operand.vmem [shape: f32[8,4], index: 1, kind: input, shape index: {}]
  %s2 = inlined_call_operand.vmem [shape: f32[8,1], index: 2, kind: input, shape index: {}]
  %s3 = inlined_call_operand.vmem [shape: f32[64,128], index: 3, kind: input, shape index: {}]
  %s4 = inlined_call_operand.vmem [shape: f32[2,8,32,256], index: 4, kind: input, shape index: {}]
  %s5 = inlined_call_operand.vmem [shape: f32[2,8,32,256], index: 5, kind: output, shape index: {}]
  %s6 = sld [smem:[#allocation0]]
  $region133: #{u_shortcut_process.1} parent=0
    _
  %s8 = ssub.s32 1, %s6
  %s9 = scalar_select 0, %s8, %s6
  $region1: #{u_shortcut_process.1} parent=0
    #allocation2 [shape = 'u8[65536]{0}', space=vmem, size = 0x10000, scoped, tag = 'input window, operand 0']
    #allocation3 [shape = 'u8[262144]{0}', space=vmem, size = 0x40000, scoped, tag = 'input window, operand 4']
    #allocation4 [shape = 'u8[262144]{0}', space=vmem, size = 0x40000, scoped, tag = 'output window, operand 0']
    loop: start=0, step=1, limit=6
    $region2: #{u_shortcut_process.1} parent=1 // loop_pre_header
      _
    $region3: #{u_shortcut_process.1} parent=1 // loop_header
      %s11 = sphi 0, %s15
      %p12 = scmp.ge.s32.totalorder %s11, 6
      %s18 = sphi 0, %s30
      %s19 = sphi 0, %s26
      %s20 = sphi 0, %s18
      %s21 = sphi 0, %s19
      %s22 = sphi 0, %s20
      %s23 = sphi 0, %s21
      %s35 = sphi 0, %s37
      %s38 = sphi 0, %s35
      %s39 = sphi 0, %s38
      %s55 = sphi 0, %s39
      %s59 = sphi 0, %s59
      %s61 = sphi 0, %s59
      %s62 = sphi 0, %s61
      %s76 = sphi 0, %s62
      %s80 = sphi 0, %s80
      %s82 = sphi 0, %s80
      %s83 = sphi 0, %s82
      %s97 = sphi 0, %s83
      %s101 = sphi 0, %s101
      %s103 = sphi 0, %s101
      %s104 = sphi 0, %s103
      %s118 = sphi 0, %s104
      %s126 = sphi 0, %s128
      %s129 = sphi 0, %s126
      %s130 = sphi 0, %s129
      %s146 = sphi 0, %s130
      %s154 = sphi 0, %s156
      %s157 = sphi 0, %s154
      %s158 = sphi 0, %s157
      %s174 = sphi 0, %s158
    $region4: #{u_shortcut_process.1} parent=1 // loop_header_branch
      %14 = sbr.rel (%p12) target = $region8
    $region5: #{u_shortcut_process.1} parent=1 // loop_body
      %s16 = ssub.s32 %s11, 1
      %s17 = ssub.s32 %s11, 2
      %s24 = sadd.s32 1, %s19
      %p25 = scmp.ge.s32.totalorder %s24, 2
      %s26 = scalar_select %p25, 0, %s24
      %s27 = sadd.s32 1, %s18
      %s28 = scalar_select %p25, %s27, %s18
      %p29 = scmp.ge.s32.totalorder %s28, 2
      %s30 = scalar_select %p29, 0, %s28
      %s31 = ssub.s32 %s18, %s30
      %s32 = ssub.s32 %s19, %s26
      %s33 = sor.u32 %s31, %s32
      %p34 = scmp.eq.s32.totalorder %s33, 0
      %s36 = sadd.s32 %s35, 1
      %s37 = scalar_select %p34, %s35, %s36
      %p40 = pneg %p34
      %p41 = scmp.eq.s32.totalorder %s11, 3
      %p42 = por %p40, %p41
      %p43 = scmp.ne.s32.totalorder %s35, %s38
      %p44 = scmp.eq.s32.totalorder %s11, 0
      %p45 = por %p43, %p44
      %p46 = scmp.ne.s32.totalorder %s35, %s38
      %p47 = scmp.eq.s32.totalorder %s16, 3
      %p48 = por %p46, %p47
      %p49 = scmp.ne.s32.totalorder %s38, %s39
      %p50 = scmp.eq.s32.totalorder %s16, 0
      %p51 = por %p49, %p50
      %p52 = scmp.ne.s32.totalorder %s38, %s39
      %p53 = scmp.eq.s32.totalorder %s17, 3
      %p54 = por %p52, %p53
      %p56 = scmp.ne.s32.totalorder %s39, %s55
      %p57 = scmp.eq.s32.totalorder %s17, 0
      %p58 = por %p56, %p57
      %s60 = sadd.s32 %s59, 1
      %p63 = scmp.eq.s32.totalorder %s11, 3
      %p64 = scmp.ne.s32.totalorder %s59, %s61
      %p65 = scmp.eq.s32.totalorder %s11, 0
      %p66 = por %p64, %p65
      %p67 = scmp.ne.s32.totalorder %s59, %s61
      %p68 = scmp.eq.s32.totalorder %s16, 3
      %p69 = por %p67, %p68
      %p70 = scmp.ne.s32.totalorder %s61, %s62
      %p71 = scmp.eq.s32.totalorder %s16, 0
      %p72 = por %p70, %p71
      %p73 = scmp.ne.s32.totalorder %s61, %s62
      %p74 = scmp.eq.s32.totalorder %s17, 3
      %p75 = por %p73, %p74
      %p77 = scmp.ne.s32.totalorder %s62, %s76
      %p78 = scmp.eq.s32.totalorder %s17, 0
      %p79 = por %p77, %p78
      %s81 = sadd.s32 %s80, 1
      %p84 = scmp.eq.s32.totalorder %s11, 3
      %p85 = scmp.ne.s32.totalorder %s80, %s82
      %p86 = scmp.eq.s32.totalorder %s11, 0
      %p87 = por %p85, %p86
      %p88 = scmp.ne.s32.totalorder %s80, %s82
      %p89 = scmp.eq.s32.totalorder %s16, 3
      %p90 = por %p88, %p89
      %p91 = scmp.ne.s32.totalorder %s82, %s83
      %p92 = scmp.eq.s32.totalorder %s16, 0
      %p93 = por %p91, %p92
      %p94 = scmp.ne.s32.totalorder %s82, %s83
      %p95 = scmp.eq.s32.totalorder %s17, 3
      %p96 = por %p94, %p95
      %p98 = scmp.ne.s32.totalorder %s83, %s97
      %p99 = scmp.eq.s32.totalorder %s17, 0
      %p100 = por %p98, %p99
      %s102 = sadd.s32 %s101, 1
      %p105 = scmp.eq.s32.totalorder %s11, 3
      %p106 = scmp.ne.s32.totalorder %s101, %s103
      %p107 = scmp.eq.s32.totalorder %s11, 0
      %p108 = por %p106, %p107
      %p109 = scmp.ne.s32.totalorder %s101, %s103
      %p110 = scmp.eq.s32.totalorder %s16, 3
      %p111 = por %p109, %p110
      %p112 = scmp.ne.s32.totalorder %s103, %s104
      %p113 = scmp.eq.s32.totalorder %s16, 0
      %p114 = por %p112, %p113
      %p115 = scmp.ne.s32.totalorder %s103, %s104
      %p116 = scmp.eq.s32.totalorder %s17, 3
      %p117 = por %p115, %p116
      %p119 = scmp.ne.s32.totalorder %s104, %s118
      %p120 = scmp.eq.s32.totalorder %s17, 0
      %p121 = por %p119, %p120
      %s122 = ssub.s32 %s18, %s30
      %s123 = ssub.s32 %s19, %s26
      %s124 = sor.u32 %s122, %s123
      %p125 = scmp.eq.s32.totalorder %s124, 0
      %s127 = sadd.s32 %s126, 1
      %s128 = scalar_select %p125, %s126, %s127
      %p131 = pneg %p125
      %p132 = scmp.eq.s32.totalorder %s11, 3
      %p133 = por %p131, %p132
      %p134 = scmp.ne.s32.totalorder %s126, %s129
      %p135 = scmp.eq.s32.totalorder %s11, 0
      %p136 = por %p134, %p135
      %p137 = scmp.ne.s32.totalorder %s126, %s129
      %p138 = scmp.eq.s32.totalorder %s16, 3
      %p139 = por %p137, %p138
      %p140 = scmp.ne.s32.totalorder %s129, %s130
      %p141 = scmp.eq.s32.totalorder %s16, 0
      %p142 = por %p140, %p141
      %p143 = scmp.ne.s32.totalorder %s129, %s130
      %p144 = scmp.eq.s32.totalorder %s17, 3
      %p145 = por %p143, %p144
      %p147 = scmp.ne.s32.totalorder %s130, %s146
      %p148 = scmp.eq.s32.totalorder %s17, 0
      %p149 = por %p147, %p148
      %s150 = ssub.s32 %s18, %s30
      %s151 = ssub.s32 %s19, %s26
      %s152 = sor.u32 %s150, %s151
      %p153 = scmp.eq.s32.totalorder %s152, 0
      %s155 = sadd.s32 %s154, 1
      %s156 = scalar_select %p153, %s154, %s155
      %p159 = pneg %p153
      %p160 = scmp.eq.s32.totalorder %s11, 3
      %p161 = por %p159, %p160
      %p162 = scmp.ne.s32.totalorder %s154, %s157
      %p163 = scmp.eq.s32.totalorder %s11, 0
      %p164 = por %p162, %p163
      %p165 = scmp.ne.s32.totalorder %s154, %s157
      %p166 = scmp.eq.s32.totalorder %s16, 3
      %p167 = por %p165, %p166
      %p168 = scmp.ne.s32.totalorder %s157, %s158
      %p169 = scmp.eq.s32.totalorder %s16, 0
      %p170 = por %p168, %p169
      %p171 = scmp.ne.s32.totalorder %s157, %s158
      %p172 = scmp.eq.s32.totalorder %s17, 3
      %p173 = por %p171, %p172
      %p175 = scmp.ne.s32.totalorder %s158, %s174
      %p176 = scmp.eq.s32.totalorder %s17, 0
      %p177 = por %p175, %p176
      %p178 = scmp.le.s32.totalorder 1, %s11
      %p179 = scmp.lt.s32.totalorder %s11, 5
      %p180 = pnand %p178, %p179
      %p181 = pneg %p180
      // Predicated region
      $region9: #{u_shortcut_process.1} parent=5 // pred_check
        _
      $region10: #{u_shortcut_process.1} parent=5 // pred_check_branch
        %183 = sbr.rel (%p180) target = $region12
      $region11: #{u_shortcut_process.1} parent=5 // pred_region
        %s184 = ssub.s32 %s11, 1
        // Predicated region
        $region13: #{u_shortcut_process.1} parent=11 // pred_check
          %p185 = pneg %p72
        $region14: #{u_shortcut_process.1} parent=11 // pred_check_branch
          %187 = sbr.rel (%p185) target = $region16
        $region15: #{u_shortcut_process.1} parent=11 // pred_region
          _
        $region16: #{u_shortcut_process.1} parent=11 // pred_fallthru
          _
        // Predicated region
        $region17: #{u_shortcut_process.1} parent=11 // pred_check
          %p188 = pneg %p93
        $region18: #{u_shortcut_process.1} parent=11 // pred_check_branch
          %190 = sbr.rel (%p188) target = $region20
        $region19: #{u_shortcut_process.1} parent=11 // pred_region
          _
        $region20: #{u_shortcut_process.1} parent=11 // pred_fallthru
          _
        // Predicated region
        $region21: #{u_shortcut_process.1} parent=11 // pred_check
          %p191 = pneg %p114
        $region22: #{u_shortcut_process.1} parent=11 // pred_check_branch
          %193 = sbr.rel (%p191) target = $region24
        $region23: #{u_shortcut_process.1} parent=11 // pred_region
          _
        $region24: #{u_shortcut_process.1} parent=11 // pred_fallthru
          _
      $region12: #{u_shortcut_process.1} parent=5 // pred_fallthru
        _
      %p194 = scmp.lt.s32.totalorder %s11, 4
      // Predicated region
      $region25: #{u_shortcut_process.1} parent=5 // pred_check
        %p195 = pneg %p194
      $region26: #{u_shortcut_process.1} parent=5 // pred_check_branch
        %197 = sbr.rel (%p195) target = $region28
      $region27: #{u_shortcut_process.1} parent=5 // pred_region
        // Predicated region
        $region29: #{u_shortcut_process.1} parent=27 // pred_check
          %p198 = pneg %p45
        $region30: #{u_shortcut_process.1} parent=27 // pred_check_branch
          %200 = sbr.rel (%p198) target = $region32
        $region31: #{u_shortcut_process.1} parent=27 // pred_region
          %s201 = sand.u32 %s35, 1
          %s202 = sand.u32 %s35, 1
          %s203 = smul.addr %s202, 64
          %s204 = scalar_lea.vmem [#allocation2], %s203
          %s205 = smul.u32 2, %s19
          %s206 = smul.addr %s18, 16
          %s207 = sadd.s32 %s205, %s206
          %s208 = smul.addr %s207, 8
          %s209 = scalar_lea.vmem %s0, %s208
          // Predicated region
          $region33: #{u_shortcut_process.1} parent=31 // pred_check
            _
          $region34: #{u_shortcut_process.1} parent=31 // pred_check_branch
            %211 = sbr.rel (0) target = $region36
          $region35: #{u_shortcut_process.1} parent=31 // pred_region
            // Predicated region
            $region37: #{u_shortcut_process.1} parent=35 // pred_check
              _
            $region38: #{u_shortcut_process.1} parent=35 // pred_check_branch
              %213 = sbr.rel (0) target = $region40
            $region39: #{u_shortcut_process.1} parent=35 // pred_region
              // Predicated region
              $region52: #{u_shortcut_process.1} parent=39 // pred_check
                _
              $region53: #{u_shortcut_process.1} parent=39 // pred_check_branch
                %243 = sbr.rel (0) target = $region55
              $region54: #{u_shortcut_process.1} parent=39 // pred_region
                loop: start=0, step=1, limit=1
                $region56: #{u_shortcut_process.1} parent=54 // loop_pre_header
                  _
                $region57: #{u_shortcut_process.1} parent=54 // loop_header
                  %s245 = sphi 0, %s249
                  %p246 = scmp.ge.s32.totalorder %s245, 1
                  %s250 = sphi %s209, %s209
                  %s251 = sphi %s204, %s204
                $region58: #{u_shortcut_process.1} parent=54 // loop_header_branch
                  %248 = sbr.rel (%p246) target = $region62
                $region59: #{u_shortcut_process.1} parent=54 // loop_body
                  %v252 = vld [vmem:[%s250] sm:$0xff]
                  %253 = vst [vmem:[%s251] sm:$0xff] %v252
                  %v254 = vld [vmem:[%s250 + $0x8] sm:$0xff]
                  %255 = vst [vmem:[%s251 + $0x8] sm:$0xff] %v254
                  %v256 = vld [vmem:[%s250 + $0x20] sm:$0xff]
                  %257 = vst [vmem:[%s251 + $0x10] sm:$0xff] %v256
                  %v258 = vld [vmem:[%s250 + $0x28] sm:$0xff]
                  %259 = vst [vmem:[%s251 + $0x18] sm:$0xff] %v258
                  %v260 = vld [vmem:[%s250 + $0x40] sm:$0xff]
                  %261 = vst [vmem:[%s251 + $0x20] sm:$0xff] %v260
                  %v262 = vld [vmem:[%s250 + $0x48] sm:$0xff]
                  %263 = vst [vmem:[%s251 + $0x28] sm:$0xff] %v262
                  %v264 = vld [vmem:[%s250 + $0x60] sm:$0xff]
                  %265 = vst [vmem:[%s251 + $0x30] sm:$0xff] %v264
                  %v266 = vld [vmem:[%s250 + $0x68] sm:$0xff]
                  %267 = vst [vmem:[%s251 + $0x38] sm:$0xff] %v266
                $region60: #{u_shortcut_process.1} parent=54 // loop_footer
                  %s249 = sadd.s32 1, %s245
                $region61: #{u_shortcut_process.1} parent=54 // loop_footer_branch
                  %244 = sbr.rel target = $region57
                $region62: #{u_shortcut_process.1} parent=54 // loop_exit
                  _
              $region55: #{u_shortcut_process.1} parent=39 // pred_fallthru
                _
              // Predicated region
              $region63: #{u_shortcut_process.1} parent=39 // pred_check
                _
              $region64: #{u_shortcut_process.1} parent=39 // pred_check_branch
                %269 = sbr.rel target = $region66
              $region65: #{u_shortcut_process.1} parent=39 // pred_region
                _
              $region66: #{u_shortcut_process.1} parent=39 // pred_fallthru
                _
            $region40: #{u_shortcut_process.1} parent=35 // pred_fallthru
              _
            // Predicated region
            $region41: #{u_shortcut_process.1} parent=35 // pred_check
              _
            $region42: #{u_shortcut_process.1} parent=35 // pred_check_branch
              %215 = sbr.rel target = $region44
            $region43: #{u_shortcut_process.1} parent=35 // pred_region
              %s217 = ssub.s32 256, 1
              loop: start=0, step=1, limit=1
              $region45: #{u_shortcut_process.1} parent=43 // loop_pre_header
                _
              $region46: #{u_shortcut_process.1} parent=43 // loop_header
                %s219 = sphi 0, %s223
                %p220 = scmp.ge.s32.totalorder %s219, 1
                %s224 = sphi %s209, %s209
                %s225 = sphi %s204, %s204
              $region47: #{u_shortcut_process.1} parent=43 // loop_header_branch
                %222 = sbr.rel (%p220) target = $region51
              $region48: #{u_shortcut_process.1} parent=43 // loop_body
                %v226 = vld [vmem:[%s224] sm:%s217]
                %227 = vst [vmem:[%s225] sm:%s217] %v226
                %v228 = vld [vmem:[%s224 + $0x8] sm:%s217]
                %229 = vst [vmem:[%s225 + $0x8] sm:%s217] %v228
                %v230 = vld [vmem:[%s224 + $0x20] sm:%s217]
                %231 = vst [vmem:[%s225 + $0x10] sm:%s217] %v230
                %v232 = vld [vmem:[%s224 + $0x28] sm:%s217]
                %233 = vst [vmem:[%s225 + $0x18] sm:%s217] %v232
                %v234 = vld [vmem:[%s224 + $0x40] sm:%s217]
                %235 = vst [vmem:[%s225 + $0x20] sm:%s217] %v234
                %v236 = vld [vmem:[%s224 + $0x48] sm:%s217]
                %237 = vst [vmem:[%s225 + $0x28] sm:%s217] %v236
                %v238 = vld [vmem:[%s224 + $0x60] sm:%s217]
                %239 = vst [vmem:[%s225 + $0x30] sm:%s217] %v238
                %v240 = vld [vmem:[%s224 + $0x68] sm:%s217]
                %241 = vst [vmem:[%s225 + $0x38] sm:%s217] %v240
              $region49: #{u_shortcut_process.1} parent=43 // loop_footer
                %s223 = sadd.s32 1, %s219
              $region50: #{u_shortcut_process.1} parent=43 // loop_footer_branch
                %218 = sbr.rel target = $region46
              $region51: #{u_shortcut_process.1} parent=43 // loop_exit
                _
            $region44: #{u_shortcut_process.1} parent=35 // pred_fallthru
              _
          $region36: #{u_shortcut_process.1} parent=31 // pred_fallthru
            _
          %270 = vnop
        $region32: #{u_shortcut_process.1} parent=27 // pred_fallthru
          _
        // Predicated region
        $region67: #{u_shortcut_process.1} parent=27 // pred_check
          %p271 = pneg %p136
        $region68: #{u_shortcut_process.1} parent=27 // pred_check_branch
          %273 = sbr.rel (%p271) target = $region70
        $region69: #{u_shortcut_process.1} parent=27 // pred_region
          %s274 = sand.u32 %s126, 1
          %s275 = sand.u32 %s126, 1
          %s276 = smul.addr %s275, 256
          %s277 = scalar_lea.vmem [#allocation3], %s276
          %s278 = smul.u32 2, %s19
          %s279 = smul.addr %s278, 2
          %s280 = smul.addr %s18, 64
          %s281 = sadd.s32 %s279, %s280
          %s282 = smul.addr %s281, 8
          %s283 = scalar_lea.vmem %s4, %s282
          // Predicated region
          $region71: #{u_shortcut_process.1} parent=69 // pred_check
            _
          $region72: #{u_shortcut_process.1} parent=69 // pred_check_branch
            %285 = sbr.rel (0) target = $region74
          $region73: #{u_shortcut_process.1} parent=69 // pred_region
            // Predicated region
            $region75: #{u_shortcut_process.1} parent=73 // pred_check
              _
            $region76: #{u_shortcut_process.1} parent=73 // pred_check_branch
              %287 = sbr.rel (0) target = $region78
            $region77: #{u_shortcut_process.1} parent=73 // pred_region
              loop: start=0, step=1, limit=1
              $region79: #{u_shortcut_process.1} parent=77 // loop_pre_header
                _
              $region80: #{u_shortcut_process.1} parent=77 // loop_header
                %s289 = sphi 0, %s293
                %p290 = scmp.ge.s32.totalorder %s289, 1
                %s294 = sphi %s283, %s283
                %s295 = sphi %s277, %s277
              $region81: #{u_shortcut_process.1} parent=77 // loop_header_branch
                %292 = sbr.rel (%p290) target = $region85
              $region82: #{u_shortcut_process.1} parent=77 // loop_body
                %v296 = vld [vmem:[%s294] sm:$0xff]
                %297 = vst [vmem:[%s295] sm:$0xff] %v296
                %v298 = vld [vmem:[%s294 + $0x8] sm:$0xff]
                %299 = vst [vmem:[%s295 + $0x8] sm:$0xff] %v298
                %v300 = vld [vmem:[%s294 + $0x10] sm:$0xff]
                %301 = vst [vmem:[%s295 + $0x10] sm:$0xff] %v300
                %v302 = vld [vmem:[%s294 + $0x18] sm:$0xff]
                %303 = vst [vmem:[%s295 + $0x18] sm:$0xff] %v302
                %v304 = vld [vmem:[%s294 + $0x40] sm:$0xff]
                %305 = vst [vmem:[%s295 + $0x20] sm:$0xff] %v304
                %v306 = vld [vmem:[%s294 + $0x48] sm:$0xff]
                %307 = vst [vmem:[%s295 + $0x28] sm:$0xff] %v306
                %v308 = vld [vmem:[%s294 + $0x50] sm:$0xff]
                %309 = vst [vmem:[%s295 + $0x30] sm:$0xff] %v308
                %v310 = vld [vmem:[%s294 + $0x58] sm:$0xff]
                %311 = vst [vmem:[%s295 + $0x38] sm:$0xff] %v310
                %v312 = vld [vmem:[%s294 + $0x80] sm:$0xff]
                %313 = vst [vmem:[%s295 + $0x40] sm:$0xff] %v312
                %v314 = vld [vmem:[%s294 + $0x88] sm:$0xff]
                %315 = vst [vmem:[%s295 + $0x48] sm:$0xff] %v314
                %v316 = vld [vmem:[%s294 + $0x90] sm:$0xff]
                %317 = vst [vmem:[%s295 + $0x50] sm:$0xff] %v316
                %v318 = vld [vmem:[%s294 + $0x98] sm:$0xff]
                %319 = vst [vmem:[%s295 + $0x58] sm:$0xff] %v318
                %v320 = vld [vmem:[%s294 + $0xc0] sm:$0xff]
                %321 = vst [vmem:[%s295 + $0x60] sm:$0xff] %v320
                %v322 = vld [vmem:[%s294 + $0xc8] sm:$0xff]
                %323 = vst [vmem:[%s295 + $0x68] sm:$0xff] %v322
                %v324 = vld [vmem:[%s294 + $0xd0] sm:$0xff]
                %325 = vst [vmem:[%s295 + $0x70] sm:$0xff] %v324
                %v326 = vld [vmem:[%s294 + $0xd8] sm:$0xff]
                %327 = vst [vmem:[%s295 + $0x78] sm:$0xff] %v326
                %v328 = vld [vmem:[%s294 + $0x100] sm:$0xff]
                %329 = vst [vmem:[%s295 + $0x80] sm:$0xff] %v328
                %v330 = vld [vmem:[%s294 + $0x108] sm:$0xff]
                %331 = vst [vmem:[%s295 + $0x88] sm:$0xff] %v330
                %v332 = vld [vmem:[%s294 + $0x110] sm:$0xff]
                %333 = vst [vmem:[%s295 + $0x90] sm:$0xff] %v332
                %v334 = vld [vmem:[%s294 + $0x118] sm:$0xff]
                %335 = vst [vmem:[%s295 + $0x98] sm:$0xff] %v334
                %v336 = vld [vmem:[%s294 + $0x140] sm:$0xff]
                %337 = vst [vmem:[%s295 + $0xa0] sm:$0xff] %v336
                %v338 = vld [vmem:[%s294 + $0x148] sm:$0xff]
                %339 = vst [vmem:[%s295 + $0xa8] sm:$0xff] %v338
                %v340 = vld [vmem:[%s294 + $0x150] sm:$0xff]
                %341 = vst [vmem:[%s295 + $0xb0] sm:$0xff] %v340
                %v342 = vld [vmem:[%s294 + $0x158] sm:$0xff]
                %343 = vst [vmem:[%s295 + $0xb8] sm:$0xff] %v342
                %v344 = vld [vmem:[%s294 + $0x180] sm:$0xff]
                %345 = vst [vmem:[%s295 + $0xc0] sm:$0xff] %v344
                %v346 = vld [vmem:[%s294 + $0x188] sm:$0xff]
                %347 = vst [vmem:[%s295 + $0xc8] sm:$0xff] %v346
                %v348 = vld [vmem:[%s294 + $0x190] sm:$0xff]
                %349 = vst [vmem:[%s295 + $0xd0] sm:$0xff] %v348
                %v350 = vld [vmem:[%s294 + $0x198] sm:$0xff]
                %351 = vst [vmem:[%s295 + $0xd8] sm:$0xff] %v350
                %v352 = vld [vmem:[%s294 + $0x1c0] sm:$0xff]
                %353 = vst [vmem:[%s295 + $0xe0] sm:$0xff] %v352
                %v354 = vld [vmem:[%s294 + $0x1c8] sm:$0xff]
                %355 = vst [vmem:[%s295 + $0xe8] sm:$0xff] %v354
                %v356 = vld [vmem:[%s294 + $0x1d0] sm:$0xff]
                %357 = vst [vmem:[%s295 + $0xf0] sm:$0xff] %v356
                %v358 = vld [vmem:[%s294 + $0x1d8] sm:$0xff]
                %359 = vst [vmem:[%s295 + $0xf8] sm:$0xff] %v358
              $region83: #{u_shortcut_process.1} parent=77 // loop_footer
                %s293 = sadd.s32 1, %s289
              $region84: #{u_shortcut_process.1} parent=77 // loop_footer_branch
                %288 = sbr.rel target = $region80
              $region85: #{u_shortcut_process.1} parent=77 // loop_exit
                _
            $region78: #{u_shortcut_process.1} parent=73 // pred_fallthru
              _
            // Predicated region
            $region86: #{u_shortcut_process.1} parent=73 // pred_check
              _
            $region87: #{u_shortcut_process.1} parent=73 // pred_check_branch
              %361 = sbr.rel target = $region89
            $region88: #{u_shortcut_process.1} parent=73 // pred_region
              _
            $region89: #{u_shortcut_process.1} parent=73 // pred_fallthru
              _
          $region74: #{u_shortcut_process.1} parent=69 // pred_fallthru
            _
          %362 = vnop
        $region70: #{u_shortcut_process.1} parent=27 // pred_fallthru
          _
      $region28: #{u_shortcut_process.1} parent=5 // pred_fallthru
        _
      %p363 = scmp.le.s32.totalorder 1, %s11
      %p364 = scmp.lt.s32.totalorder %s11, 5
      %p365 = pnand %p363, %p364
      %p366 = pneg %p365
      // Predicated region
      $region90: #{u_shortcut_process.1} parent=5 // pred_check
        _
      $region91: #{u_shortcut_process.1} parent=5 // pred_check_branch
        %368 = sbr.rel (%p365) target = $region93
      $region92: #{u_shortcut_process.1} parent=5 // pred_region
        %s369 = ssub.s32 %s11, 1
        %s370 = sand.u32 %s38, 1
        %s371 = sand.u32 %s38, 1
        %s372 = smul.addr %s371, 64
        %s373 = scalar_lea.vmem [#allocation2], %s372
        // Predicated region
        $region94: #{u_shortcut_process.1} parent=92 // pred_check
          %p374 = pneg %p51
        $region95: #{u_shortcut_process.1} parent=92 // pred_check_branch
          %376 = sbr.rel (%p374) target = $region97
        $region96: #{u_shortcut_process.1} parent=92 // pred_region
          _
        $region97: #{u_shortcut_process.1} parent=92 // pred_fallthru
          _
        %s377 = sand.u32 %s129, 1
        %s378 = sand.u32 %s129, 1
        %s379 = smul.addr %s378, 256
        %s380 = scalar_lea.vmem [#allocation3], %s379
        // Predicated region
        $region98: #{u_shortcut_process.1} parent=92 // pred_check
          %p381 = pneg %p142
        $region99: #{u_shortcut_process.1} parent=92 // pred_check_branch
          %383 = sbr.rel (%p381) target = $region101
        $region100: #{u_shortcut_process.1} parent=92 // pred_region
          _
        $region101: #{u_shortcut_process.1} parent=92 // pred_fallthru
          _
        %s384 = sand.u32 %s38, 1
        %s385 = sand.u32 %s38, 1
        %s386 = smul.addr %s385, 64
        %s387 = scalar_lea.vmem [#allocation2], %s386
        %p388 = pneg %p51
        %p389 = pneg %p48
        %p390 = pneg %p72
        %p391 = pneg %p69
        %p392 = pneg %p93
        %p393 = pneg %p90
        %p394 = pneg %p114
        %p395 = pneg %p111
        %s396 = sand.u32 %s129, 1
        %s397 = sand.u32 %s129, 1
        %s398 = smul.addr %s397, 256
        %s399 = scalar_lea.vmem [#allocation3], %s398
        %p400 = pneg %p142
        %p401 = pneg %p139
        %p402 = pneg %p170
        %p403 = pneg %p167
        %s404 = sand.u32 %s157, 1
        %s405 = sand.u32 %s157, 1
        %s406 = smul.addr %s405, 256
        %s407 = scalar_lea.vmem [#allocation4], %s406
        %s408 = smul.u32 2, %s21
        %s409 = smul.u32 2, %s21
        %s410 = smul.u32 2, %s21
        %v411 = vld [vmem:[%s1] sm:$0xff]
        %v412 = vld [vmem:[%s2] sm:$0xff]
        %v413 = vld [vmem:[%s3] sm:$0xff]
        %v414 = vld [vmem:[%s3 + $0x8] sm:$0xff]
        %v415 = vld [vmem:[%s3 + $0x10] sm:$0xff]
        %v416 = vld [vmem:[%s3 + $0x18] sm:$0xff]
        %v417 = vld [vmem:[%s3 + $0x20] sm:$0xff]
        %v418 = vld [vmem:[%s3 + $0x28] sm:$0xff]
        %v419 = vld [vmem:[%s3 + $0x30] sm:$0xff]
        %v420 = vld [vmem:[%s3 + $0x38] sm:$0xff]
        %v421 = vld [vmem:[%s373] sm:$0x1]
        %v422 = vld [vmem:[%s373 + $0x10] sm:$0x1]
        %v423 = vld [vmem:[%s373 + $0x20] sm:$0x1]
        %v424 = vld [vmem:[%s373 + $0x30] sm:$0x1]
        %426 = vset.pattern.permute.xlu0 0
        %427 = vperm.xlu0 %426, %v411
        %v428 = vpop.permute.xlu0 %427
        %v430 = vlaneseq
        %v431 = vshrl.u32 %v430, 7
        %v432 = vsub.s32 0, %v431
        %v433 = vrot.slane %v421, %v432
        %v434 = vmul.f32 %v428, %v433
        %v435 = vadd.f32 %v434, 0.0
        %436 = vset.pattern.permute.xlu0 1
        %437 = vperm.xlu0 %436, %v411
        %v438 = vpop.permute.xlu0 %437
        %v440 = vlaneseq
        %v441 = vshrl.u32 %v440, 7
        %v442 = vsub.s32 0, %v441
        %v443 = vrot.slane %v422, %v442
        %v444 = vmul.f32 %v438, %v443
        %v445 = vadd.f32 %v435, %v444
        %446 = vset.pattern.permute.xlu0 2
        %447 = vperm.xlu0 %446, %v411
        %v448 = vpop.permute.xlu0 %447
        %v450 = vlaneseq
        %v451 = vshrl.u32 %v450, 7
        %v452 = vsub.s32 0, %v451
        %v453 = vrot.slane %v423, %v452
        %v454 = vmul.f32 %v448, %v453
        %v455 = vadd.f32 %v445, %v454
        %456 = vset.pattern.permute.xlu0 3
        %457 = vperm.xlu0 %456, %v411
        %v458 = vpop.permute.xlu0 %457
        %v460 = vlaneseq
        %v461 = vshrl.u32 %v460, 7
        %v462 = vsub.s32 0, %v461
        %v463 = vrot.slane %v424, %v462
        %v464 = vmul.f32 %v458, %v463
        %v465 = vadd.f32 %v455, %v464
        %467 = vset.pattern.permute.xlu0 0
        %468 = vperm.xlu0 %467, %v412
        %v469 = vpop.permute.xlu0 %468
        %v471 = vadd.f32 %v465, %v469
        %vm472 = vcmask 523264
        %v474 = vsel %vm472, %v471, 0
        %476 = vmatprep.subr.mxu0 0.0
        %477 = vmatpush1.msra.mxu0 0.0
        %478 = vmatprep.subr.mxu0 0.0
        %479 = vmatpush1.msra.mxu0 0.0
        %480 = vmatprep.subr.mxu0 0.0
        %481 = vmatpush1.msra.mxu0 0.0
        %482 = vmatprep.subr.mxu0 0.0
        %483 = vmatpush1.msra.mxu0 0.0
        %484 = vmatprep.subr.mxu0 0.0
        %485 = vmatpush1.msra.mxu0 0.0
        %486 = vmatprep.subr.mxu0 0.0
        %487 = vmatpush1.msra.mxu0 0.0
        %488 = vmatprep.subr.mxu0 0.0
        %489 = vmatpush1.msra.mxu0 0.0
        %490 = vmatprep.subr.mxu0 0.0
        %491 = vmatpush1.msra.mxu0 0.0
        %492 = vmatprep.subr.mxu0 0.0
        %493 = vmatpush1.msra.mxu0 %v420
        %494 = vmatprep.subr.mxu0 0.0
        %495 = vmatpush1.msra.mxu0 %v419
        %496 = vmatprep.subr.mxu0 0.0
        %497 = vmatpush1.msra.mxu0 %v418
        %498 = vmatprep.subr.mxu0 0.0
        %499 = vmatpush1.msra.mxu0 %v417
        %500 = vmatprep.subr.mxu0 0.0
        %501 = vmatpush1.msra.mxu0 %v416
        %502 = vmatprep.subr.mxu0 0.0
        %503 = vmatpush1.msra.mxu0 %v415
        %504 = vmatprep.subr.mxu0 0.0
        %505 = vmatpush1.msra.mxu0 %v414
        %506 = vmatprep.subr.mxu0 0.0
        %507 = vmatpush1.msra.mxu0 %v413
        %508 = vmatprep.subr.mxu0 0.0
        %509 = vmatpush2.msra.mxu0 0.0
        %510 = vmatprep.subr.mxu0 0.0
        %511 = vmatpush2.msra.mxu0 0.0
        %512 = vmatprep.subr.mxu0 0.0
        %513 = vmatpush2.msra.mxu0 0.0
        %514 = vmatprep.subr.mxu0 0.0
        %515 = vmatpush2.msra.mxu0 0.0
        %516 = vmatprep.subr.mxu0 0.0
        %517 = vmatpush2.msra.mxu0 0.0
        %518 = vmatprep.subr.mxu0 0.0
        %519 = vmatpush2.msra.mxu0 0.0
        %520 = vmatprep.subr.mxu0 0.0
        %521 = vmatpush2.msra.mxu0 0.0
        %522 = vmatprep.subr.mxu0 0.0
        %523 = vmatpush2.msra.mxu0 0.0
        %524 = vmatprep.subr.mxu0 0.0
        %525 = vmatpush2.msra.mxu0 0.0
        %526 = vmatprep.subr.mxu0 0.0
        %527 = vmatpush2.msra.mxu0 0.0
        %528 = vmatprep.subr.mxu0 0.0
        %529 = vmatpush2.msra.mxu0 0.0
        %530 = vmatprep.subr.mxu0 0.0
        %531 = vmatpush2.msra.mxu0 0.0
        %532 = vmatprep.subr.mxu0 0.0
        %533 = vmatpush2.msra.mxu0 0.0
        %534 = vmatprep.subr.mxu0 0.0
        %535 = vmatpush2.msra.mxu0 0.0
        %536 = vmatprep.subr.mxu0 0.0
        %537 = vmatpush2.msra.mxu0 0.0
        %538 = vmatprep.subr.mxu0 0.0
        %539 = vmatpush2.msra.mxu0 0.0
        %540 = vmatprep.mubr.f32.mxu0 0.0
        %541 = vmatmul.mubr.f32.gmra.mxu0 %v474
        %v542 = vpop.f32.mrf.mxu0
        %v543 = vadd.f32 0.0, %v542
        %v544 = vpop.f32.mrf.mxu0
        %545 = vdwg.mxu0
        %v546 = vld [vmem:[%s380] ss:$8 sm:$0x3]
        %s547 = scalar_lea.vmem %s380, 32 [#allocation3]
        %v548 = vld [vmem:[%s547] ss:$8 sm:$0x3]
        %s549 = scalar_lea.vmem %s380, 64 [#allocation3]
        %v550 = vld [vmem:[%s549] ss:$8 sm:$0x3]
        %s551 = scalar_lea.vmem %s380, 96 [#allocation3]
        %v552 = vld [vmem:[%s551] ss:$8 sm:$0x3]
        %s553 = scalar_lea.vmem %s380, 128 [#allocation3]
        %v554 = vld [vmem:[%s553] ss:$8 sm:$0x3]
        %s555 = scalar_lea.vmem %s380, 160 [#allocation3]
        %v556 = vld [vmem:[%s555] ss:$8 sm:$0x3]
        %s557 = scalar_lea.vmem %s380, 192 [#allocation3]
        %v558 = vld [vmem:[%s557] ss:$8 sm:$0x3]
        %s559 = scalar_lea.vmem %s380, 224 [#allocation3]
        %v560 = vld [vmem:[%s559] ss:$8 sm:$0x3]
        %v562 = vcombine.low %v543, %v543
        %v563 = vcombine.high %v543, %v543
        %v565 = vunpack.c.l.s4 1966171168
        %v566 = vunpack.c.0.s8 %v565
        %v567 = vlaneseq
        %v568 = vshrl.u32 %v567, 7
        %v569 = vsub.s32 %v566, %v568
        %v570 = vrot.slane %v562, %v569
        %v572 = vunpack.c.l.s4 1966171168
        %v573 = vunpack.c.0.s8 %v572
        %v574 = vlaneseq
        %v575 = vshrl.u32 %v574, 7
        %v576 = vsub.s32 %v573, %v575
        %v577 = vrot.slane %v563, %v576
        %v578 = vcombine.high %v570, %v570
        %v579 = vcombine.high %v577, %v577
        %v581 = vunpack.c.l.s4 1966171168
        %v582 = vunpack.c.0.s8 %v581
        %v583 = vlaneseq
        %v584 = vshrl.u32 %v583, 7
        %v585 = vsub.s32 %v582, %v584
        %v586 = vrot.slane %v570, %v585
        %v588 = vunpack.c.l.s4 1966171168
        %v589 = vunpack.c.0.s8 %v588
        %v590 = vlaneseq
        %v591 = vshrl.u32 %v590, 7
        %v592 = vsub.s32 %v589, %v591
        %v593 = vrot.slane %v577, %v592
        %v595 = vunpack.c.l.s4 1966171168
        %v596 = vunpack.c.0.s8 %v595
        %v597 = vlaneseq
        %v598 = vshrl.u32 %v597, 7
        %v599 = vsub.s32 %v596, %v598
        %v600 = vrot.slane %v578, %v599
        %v602 = vunpack.c.l.s4 1966171168
        %v603 = vunpack.c.0.s8 %v602
        %v604 = vlaneseq
        %v605 = vshrl.u32 %v604, 7
        %v606 = vsub.s32 %v603, %v605
        %v607 = vrot.slane %v579, %v606
        %v608 = vcombine.high %v586, %v586
        %v609 = vcombine.high %v593, %v593
        %v610 = vcombine.high %v600, %v600
        %v611 = vcombine.high %v607, %v607
        %v620 = vadd.f32 %v546, %v586
        %v621 = vadd.f32 %v548, %v600
        %v622 = vadd.f32 %v550, %v608
        %v623 = vadd.f32 %v552, %v610
        %v624 = vadd.f32 %v554, %v593
        %v625 = vadd.f32 %v556, %v607
        %v626 = vadd.f32 %v558, %v609
        %v627 = vadd.f32 %v560, %v611
        %v628 = vlaneseq
        %vm629 = vcmp.ge.s32.totalorder %v628, 0
        %vm630 = vcmp.lt.s32.totalorder %v628, 256
        %vm631 = vmand %vm629, %vm630
        %632 = vst.msk [vmem:[%s407] ss:$8 sm:$0x3] %vm631, %v620
        %633 = vst.msk [vmem:[%s407] ss:$8 sm:$0x0] %vm631, %v620
        %s634 = scalar_lea.vmem %s407, 32 [#allocation4]
        %635 = vst.msk [vmem:[%s634] ss:$8 sm:$0x3] %vm631, %v621
        %636 = vst.msk [vmem:[%s634] ss:$8 sm:$0x0] %vm631, %v621
        %s637 = scalar_lea.vmem %s407, 64 [#allocation4]
        %638 = vst.msk [vmem:[%s637] ss:$8 sm:$0x3] %vm631, %v622
        %639 = vst.msk [vmem:[%s637] ss:$8 sm:$0x0] %vm631, %v622
        %s640 = scalar_lea.vmem %s407, 96 [#allocation4]
        %641 = vst.msk [vmem:[%s640] ss:$8 sm:$0x3] %vm631, %v623
        %642 = vst.msk [vmem:[%s640] ss:$8 sm:$0x0] %vm631, %v623
        %s643 = scalar_lea.vmem %s407, 128 [#allocation4]
        %644 = vst.msk [vmem:[%s643] ss:$8 sm:$0x3] %vm631, %v624
        %645 = vst.msk [vmem:[%s643] ss:$8 sm:$0x0] %vm631, %v624
        %s646 = scalar_lea.vmem %s407, 160 [#allocation4]
        %647 = vst.msk [vmem:[%s646] ss:$8 sm:$0x3] %vm631, %v625
        %648 = vst.msk [vmem:[%s646] ss:$8 sm:$0x0] %vm631, %v625
        %s649 = scalar_lea.vmem %s407, 192 [#allocation4]
        %650 = vst.msk [vmem:[%s649] ss:$8 sm:$0x3] %vm631, %v626
        %651 = vst.msk [vmem:[%s649] ss:$8 sm:$0x0] %vm631, %v626
        %s652 = scalar_lea.vmem %s407, 224 [#allocation4]
        %653 = vst.msk [vmem:[%s652] ss:$8 sm:$0x3] %vm631, %v627
        %654 = vst.msk [vmem:[%s652] ss:$8 sm:$0x0] %vm631, %v627
        %v655 = vld [vmem:[%s373 + $0x1] sm:$0x1]
        %v656 = vld [vmem:[%s373 + $0x11] sm:$0x1]
        %v657 = vld [vmem:[%s373 + $0x21] sm:$0x1]
        %v658 = vld [vmem:[%s373 + $0x31] sm:$0x1]
        %v659 = vlaneseq
        %v660 = vshrl.u32 %v659, 7
        %v661 = vsub.s32 0, %v660
        %v662 = vrot.slane %v655, %v661
        %v663 = vmul.f32 %v428, %v662
        %v664 = vadd.f32 %v663, 0.0
        %v665 = vlaneseq
        %v666 = vshrl.u32 %v665, 7
        %v667 = vsub.s32 0, %v666
        %v668 = vrot.slane %v656, %v667
        %v669 = vmul.f32 %v438, %v668
        %v670 = vadd.f32 %v664, %v669
        %v671 = vlaneseq
        %v672 = vshrl.u32 %v671, 7
        %v673 = vsub.s32 0, %v672
        %v674 = vrot.slane %v657, %v673
        %v675 = vmul.f32 %v448, %v674
        %v676 = vadd.f32 %v670, %v675
        %v677 = vlaneseq
        %v678 = vshrl.u32 %v677, 7
        %v679 = vsub.s32 0, %v678
        %v680 = vrot.slane %v658, %v679
        %v681 = vmul.f32 %v458, %v680
        %v682 = vadd.f32 %v676, %v681
        %v683 = vadd.f32 %v682, %v469
        %v685 = vsel %vm472, %v683, 0
        %687 = vmatprep.subr.mxu0 0.0
        %688 = vmatpush1.msra.mxu0 0.0
        %689 = vmatprep.subr.mxu0 0.0
        %690 = vmatpush1.msra.mxu0 0.0
        %691 = vmatprep.subr.mxu0 0.0
        %692 = vmatpush1.msra.mxu0 0.0
        %693 = vmatprep.subr.mxu0 0.0
        %694 = vmatpush1.msra.mxu0 0.0
        %695 = vmatprep.subr.mxu0 0.0
        %696 = vmatpush1.msra.mxu0 0.0
        %697 = vmatprep.subr.mxu0 0.0
        %698 = vmatpush1.msra.mxu0 0.0
        %699 = vmatprep.subr.mxu0 0.0
        %700 = vmatpush1.msra.mxu0 0.0
        %701 = vmatprep.subr.mxu0 0.0
        %702 = vmatpush1.msra.mxu0 0.0
        %703 = vmatprep.subr.mxu0 0.0
        %704 = vmatpush1.msra.mxu0 %v420
        %705 = vmatprep.subr.mxu0 0.0
        %706 = vmatpush1.msra.mxu0 %v419
        %707 = vmatprep.subr.mxu0 0.0
        %708 = vmatpush1.msra.mxu0 %v418
        %709 = vmatprep.subr.mxu0 0.0
        %710 = vmatpush1.msra.mxu0 %v417
        %711 = vmatprep.subr.mxu0 0.0
        %712 = vmatpush1.msra.mxu0 %v416
        %713 = vmatprep.subr.mxu0 0.0
        %714 = vmatpush1.msra.mxu0 %v415
        %715 = vmatprep.subr.mxu0 0.0
        %716 = vmatpush1.msra.mxu0 %v414
        %717 = vmatprep.subr.mxu0 0.0
        %718 = vmatpush1.msra.mxu0 %v413
        %719 = vmatprep.subr.mxu0 0.0
        %720 = vmatpush2.msra.mxu0 0.0
        %721 = vmatprep.subr.mxu0 0.0
        %722 = vmatpush2.msra.mxu0 0.0
        %723 = vmatprep.subr.mxu0 0.0
        %724 = vmatpush2.msra.mxu0 0.0
        %725 = vmatprep.subr.mxu0 0.0
        %726 = vmatpush2.msra.mxu0 0.0
        %727 = vmatprep.subr.mxu0 0.0
        %728 = vmatpush2.msra.mxu0 0.0
        %729 = vmatprep.subr.mxu0 0.0
        %730 = vmatpush2.msra.mxu0 0.0
        %731 = vmatprep.subr.mxu0 0.0
        %732 = vmatpush2.msra.mxu0 0.0
        %733 = vmatprep.subr.mxu0 0.0
        %734 = vmatpush2.msra.mxu0 0.0
        %735 = vmatprep.subr.mxu0 0.0
        %736 = vmatpush2.msra.mxu0 0.0
        %737 = vmatprep.subr.mxu0 0.0
        %738 = vmatpush2.msra.mxu0 0.0
        %739 = vmatprep.subr.mxu0 0.0
        %740 = vmatpush2.msra.mxu0 0.0
        %741 = vmatprep.subr.mxu0 0.0
        %742 = vmatpush2.msra.mxu0 0.0
        %743 = vmatprep.subr.mxu0 0.0
        %744 = vmatpush2.msra.mxu0 0.0
        %745 = vmatprep.subr.mxu0 0.0
        %746 = vmatpush2.msra.mxu0 0.0
        %747 = vmatprep.subr.mxu0 0.0
        %748 = vmatpush2.msra.mxu0 0.0
        %749 = vmatprep.subr.mxu0 0.0
        %750 = vmatpush2.msra.mxu0 0.0
        %751 = vmatprep.mubr.f32.mxu0 0.0
        %752 = vmatmul.mubr.f32.gmra.mxu0 %v685
        %v753 = vpop.f32.mrf.mxu0
        %v754 = vadd.f32 0.0, %v753
        %v755 = vpop.f32.mrf.mxu0
        %756 = vdwg.mxu0
        %s757 = scalar_lea.vmem %s380, 1 [#allocation3]
        %v758 = vld [vmem:[%s757] ss:$8 sm:$0x3]
        %s759 = scalar_lea.vmem %s380, 33 [#allocation3]
        %v760 = vld [vmem:[%s759] ss:$8 sm:$0x3]
        %s761 = scalar_lea.vmem %s380, 65 [#allocation3]
        %v762 = vld [vmem:[%s761] ss:$8 sm:$0x3]
        %s763 = scalar_lea.vmem %s380, 97 [#allocation3]
        %v764 = vld [vmem:[%s763] ss:$8 sm:$0x3]
        %s765 = scalar_lea.vmem %s380, 129 [#allocation3]
        %v766 = vld [vmem:[%s765] ss:$8 sm:$0x3]
        %s767 = scalar_lea.vmem %s380, 161 [#allocation3]
        %v768 = vld [vmem:[%s767] ss:$8 sm:$0x3]
        %s769 = scalar_lea.vmem %s380, 193 [#allocation3]
        %v770 = vld [vmem:[%s769] ss:$8 sm:$0x3]
        %s771 = scalar_lea.vmem %s380, 225 [#allocation3]
        %v772 = vld [vmem:[%s771] ss:$8 sm:$0x3]
        %v774 = vcombine.low %v754, %v754
        %v775 = vcombine.high %v754, %v754
        %v777 = vunpack.c.l.s4 1966171168
        %v778 = vunpack.c.0.s8 %v777
        %v779 = vlaneseq
        %v780 = vshrl.u32 %v779, 7
        %v781 = vsub.s32 %v778, %v780
        %v782 = vrot.slane %v774, %v781
        %v784 = vunpack.c.l.s4 1966171168
        %v785 = vunpack.c.0.s8 %v784
        %v786 = vlaneseq
        %v787 = vshrl.u32 %v786, 7
        %v788 = vsub.s32 %v785, %v787
        %v789 = vrot.slane %v775, %v788
        %v790 = vcombine.high %v782, %v782
        %v791 = vcombine.high %v789, %v789
        %v793 = vunpack.c.l.s4 1966171168
        %v794 = vunpack.c.0.s8 %v793
        %v795 = vlaneseq
        %v796 = vshrl.u32 %v795, 7
        %v797 = vsub.s32 %v794, %v796
        %v798 = vrot.slane %v782, %v797
        %v800 = vunpack.c.l.s4 1966171168
        %v801 = vunpack.c.0.s8 %v800
        %v802 = vlaneseq
        %v803 = vshrl.u32 %v802, 7
        %v804 = vsub.s32 %v801, %v803
        %v805 = vrot.slane %v789, %v804
        %v807 = vunpack.c.l.s4 1966171168
        %v808 = vunpack.c.0.s8 %v807
        %v809 = vlaneseq
        %v810 = vshrl.u32 %v809, 7
        %v811 = vsub.s32 %v808, %v810
        %v812 = vrot.slane %v790, %v811
        %v814 = vunpack.c.l.s4 1966171168
        %v815 = vunpack.c.0.s8 %v814
        %v816 = vlaneseq
        %v817 = vshrl.u32 %v816, 7
        %v818 = vsub.s32 %v815, %v817
        %v819 = vrot.slane %v791, %v818
        %v820 = vcombine.high %v798, %v798
        %v821 = vcombine.high %v805, %v805
        %v822 = vcombine.high %v812, %v812
        %v823 = vcombine.high %v819, %v819
        %v832 = vadd.f32 %v758, %v798
        %v833 = vadd.f32 %v760, %v812
        %v834 = vadd.f32 %v762, %v820
        %v835 = vadd.f32 %v764, %v822
        %v836 = vadd.f32 %v766, %v805
        %v837 = vadd.f32 %v768, %v819
        %v838 = vadd.f32 %v770, %v821
        %v839 = vadd.f32 %v772, %v823
        %s840 = scalar_lea.vmem %s407, 1 [#allocation4]
        %841 = vst.msk [vmem:[%s840] ss:$8 sm:$0x3] %vm631, %v832
        %842 = vst.msk [vmem:[%s840] ss:$8 sm:$0x0] %vm631, %v832
        %s843 = scalar_lea.vmem %s407, 33 [#allocation4]
        %844 = vst.msk [vmem:[%s843] ss:$8 sm:$0x3] %vm631, %v833
        %845 = vst.msk [vmem:[%s843] ss:$8 sm:$0x0] %vm631, %v833
        %s846 = scalar_lea.vmem %s407, 65 [#allocation4]
        %847 = vst.msk [vmem:[%s846] ss:$8 sm:$0x3] %vm631, %v834
        %848 = vst.msk [vmem:[%s846] ss:$8 sm:$0x0] %vm631, %v834
        %s849 = scalar_lea.vmem %s407, 97 [#allocation4]
        %850 = vst.msk [vmem:[%s849] ss:$8 sm:$0x3] %vm631, %v835
        %851 = vst.msk [vmem:[%s849] ss:$8 sm:$0x0] %vm631, %v835
        %s852 = scalar_lea.vmem %s407, 129 [#allocation4]
        %853 = vst.msk [vmem:[%s852] ss:$8 sm:$0x3] %vm631, %v836
        %854 = vst.msk [vmem:[%s852] ss:$8 sm:$0x0] %vm631, %v836
        %s855 = scalar_lea.vmem %s407, 161 [#allocation4]
        %856 = vst.msk [vmem:[%s855] ss:$8 sm:$0x3] %vm631, %v837
        %857 = vst.msk [vmem:[%s855] ss:$8 sm:$0x0] %vm631, %v837
        %s858 = scalar_lea.vmem %s407, 193 [#allocation4]
        %859 = vst.msk [vmem:[%s858] ss:$8 sm:$0x3] %vm631, %v838
        %860 = vst.msk [vmem:[%s858] ss:$8 sm:$0x0] %vm631, %v838
        %s861 = scalar_lea.vmem %s407, 225 [#allocation4]
        %862 = vst.msk [vmem:[%s861] ss:$8 sm:$0x3] %vm631, %v839
        %863 = vst.msk [vmem:[%s861] ss:$8 sm:$0x0] %vm631, %v839
        %v864 = vld [vmem:[%s373 + $0x2] sm:$0x1]
        %v865 = vld [vmem:[%s373 + $0x12] sm:$0x1]
        %v866 = vld [vmem:[%s373 + $0x22] sm:$0x1]
        %v867 = vld [vmem:[%s373 + $0x32] sm:$0x1]
        %v868 = vlaneseq
        %v869 = vshrl.u32 %v868, 7
        %v870 = vsub.s32 0, %v869
        %v871 = vrot.slane %v864, %v870
        %v872 = vmul.f32 %v428, %v871
        %v873 = vadd.f32 %v872, 0.0
        %v874 = vlaneseq
        %v875 = vshrl.u32 %v874, 7
        %v876 = vsub.s32 0, %v875
        %v877 = vrot.slane %v865, %v876
        %v878 = vmul.f32 %v438, %v877
        %v879 = vadd.f32 %v873, %v878
        %v880 = vlaneseq
        %v881 = vshrl.u32 %v880, 7
        %v882 = vsub.s32 0, %v881
        %v883 = vrot.slane %v866, %v882
        %v884 = vmul.f32 %v448, %v883
        %v885 = vadd.f32 %v879, %v884
        %v886 = vlaneseq
        %v887 = vshrl.u32 %v886, 7
        %v888 = vsub.s32 0, %v887
        %v889 = vrot.slane %v867, %v888
        %v890 = vmul.f32 %v458, %v889
        %v891 = vadd.f32 %v885, %v890
        %v892 = vadd.f32 %v891, %v469
        %v894 = vsel %vm472, %v892, 0
        %896 = vmatprep.subr.mxu0 0.0
        %897 = vmatpush1.msra.mxu0 0.0
        %898 = vmatprep.subr.mxu0 0.0
        %899 = vmatpush1.msra.mxu0 0.0
        %900 = vmatprep.subr.mxu0 0.0
        %901 = vmatpush1.msra.mxu0 0.0
        %902 = vmatprep.subr.mxu0 0.0
        %903 = vmatpush1.msra.mxu0 0.0
        %904 = vmatprep.subr.mxu0 0.0
        %905 = vmatpush1.msra.mxu0 0.0
        %906 = vmatprep.subr.mxu0 0.0
        %907 = vmatpush1.msra.mxu0 0.0
        %908 = vmatprep.subr.mxu0 0.0
        %909 = vmatpush1.msra.mxu0 0.0
        %910 = vmatprep.subr.mxu0 0.0
        %911 = vmatpush1.msra.mxu0 0.0
        %912 = vmatprep.subr.mxu0 0.0
        %913 = vmatpush1.msra.mxu0 %v420
        %914 = vmatprep.subr.mxu0 0.0
        %915 = vmatpush1.msra.mxu0 %v419
        %916 = vmatprep.subr.mxu0 0.0
        %917 = vmatpush1.msra.mxu0 %v418
        %918 = vmatprep.subr.mxu0 0.0
        %919 = vmatpush1.msra.mxu0 %v417
        %920 = vmatprep.subr.mxu0 0.0
        %921 = vmatpush1.msra.mxu0 %v416
        %922 = vmatprep.subr.mxu0 0.0
        %923 = vmatpush1.msra.mxu0 %v415
        %924 = vmatprep.subr.mxu0 0.0
        %925 = vmatpush1.msra.mxu0 %v414
        %926 = vmatprep.subr.mxu0 0.0
        %927 = vmatpush1.msra.mxu0 %v413
        %928 = vmatprep.subr.mxu0 0.0
        %929 = vmatpush2.msra.mxu0 0.0
        %930 = vmatprep.subr.mxu0 0.0
        %931 = vmatpush2.msra.mxu0 0.0
        %932 = vmatprep.subr.mxu0 0.0
        %933 = vmatpush2.msra.mxu0 0.0
        %934 = vmatprep.subr.mxu0 0.0
        %935 = vmatpush2.msra.mxu0 0.0
        %936 = vmatprep.subr.mxu0 0.0
        %937 = vmatpush2.msra.mxu0 0.0
        %938 = vmatprep.subr.mxu0 0.0
        %939 = vmatpush2.msra.mxu0 0.0
        %940 = vmatprep.subr.mxu0 0.0
        %941 = vmatpush2.msra.mxu0 0.0
        %942 = vmatprep.subr.mxu0 0.0
        %943 = vmatpush2.msra.mxu0 0.0
        %944 = vmatprep.subr.mxu0 0.0
        %945 = vmatpush2.msra.mxu0 0.0
        %946 = vmatprep.subr.mxu0 0.0
        %947 = vmatpush2.msra.mxu0 0.0
        %948 = vmatprep.subr.mxu0 0.0
        %949 = vmatpush2.msra.mxu0 0.0
        %950 = vmatprep.subr.mxu0 0.0
        %951 = vmatpush2.msra.mxu0 0.0
        %952 = vmatprep.subr.mxu0 0.0
        %953 = vmatpush2.msra.mxu0 0.0
        %954 = vmatprep.subr.mxu0 0.0
        %955 = vmatpush2.msra.mxu0 0.0
        %956 = vmatprep.subr.mxu0 0.0
        %957 = vmatpush2.msra.mxu0 0.0
        %958 = vmatprep.subr.mxu0 0.0
        %959 = vmatpush2.msra.mxu0 0.0
        %960 = vmatprep.mubr.f32.mxu0 0.0
        %961 = vmatmul.mubr.f32.gmra.mxu0 %v894
        %v962 = vpop.f32.mrf.mxu0
        %v963 = vadd.f32 0.0, %v962
        %v964 = vpop.f32.mrf.mxu0
        %965 = vdwg.mxu0
        %s966 = scalar_lea.vmem %s380, 2 [#allocation3]
        %v967 = vld [vmem:[%s966] ss:$8 sm:$0x3]
        %s968 = scalar_lea.vmem %s380, 34 [#allocation3]
        %v969 = vld [vmem:[%s968] ss:$8 sm:$0x3]
        %s970 = scalar_lea.vmem %s380, 66 [#allocation3]
        %v971 = vld [vmem:[%s970] ss:$8 sm:$0x3]
        %s972 = scalar_lea.vmem %s380, 98 [#allocation3]
        %v973 = vld [vmem:[%s972] ss:$8 sm:$0x3]
        %s974 = scalar_lea.vmem %s380, 130 [#allocation3]
        %v975 = vld [vmem:[%s974] ss:$8 sm:$0x3]
        %s976 = scalar_lea.vmem %s380, 162 [#allocation3]
        %v977 = vld [vmem:[%s976] ss:$8 sm:$0x3]
        %s978 = scalar_lea.vmem %s380, 194 [#allocation3]
        %v979 = vld [vmem:[%s978] ss:$8 sm:$0x3]
        %s980 = scalar_lea.vmem %s380, 226 [#allocation3]
        %v981 = vld [vmem:[%s980] ss:$8 sm:$0x3]
        %v983 = vcombine.low %v963, %v963
        %v984 = vcombine.high %v963, %v963
        %v986 = vunpack.c.l.s4 1966171168
        %v987 = vunpack.c.0.s8 %v986
        %v988 = vlaneseq
        %v989 = vshrl.u32 %v988, 7
        %v990 = vsub.s32 %v987, %v989
        %v991 = vrot.slane %v983, %v990
        %v993 = vunpack.c.l.s4 1966171168
        %v994 = vunpack.c.0.s8 %v993
        %v995 = vlaneseq
        %v996 = vshrl.u32 %v995, 7
        %v997 = vsub.s32 %v994, %v996
        %v998 = vrot.slane %v984, %v997
        %v999 = vcombine.high %v991, %v991
        %v1000 = vcombine.high %v998, %v998
        %v1002 = vunpack.c.l.s4 1966171168
        %v1003 = vunpack.c.0.s8 %v1002
        %v1004 = vlaneseq
        %v1005 = vshrl.u32 %v1004, 7
        %v1006 = vsub.s32 %v1003, %v1005
        %v1007 = vrot.slane %v991, %v1006
        %v1009 = vunpack.c.l.s4 1966171168
        %v1010 = vunpack.c.0.s8 %v1009
        %v1011 = vlaneseq
        %v1012 = vshrl.u32 %v1011, 7
        %v1013 = vsub.s32 %v1010, %v1012
        %v1014 = vrot.slane %v998, %v1013
        %v1016 = vunpack.c.l.s4 1966171168
        %v1017 = vunpack.c.0.s8 %v1016
        %v1018 = vlaneseq
        %v1019 = vshrl.u32 %v1018, 7
        %v1020 = vsub.s32 %v1017, %v1019
        %v1021 = vrot.slane %v999, %v1020
        %v1023 = vunpack.c.l.s4 1966171168
        %v1024 = vunpack.c.0.s8 %v1023
        %v1025 = vlaneseq
        %v1026 = vshrl.u32 %v1025, 7
        %v1027 = vsub.s32 %v1024, %v1026
        %v1028 = vrot.slane %v1000, %v1027
        %v1029 = vcombine.high %v1007, %v1007
        %v1030 = vcombine.high %v1014, %v1014
        %v1031 = vcombine.high %v1021, %v1021
        %v1032 = vcombine.high %v1028, %v1028
        %v1041 = vadd.f32 %v967, %v1007
        %v1042 = vadd.f32 %v969, %v1021
        %v1043 = vadd.f32 %v971, %v1029
        %v1044 = vadd.f32 %v973, %v1031
        %v1045 = vadd.f32 %v975, %v1014
        %v1046 = vadd.f32 %v977, %v1028
        %v1047 = vadd.f32 %v979, %v1030
        %v1048 = vadd.f32 %v981, %v1032
        %s1049 = scalar_lea.vmem %s407, 2 [#allocation4]
        %1050 = vst.msk [vmem:[%s1049] ss:$8 sm:$0x3] %vm631, %v1041
        %1051 = vst.msk [vmem:[%s1049] ss:$8 sm:$0x0] %vm631, %v1041
        %s1052 = scalar_lea.vmem %s407, 34 [#allocation4]
        %1053 = vst.msk [vmem:[%s1052] ss:$8 sm:$0x3] %vm631, %v1042
        %1054 = vst.msk [vmem:[%s1052] ss:$8 sm:$0x0] %vm631, %v1042
        %s1055 = scalar_lea.vmem %s407, 66 [#allocation4]
        %1056 = vst.msk [vmem:[%s1055] ss:$8 sm:$0x3] %vm631, %v1043
        %1057 = vst.msk [vmem:[%s1055] ss:$8 sm:$0x0] %vm631, %v1043
        %s1058 = scalar_lea.vmem %s407, 98 [#allocation4]
        %1059 = vst.msk [vmem:[%s1058] ss:$8 sm:$0x3] %vm631, %v1044
        %1060 = vst.msk [vmem:[%s1058] ss:$8 sm:$0x0] %vm631, %v1044
        %s1061 = scalar_lea.vmem %s407, 130 [#allocation4]
        %1062 = vst.msk [vmem:[%s1061] ss:$8 sm:$0x3] %vm631, %v1045
        %1063 = vst.msk [vmem:[%s1061] ss:$8 sm:$0x0] %vm631, %v1045
        %s1064 = scalar_lea.vmem %s407, 162 [#allocation4]
        %1065 = vst.msk [vmem:[%s1064] ss:$8 sm:$0x3] %vm631, %v1046
        %1066 = vst.msk [vmem:[%s1064] ss:$8 sm:$0x0] %vm631, %v1046
        %s1067 = scalar_lea.vmem %s407, 194 [#allocation4]
        %1068 = vst.msk [vmem:[%s1067] ss:$8 sm:$0x3] %vm631, %v1047
        %1069 = vst.msk [vmem:[%s1067] ss:$8 sm:$0x0] %vm631, %v1047
        %s1070 = scalar_lea.vmem %s407, 226 [#allocation4]
        %1071 = vst.msk [vmem:[%s1070] ss:$8 sm:$0x3] %vm631, %v1048
        %1072 = vst.msk [vmem:[%s1070] ss:$8 sm:$0x0] %vm631, %v1048
        %v1073 = vld [vmem:[%s373 + $0x3] sm:$0x1]
        %v1074 = vld [vmem:[%s373 + $0x13] sm:$0x1]
        %v1075 = vld [vmem:[%s373 + $0x23] sm:$0x1]
        %v1076 = vld [vmem:[%s373 + $0x33] sm:$0x1]
        %v1077 = vlaneseq
        %v1078 = vshrl.u32 %v1077, 7
        %v1079 = vsub.s32 0, %v1078
        %v1080 = vrot.slane %v1073, %v1079
        %v1081 = vmul.f32 %v428, %v1080
        %v1082 = vadd.f32 %v1081, 0.0
        %v1083 = vlaneseq
        %v1084 = vshrl.u32 %v1083, 7
        %v1085 = vsub.s32 0, %v1084
        %v1086 = vrot.slane %v1074, %v1085
        %v1087 = vmul.f32 %v438, %v1086
        %v1088 = vadd.f32 %v1082, %v1087
        %v1089 = vlaneseq
        %v1090 = vshrl.u32 %v1089, 7
        %v1091 = vsub.s32 0, %v1090
        %v1092 = vrot.slane %v1075, %v1091
        %v1093 = vmul.f32 %v448, %v1092
        %v1094 = vadd.f32 %v1088, %v1093
        %v1095 = vlaneseq
        %v1096 = vshrl.u32 %v1095, 7
        %v1097 = vsub.s32 0, %v1096
        %v1098 = vrot.slane %v1076, %v1097
        %v1099 = vmul.f32 %v458, %v1098
        %v1100 = vadd.f32 %v1094, %v1099
        %v1101 = vadd.f32 %v1100, %v469
        %v1103 = vsel %vm472, %v1101, 0
        %1105 = vmatprep.subr.mxu0 0.0
        %1106 = vmatpush1.msra.mxu0 0.0
        %1107 = vmatprep.subr.mxu0 0.0
        %1108 = vmatpush1.msra.mxu0 0.0
        %1109 = vmatprep.subr.mxu0 0.0
        %1110 = vmatpush1.msra.mxu0 0.0
        %1111 = vmatprep.subr.mxu0 0.0
        %1112 = vmatpush1.msra.mxu0 0.0
        %1113 = vmatprep.subr.mxu0 0.0
        %1114 = vmatpush1.msra.mxu0 0.0
        %1115 = vmatprep.subr.mxu0 0.0
        %1116 = vmatpush1.msra.mxu0 0.0
        %1117 = vmatprep.subr.mxu0 0.0
        %1118 = vmatpush1.msra.mxu0 0.0
        %1119 = vmatprep.subr.mxu0 0.0
        %1120 = vmatpush1.msra.mxu0 0.0
        %1121 = vmatprep.subr.mxu0 0.0
        %1122 = vmatpush1.msra.mxu0 %v420
        %1123 = vmatprep.subr.mxu0 0.0
        %1124 = vmatpush1.msra.mxu0 %v419
        %1125 = vmatprep.subr.mxu0 0.0
        %1126 = vmatpush1.msra.mxu0 %v418
        %1127 = vmatprep.subr.mxu0 0.0
        %1128 = vmatpush1.msra.mxu0 %v417
        %1129 = vmatprep.subr.mxu0 0.0
        %1130 = vmatpush1.msra.mxu0 %v416
        %1131 = vmatprep.subr.mxu0 0.0
        %1132 = vmatpush1.msra.mxu0 %v415
        %1133 = vmatprep.subr.mxu0 0.0
        %1134 = vmatpush1.msra.mxu0 %v414
        %1135 = vmatprep.subr.mxu0 0.0
        %1136 = vmatpush1.msra.mxu0 %v413
        %1137 = vmatprep.subr.mxu0 0.0
        %1138 = vmatpush2.msra.mxu0 0.0
        %1139 = vmatprep.subr.mxu0 0.0
        %1140 = vmatpush2.msra.mxu0 0.0
        %1141 = vmatprep.subr.mxu0 0.0
        %1142 = vmatpush2.msra.mxu0 0.0
        %1143 = vmatprep.subr.mxu0 0.0
        %1144 = vmatpush2.msra.mxu0 0.0
        %1145 = vmatprep.subr.mxu0 0.0
        %1146 = vmatpush2.msra.mxu0 0.0
        %1147 = vmatprep.subr.mxu0 0.0
        %1148 = vmatpush2.msra.mxu0 0.0
        %1149 = vmatprep.subr.mxu0 0.0
        %1150 = vmatpush2.msra.mxu0 0.0
        %1151 = vmatprep.subr.mxu0 0.0
        %1152 = vmatpush2.msra.mxu0 0.0
        %1153 = vmatprep.subr.mxu0 0.0
        %1154 = vmatpush2.msra.mxu0 0.0
        %1155 = vmatprep.subr.mxu0 0.0
        %1156 = vmatpush2.msra.mxu0 0.0
        %1157 = vmatprep.subr.mxu0 0.0
        %1158 = vmatpush2.msra.mxu0 0.0
        %1159 = vmatprep.subr.mxu0 0.0
        %1160 = vmatpush2.msra.mxu0 0.0
        %1161 = vmatprep.subr.mxu0 0.0
        %1162 = vmatpush2.msra.mxu0 0.0
        %1163 = vmatprep.subr.mxu0 0.0
        %1164 = vmatpush2.msra.mxu0 0.0
        %1165 = vmatprep.subr.mxu0 0.0
        %1166 = vmatpush2.msra.mxu0 0.0
        %1167 = vmatprep.subr.mxu0 0.0
        %1168 = vmatpush2.msra.mxu0 0.0
        %1169 = vmatprep.mubr.f32.mxu0 0.0
        %1170 = vmatmul.mubr.f32.gmra.mxu0 %v1103
        %v1171 = vpop.f32.mrf.mxu0
        %v1172 = vadd.f32 0.0, %v1171
        %v1173 = vpop.f32.mrf.mxu0
        %1174 = vdwg.mxu0
        %s1175 = scalar_lea.vmem %s380, 3 [#allocation3]
        %v1176 = vld [vmem:[%s1175] ss:$8 sm:$0x3]
        %s1177 = scalar_lea.vmem %s380, 35 [#allocation3]
        %v1178 = vld [vmem:[%s1177] ss:$8 sm:$0x3]
        %s1179 = scalar_lea.vmem %s380, 67 [#allocation3]
        %v1180 = vld [vmem:[%s1179] ss:$8 sm:$0x3]
        %s1181 = scalar_lea.vmem %s380, 99 [#allocation3]
        %v1182 = vld [vmem:[%s1181] ss:$8 sm:$0x3]
        %s1183 = scalar_lea.vmem %s380, 131 [#allocation3]
        %v1184 = vld [vmem:[%s1183] ss:$8 sm:$0x3]
        %s1185 = scalar_lea.vmem %s380, 163 [#allocation3]
        %v1186 = vld [vmem:[%s1185] ss:$8 sm:$0x3]
        %s1187 = scalar_lea.vmem %s380, 195 [#allocation3]
        %v1188 = vld [vmem:[%s1187] ss:$8 sm:$0x3]
        %s1189 = scalar_lea.vmem %s380, 227 [#allocation3]
        %v1190 = vld [vmem:[%s1189] ss:$8 sm:$0x3]
        %v1192 = vcombine.low %v1172, %v1172
        %v1193 = vcombine.high %v1172, %v1172
        %v1195 = vunpack.c.l.s4 1966171168
        %v1196 = vunpack.c.0.s8 %v1195
        %v1197 = vlaneseq
        %v1198 = vshrl.u32 %v1197, 7
        %v1199 = vsub.s32 %v1196, %v1198
        %v1200 = vrot.slane %v1192, %v1199
        %v1202 = vunpack.c.l.s4 1966171168
        %v1203 = vunpack.c.0.s8 %v1202
        %v1204 = vlaneseq
        %v1205 = vshrl.u32 %v1204, 7
        %v1206 = vsub.s32 %v1203, %v1205
        %v1207 = vrot.slane %v1193, %v1206
        %v1208 = vcombine.high %v1200, %v1200
        %v1209 = vcombine.high %v1207, %v1207
        %v1211 = vunpack.c.l.s4 1966171168
        %v1212 = vunpack.c.0.s8 %v1211
        %v1213 = vlaneseq
        %v1214 = vshrl.u32 %v1213, 7
        %v1215 = vsub.s32 %v1212, %v1214
        %v1216 = vrot.slane %v1200, %v1215
        %v1218 = vunpack.c.l.s4 1966171168
        %v1219 = vunpack.c.0.s8 %v1218
        %v1220 = vlaneseq
        %v1221 = vshrl.u32 %v1220, 7
        %v1222 = vsub.s32 %v1219, %v1221
        %v1223 = vrot.slane %v1207, %v1222
        %v1225 = vunpack.c.l.s4 1966171168
        %v1226 = vunpack.c.0.s8 %v1225
        %v1227 = vlaneseq
        %v1228 = vshrl.u32 %v1227, 7
        %v1229 = vsub.s32 %v1226, %v1228
        %v1230 = vrot.slane %v1208, %v1229
        %v1232 = vunpack.c.l.s4 1966171168
        %v1233 = vunpack.c.0.s8 %v1232
        %v1234 = vlaneseq
        %v1235 = vshrl.u32 %v1234, 7
        %v1236 = vsub.s32 %v1233, %v1235
        %v1237 = vrot.slane %v1209, %v1236
        %v1238 = vcombine.high %v1216, %v1216
        %v1239 = vcombine.high %v1223, %v1223
        %v1240 = vcombine.high %v1230, %v1230
        %v1241 = vcombine.high %v1237, %v1237
        %v1250 = vadd.f32 %v1176, %v1216
        %v1251 = vadd.f32 %v1178, %v1230
        %v1252 = vadd.f32 %v1180, %v1238
        %v1253 = vadd.f32 %v1182, %v1240
        %v1254 = vadd.f32 %v1184, %v1223
        %v1255 = vadd.f32 %v1186, %v1237
        %v1256 = vadd.f32 %v1188, %v1239
        %v1257 = vadd.f32 %v1190, %v1241
        %s1258 = scalar_lea.vmem %s407, 3 [#allocation4]
        %1259 = vst.msk [vmem:[%s1258] ss:$8 sm:$0x3] %vm631, %v1250
        %1260 = vst.msk [vmem:[%s1258] ss:$8 sm:$0x0] %vm631, %v1250
        %s1261 = scalar_lea.vmem %s407, 35 [#allocation4]
        %1262 = vst.msk [vmem:[%s1261] ss:$8 sm:$0x3] %vm631, %v1251
        %1263 = vst.msk [vmem:[%s1261] ss:$8 sm:$0x0] %vm631, %v1251
        %s1264 = scalar_lea.vmem %s407, 67 [#allocation4]
        %1265 = vst.msk [vmem:[%s1264] ss:$8 sm:$0x3] %vm631, %v1252
        %1266 = vst.msk [vmem:[%s1264] ss:$8 sm:$0x0] %vm631, %v1252
        %s1267 = scalar_lea.vmem %s407, 99 [#allocation4]
        %1268 = vst.msk [vmem:[%s1267] ss:$8 sm:$0x3] %vm631, %v1253
        %1269 = vst.msk [vmem:[%s1267] ss:$8 sm:$0x0] %vm631, %v1253
        %s1270 = scalar_lea.vmem %s407, 131 [#allocation4]
        %1271 = vst.msk [vmem:[%s1270] ss:$8 sm:$0x3] %vm631, %v1254
        %1272 = vst.msk [vmem:[%s1270] ss:$8 sm:$0x0] %vm631, %v1254
        %s1273 = scalar_lea.vmem %s407, 163 [#allocation4]
        %1274 = vst.msk [vmem:[%s1273] ss:$8 sm:$0x3] %vm631, %v1255
        %1275 = vst.msk [vmem:[%s1273] ss:$8 sm:$0x0] %vm631, %v1255
        %s1276 = scalar_lea.vmem %s407, 195 [#allocation4]
        %1277 = vst.msk [vmem:[%s1276] ss:$8 sm:$0x3] %vm631, %v1256
        %1278 = vst.msk [vmem:[%s1276] ss:$8 sm:$0x0] %vm631, %v1256
        %s1279 = scalar_lea.vmem %s407, 227 [#allocation4]
        %1280 = vst.msk [vmem:[%s1279] ss:$8 sm:$0x3] %vm631, %v1257
        %1281 = vst.msk [vmem:[%s1279] ss:$8 sm:$0x0] %vm631, %v1257
        %v1282 = vld [vmem:[%s373 + $0x4] sm:$0x1]
        %v1283 = vld [vmem:[%s373 + $0x14] sm:$0x1]
        %v1284 = vld [vmem:[%s373 + $0x24] sm:$0x1]
        %v1285 = vld [vmem:[%s373 + $0x34] sm:$0x1]
        %v1286 = vlaneseq
        %v1287 = vshrl.u32 %v1286, 7
        %v1288 = vsub.s32 0, %v1287
        %v1289 = vrot.slane %v1282, %v1288
        %v1290 = vmul.f32 %v428, %v1289
        %v1291 = vadd.f32 %v1290, 0.0
        %v1292 = vlaneseq
        %v1293 = vshrl.u32 %v1292, 7
        %v1294 = vsub.s32 0, %v1293
        %v1295 = vrot.slane %v1283, %v1294
        %v1296 = vmul.f32 %v438, %v1295
        %v1297 = vadd.f32 %v1291, %v1296
        %v1298 = vlaneseq
        %v1299 = vshrl.u32 %v1298, 7
        %v1300 = vsub.s32 0, %v1299
        %v1301 = vrot.slane %v1284, %v1300
        %v1302 = vmul.f32 %v448, %v1301
        %v1303 = vadd.f32 %v1297, %v1302
        %v1304 = vlaneseq
        %v1305 = vshrl.u32 %v1304, 7
        %v1306 = vsub.s32 0, %v1305
        %v1307 = vrot.slane %v1285, %v1306
        %v1308 = vmul.f32 %v458, %v1307
        %v1309 = vadd.f32 %v1303, %v1308
        %v1310 = vadd.f32 %v1309, %v469
        %v1312 = vsel %vm472, %v1310, 0
        %1314 = vmatprep.subr.mxu0 0.0
        %1315 = vmatpush1.msra.mxu0 0.0
        %1316 = vmatprep.subr.mxu0 0.0
        %1317 = vmatpush1.msra.mxu0 0.0
        %1318 = vmatprep.subr.mxu0 0.0
        %1319 = vmatpush1.msra.mxu0 0.0
        %1320 = vmatprep.subr.mxu0 0.0
        %1321 = vmatpush1.msra.mxu0 0.0
        %1322 = vmatprep.subr.mxu0 0.0
        %1323 = vmatpush1.msra.mxu0 0.0
        %1324 = vmatprep.subr.mxu0 0.0
        %1325 = vmatpush1.msra.mxu0 0.0
        %1326 = vmatprep.subr.mxu0 0.0
        %1327 = vmatpush1.msra.mxu0 0.0
        %1328 = vmatprep.subr.mxu0 0.0
        %1329 = vmatpush1.msra.mxu0 0.0
        %1330 = vmatprep.subr.mxu0 0.0
        %1331 = vmatpush1.msra.mxu0 %v420
        %1332 = vmatprep.subr.mxu0 0.0
        %1333 = vmatpush1.msra.mxu0 %v419
        %1334 = vmatprep.subr.mxu0 0.0
        %1335 = vmatpush1.msra.mxu0 %v418
        %1336 = vmatprep.subr.mxu0 0.0
        %1337 = vmatpush1.msra.mxu0 %v417
        %1338 = vmatprep.subr.mxu0 0.0
        %1339 = vmatpush1.msra.mxu0 %v416
        %1340 = vmatprep.subr.mxu0 0.0
        %1341 = vmatpush1.msra.mxu0 %v415
        %1342 = vmatprep.subr.mxu0 0.0
        %1343 = vmatpush1.msra.mxu0 %v414
        %1344 = vmatprep.subr.mxu0 0.0
        %1345 = vmatpush1.msra.mxu0 %v413
        %1346 = vmatprep.subr.mxu0 0.0
        %1347 = vmatpush2.msra.mxu0 0.0
        %1348 = vmatprep.subr.mxu0 0.0
        %1349 = vmatpush2.msra.mxu0 0.0
        %1350 = vmatprep.subr.mxu0 0.0
        %1351 = vmatpush2.msra.mxu0 0.0
        %1352 = vmatprep.subr.mxu0 0.0
        %1353 = vmatpush2.msra.mxu0 0.0
        %1354 = vmatprep.subr.mxu0 0.0
        %1355 = vmatpush2.msra.mxu0 0.0
        %1356 = vmatprep.subr.mxu0 0.0
        %1357 = vmatpush2.msra.mxu0 0.0
        %1358 = vmatprep.subr.mxu0 0.0
        %1359 = vmatpush2.msra.mxu0 0.0
        %1360 = vmatprep.subr.mxu0 0.0
        %1361 = vmatpush2.msra.mxu0 0.0
        %1362 = vmatprep.subr.mxu0 0.0
        %1363 = vmatpush2.msra.mxu0 0.0
        %1364 = vmatprep.subr.mxu0 0.0
        %1365 = vmatpush2.msra.mxu0 0.0
        %1366 = vmatprep.subr.mxu0 0.0
        %1367 = vmatpush2.msra.mxu0 0.0
        %1368 = vmatprep.subr.mxu0 0.0
        %1369 = vmatpush2.msra.mxu0 0.0
        %1370 = vmatprep.subr.mxu0 0.0
        %1371 = vmatpush2.msra.mxu0 0.0
        %1372 = vmatprep.subr.mxu0 0.0
        %1373 = vmatpush2.msra.mxu0 0.0
        %1374 = vmatprep.subr.mxu0 0.0
        %1375 = vmatpush2.msra.mxu0 0.0
        %1376 = vmatprep.subr.mxu0 0.0
        %1377 = vmatpush2.msra.mxu0 0.0
        %1378 = vmatprep.mubr.f32.mxu0 0.0
        %1379 = vmatmul.mubr.f32.gmra.mxu0 %v1312
        %v1380 = vpop.f32.mrf.mxu0
        %v1381 = vadd.f32 0.0, %v1380
        %v1382 = vpop.f32.mrf.mxu0
        %1383 = vdwg.mxu0
        %s1384 = scalar_lea.vmem %s380, 4 [#allocation3]
        %v1385 = vld [vmem:[%s1384] ss:$8 sm:$0x3]
        %s1386 = scalar_lea.vmem %s380, 36 [#allocation3]
        %v1387 = vld [vmem:[%s1386] ss:$8 sm:$0x3]
        %s1388 = scalar_lea.vmem %s380, 68 [#allocation3]
        %v1389 = vld [vmem:[%s1388] ss:$8 sm:$0x3]
        %s1390 = scalar_lea.vmem %s380, 100 [#allocation3]
        %v1391 = vld [vmem:[%s1390] ss:$8 sm:$0x3]
        %s1392 = scalar_lea.vmem %s380, 132 [#allocation3]
        %v1393 = vld [vmem:[%s1392] ss:$8 sm:$0x3]
        %s1394 = scalar_lea.vmem %s380, 164 [#allocation3]
        %v1395 = vld [vmem:[%s1394] ss:$8 sm:$0x3]
        %s1396 = scalar_lea.vmem %s380, 196 [#allocation3]
        %v1397 = vld [vmem:[%s1396] ss:$8 sm:$0x3]
        %s1398 = scalar_lea.vmem %s380, 228 [#allocation3]
        %v1399 = vld [vmem:[%s1398] ss:$8 sm:$0x3]
        %v1401 = vcombine.low %v1381, %v1381
        %v1402 = vcombine.high %v1381, %v1381
        %v1404 = vunpack.c.l.s4 1966171168
        %v1405 = vunpack.c.0.s8 %v1404
        %v1406 = vlaneseq
        %v1407 = vshrl.u32 %v1406, 7
        %v1408 = vsub.s32 %v1405, %v1407
        %v1409 = vrot.slane %v1401, %v1408
        %v1411 = vunpack.c.l.s4 1966171168
        %v1412 = vunpack.c.0.s8 %v1411
        %v1413 = vlaneseq
        %v1414 = vshrl.u32 %v1413, 7
        %v1415 = vsub.s32 %v1412, %v1414
        %v1416 = vrot.slane %v1402, %v1415
        %v1417 = vcombine.high %v1409, %v1409
        %v1418 = vcombine.high %v1416, %v1416
        %v1420 = vunpack.c.l.s4 1966171168
        %v1421 = vunpack.c.0.s8 %v1420
        %v1422 = vlaneseq
        %v1423 = vshrl.u32 %v1422, 7
        %v1424 = vsub.s32 %v1421, %v1423
        %v1425 = vrot.slane %v1409, %v1424
        %v1427 = vunpack.c.l.s4 1966171168
        %v1428 = vunpack.c.0.s8 %v1427
        %v1429 = vlaneseq
        %v1430 = vshrl.u32 %v1429, 7
        %v1431 = vsub.s32 %v1428, %v1430
        %v1432 = vrot.slane %v1416, %v1431
        %v1434 = vunpack.c.l.s4 1966171168
        %v1435 = vunpack.c.0.s8 %v1434
        %v1436 = vlaneseq
        %v1437 = vshrl.u32 %v1436, 7
        %v1438 = vsub.s32 %v1435, %v1437
        %v1439 = vrot.slane %v1417, %v1438
        %v1441 = vunpack.c.l.s4 1966171168
        %v1442 = vunpack.c.0.s8 %v1441
        %v1443 = vlaneseq
        %v1444 = vshrl.u32 %v1443, 7
        %v1445 = vsub.s32 %v1442, %v1444
        %v1446 = vrot.slane %v1418, %v1445
        %v1447 = vcombine.high %v1425, %v1425
        %v1448 = vcombine.high %v1432, %v1432
        %v1449 = vcombine.high %v1439, %v1439
        %v1450 = vcombine.high %v1446, %v1446
        %v1459 = vadd.f32 %v1385, %v1425
        %v1460 = vadd.f32 %v1387, %v1439
        %v1461 = vadd.f32 %v1389, %v1447
        %v1462 = vadd.f32 %v1391, %v1449
        %v1463 = vadd.f32 %v1393, %v1432
        %v1464 = vadd.f32 %v1395, %v1446
        %v1465 = vadd.f32 %v1397, %v1448
        %v1466 = vadd.f32 %v1399, %v1450
        %s1467 = scalar_lea.vmem %s407, 4 [#allocation4]
        %1468 = vst.msk [vmem:[%s1467] ss:$8 sm:$0x3] %vm631, %v1459
        %1469 = vst.msk [vmem:[%s1467] ss:$8 sm:$0x0] %vm631, %v1459
        %s1470 = scalar_lea.vmem %s407, 36 [#allocation4]
        %1471 = vst.msk [vmem:[%s1470] ss:$8 sm:$0x3] %vm631, %v1460
        %1472 = vst.msk [vmem:[%s1470] ss:$8 sm:$0x0] %vm631, %v1460
        %s1473 = scalar_lea.vmem %s407, 68 [#allocation4]
        %1474 = vst.msk [vmem:[%s1473] ss:$8 sm:$0x3] %vm631, %v1461
        %1475 = vst.msk [vmem:[%s1473] ss:$8 sm:$0x0] %vm631, %v1461
        %s1476 = scalar_lea.vmem %s407, 100 [#allocation4]
        %1477 = vst.msk [vmem:[%s1476] ss:$8 sm:$0x3] %vm631, %v1462
        %1478 = vst.msk [vmem:[%s1476] ss:$8 sm:$0x0] %vm631, %v1462
        %s1479 = scalar_lea.vmem %s407, 132 [#allocation4]
        %1480 = vst.msk [vmem:[%s1479] ss:$8 sm:$0x3] %vm631, %v1463
        %1481 = vst.msk [vmem:[%s1479] ss:$8 sm:$0x0] %vm631, %v1463
        %s1482 = scalar_lea.vmem %s407, 164 [#allocation4]
        %1483 = vst.msk [vmem:[%s1482] ss:$8 sm:$0x3] %vm631, %v1464
        %1484 = vst.msk [vmem:[%s1482] ss:$8 sm:$0x0] %vm631, %v1464
        %s1485 = scalar_lea.vmem %s407, 196 [#allocation4]
        %1486 = vst.msk [vmem:[%s1485] ss:$8 sm:$0x3] %vm631, %v1465
        %1487 = vst.msk [vmem:[%s1485] ss:$8 sm:$0x0] %vm631, %v1465
        %s1488 = scalar_lea.vmem %s407, 228 [#allocation4]
        %1489 = vst.msk [vmem:[%s1488] ss:$8 sm:$0x3] %vm631, %v1466
        %1490 = vst.msk [vmem:[%s1488] ss:$8 sm:$0x0] %vm631, %v1466
        %v1491 = vld [vmem:[%s373 + $0x5] sm:$0x1]
        %v1492 = vld [vmem:[%s373 + $0x15] sm:$0x1]
        %v1493 = vld [vmem:[%s373 + $0x25] sm:$0x1]
        %v1494 = vld [vmem:[%s373 + $0x35] sm:$0x1]
        %v1495 = vlaneseq
        %v1496 = vshrl.u32 %v1495, 7
        %v1497 = vsub.s32 0, %v1496
        %v1498 = vrot.slane %v1491, %v1497
        %v1499 = vmul.f32 %v428, %v1498
        %v1500 = vadd.f32 %v1499, 0.0
        %v1501 = vlaneseq
        %v1502 = vshrl.u32 %v1501, 7
        %v1503 = vsub.s32 0, %v1502
        %v1504 = vrot.slane %v1492, %v1503
        %v1505 = vmul.f32 %v438, %v1504
        %v1506 = vadd.f32 %v1500, %v1505
        %v1507 = vlaneseq
        %v1508 = vshrl.u32 %v1507, 7
        %v1509 = vsub.s32 0, %v1508
        %v1510 = vrot.slane %v1493, %v1509
        %v1511 = vmul.f32 %v448, %v1510
        %v1512 = vadd.f32 %v1506, %v1511
        %v1513 = vlaneseq
        %v1514 = vshrl.u32 %v1513, 7
        %v1515 = vsub.s32 0, %v1514
        %v1516 = vrot.slane %v1494, %v1515
        %v1517 = vmul.f32 %v458, %v1516
        %v1518 = vadd.f32 %v1512, %v1517
        %v1519 = vadd.f32 %v1518, %v469
        %v1521 = vsel %vm472, %v1519, 0
        %1523 = vmatprep.subr.mxu0 0.0
        %1524 = vmatpush1.msra.mxu0 0.0
        %1525 = vmatprep.subr.mxu0 0.0
        %1526 = vmatpush1.msra.mxu0 0.0
        %1527 = vmatprep.subr.mxu0 0.0
        %1528 = vmatpush1.msra.mxu0 0.0
        %1529 = vmatprep.subr.mxu0 0.0
        %1530 = vmatpush1.msra.mxu0 0.0
        %1531 = vmatprep.subr.mxu0 0.0
        %1532 = vmatpush1.msra.mxu0 0.0
        %1533 = vmatprep.subr.mxu0 0.0
        %1534 = vmatpush1.msra.mxu0 0.0
        %1535 = vmatprep.subr.mxu0 0.0
        %1536 = vmatpush1.msra.mxu0 0.0
        %1537 = vmatprep.subr.mxu0 0.0
        %1538 = vmatpush1.msra.mxu0 0.0
        %1539 = vmatprep.subr.mxu0 0.0
        %1540 = vmatpush1.msra.mxu0 %v420
        %1541 = vmatprep.subr.mxu0 0.0
        %1542 = vmatpush1.msra.mxu0 %v419
        %1543 = vmatprep.subr.mxu0 0.0
        %1544 = vmatpush1.msra.mxu0 %v418
        %1545 = vmatprep.subr.mxu0 0.0
        %1546 = vmatpush1.msra.mxu0 %v417
        %1547 = vmatprep.subr.mxu0 0.0
        %1548 = vmatpush1.msra.mxu0 %v416
        %1549 = vmatprep.subr.mxu0 0.0
        %1550 = vmatpush1.msra.mxu0 %v415
        %1551 = vmatprep.subr.mxu0 0.0
        %1552 = vmatpush1.msra.mxu0 %v414
        %1553 = vmatprep.subr.mxu0 0.0
        %1554 = vmatpush1.msra.mxu0 %v413
        %1555 = vmatprep.subr.mxu0 0.0
        %1556 = vmatpush2.msra.mxu0 0.0
        %1557 = vmatprep.subr.mxu0 0.0
        %1558 = vmatpush2.msra.mxu0 0.0
        %1559 = vmatprep.subr.mxu0 0.0
        %1560 = vmatpush2.msra.mxu0 0.0
        %1561 = vmatprep.subr.mxu0 0.0
        %1562 = vmatpush2.msra.mxu0 0.0
        %1563 = vmatprep.subr.mxu0 0.0
        %1564 = vmatpush2.msra.mxu0 0.0
        %1565 = vmatprep.subr.mxu0 0.0
        %1566 = vmatpush2.msra.mxu0 0.0
        %1567 = vmatprep.subr.mxu0 0.0
        %1568 = vmatpush2.msra.mxu0 0.0
        %1569 = vmatprep.subr.mxu0 0.0
        %1570 = vmatpush2.msra.mxu0 0.0
        %1571 = vmatprep.subr.mxu0 0.0
        %1572 = vmatpush2.msra.mxu0 0.0
        %1573 = vmatprep.subr.mxu0 0.0
        %1574 = vmatpush2.msra.mxu0 0.0
        %1575 = vmatprep.subr.mxu0 0.0
        %1576 = vmatpush2.msra.mxu0 0.0
        %1577 = vmatprep.subr.mxu0 0.0
        %1578 = vmatpush2.msra.mxu0 0.0
        %1579 = vmatprep.subr.mxu0 0.0
        %1580 = vmatpush2.msra.mxu0 0.0
        %1581 = vmatprep.subr.mxu0 0.0
        %1582 = vmatpush2.msra.mxu0 0.0
        %1583 = vmatprep.subr.mxu0 0.0
        %1584 = vmatpush2.msra.mxu0 0.0
        %1585 = vmatprep.subr.mxu0 0.0
        %1586 = vmatpush2.msra.mxu0 0.0
        %1587 = vmatprep.mubr.f32.mxu0 0.0
        %1588 = vmatmul.mubr.f32.gmra.mxu0 %v1521
        %v1589 = vpop.f32.mrf.mxu0
        %v1590 = vadd.f32 0.0, %v1589
        %v1591 = vpop.f32.mrf.mxu0
        %1592 = vdwg.mxu0
        %s1593 = scalar_lea.vmem %s380, 5 [#allocation3]
        %v1594 = vld [vmem:[%s1593] ss:$8 sm:$0x3]
        %s1595 = scalar_lea.vmem %s380, 37 [#allocation3]
        %v1596 = vld [vmem:[%s1595] ss:$8 sm:$0x3]
        %s1597 = scalar_lea.vmem %s380, 69 [#allocation3]
        %v1598 = vld [vmem:[%s1597] ss:$8 sm:$0x3]
        %s1599 = scalar_lea.vmem %s380, 101 [#allocation3]
        %v1600 = vld [vmem:[%s1599] ss:$8 sm:$0x3]
        %s1601 = scalar_lea.vmem %s380, 133 [#allocation3]
        %v1602 = vld [vmem:[%s1601] ss:$8 sm:$0x3]
        %s1603 = scalar_lea.vmem %s380, 165 [#allocation3]
        %v1604 = vld [vmem:[%s1603] ss:$8 sm:$0x3]
        %s1605 = scalar_lea.vmem %s380, 197 [#allocation3]
        %v1606 = vld [vmem:[%s1605] ss:$8 sm:$0x3]
        %s1607 = scalar_lea.vmem %s380, 229 [#allocation3]
        %v1608 = vld [vmem:[%s1607] ss:$8 sm:$0x3]
        %v1610 = vcombine.low %v1590, %v1590
        %v1611 = vcombine.high %v1590, %v1590
        %v1613 = vunpack.c.l.s4 1966171168
        %v1614 = vunpack.c.0.s8 %v1613
        %v1615 = vlaneseq
        %v1616 = vshrl.u32 %v1615, 7
        %v1617 = vsub.s32 %v1614, %v1616
        %v1618 = vrot.slane %v1610, %v1617
        %v1620 = vunpack.c.l.s4 1966171168
        %v1621 = vunpack.c.0.s8 %v1620
        %v1622 = vlaneseq
        %v1623 = vshrl.u32 %v1622, 7
        %v1624 = vsub.s32 %v1621, %v1623
        %v1625 = vrot.slane %v1611, %v1624
        %v1626 = vcombine.high %v1618, %v1618
        %v1627 = vcombine.high %v1625, %v1625
        %v1629 = vunpack.c.l.s4 1966171168
        %v1630 = vunpack.c.0.s8 %v1629
        %v1631 = vlaneseq
        %v1632 = vshrl.u32 %v1631, 7
        %v1633 = vsub.s32 %v1630, %v1632
        %v1634 = vrot.slane %v1618, %v1633
        %v1636 = vunpack.c.l.s4 1966171168
        %v1637 = vunpack.c.0.s8 %v1636
        %v1638 = vlaneseq
        %v1639 = vshrl.u32 %v1638, 7
        %v1640 = vsub.s32 %v1637, %v1639
        %v1641 = vrot.slane %v1625, %v1640
        %v1643 = vunpack.c.l.s4 1966171168
        %v1644 = vunpack.c.0.s8 %v1643
        %v1645 = vlaneseq
        %v1646 = vshrl.u32 %v1645, 7
        %v1647 = vsub.s32 %v1644, %v1646
        %v1648 = vrot.slane %v1626, %v1647
        %v1650 = vunpack.c.l.s4 1966171168
        %v1651 = vunpack.c.0.s8 %v1650
        %v1652 = vlaneseq
        %v1653 = vshrl.u32 %v1652, 7
        %v1654 = vsub.s32 %v1651, %v1653
        %v1655 = vrot.slane %v1627, %v1654
        %v1656 = vcombine.high %v1634, %v1634
        %v1657 = vcombine.high %v1641, %v1641
        %v1658 = vcombine.high %v1648, %v1648
        %v1659 = vcombine.high %v1655, %v1655
        %v1668 = vadd.f32 %v1594, %v1634
        %v1669 = vadd.f32 %v1596, %v1648
        %v1670 = vadd.f32 %v1598, %v1656
        %v1671 = vadd.f32 %v1600, %v1658
        %v1672 = vadd.f32 %v1602, %v1641
        %v1673 = vadd.f32 %v1604, %v1655
        %v1674 = vadd.f32 %v1606, %v1657
        %v1675 = vadd.f32 %v1608, %v1659
        %s1676 = scalar_lea.vmem %s407, 5 [#allocation4]
        %1677 = vst.msk [vmem:[%s1676] ss:$8 sm:$0x3] %vm631, %v1668
        %1678 = vst.msk [vmem:[%s1676] ss:$8 sm:$0x0] %vm631, %v1668
        %s1679 = scalar_lea.vmem %s407, 37 [#allocation4]
        %1680 = vst.msk [vmem:[%s1679] ss:$8 sm:$0x3] %vm631, %v1669
        %1681 = vst.msk [vmem:[%s1679] ss:$8 sm:$0x0] %vm631, %v1669
        %s1682 = scalar_lea.vmem %s407, 69 [#allocation4]
        %1683 = vst.msk [vmem:[%s1682] ss:$8 sm:$0x3] %vm631, %v1670
        %1684 = vst.msk [vmem:[%s1682] ss:$8 sm:$0x0] %vm631, %v1670
        %s1685 = scalar_lea.vmem %s407, 101 [#allocation4]
        %1686 = vst.msk [vmem:[%s1685] ss:$8 sm:$0x3] %vm631, %v1671
        %1687 = vst.msk [vmem:[%s1685] ss:$8 sm:$0x0] %vm631, %v1671
        %s1688 = scalar_lea.vmem %s407, 133 [#allocation4]
        %1689 = vst.msk [vmem:[%s1688] ss:$8 sm:$0x3] %vm631, %v1672
        %1690 = vst.msk [vmem:[%s1688] ss:$8 sm:$0x0] %vm631, %v1672
        %s1691 = scalar_lea.vmem %s407, 165 [#allocation4]
        %1692 = vst.msk [vmem:[%s1691] ss:$8 sm:$0x3] %vm631, %v1673
        %1693 = vst.msk [vmem:[%s1691] ss:$8 sm:$0x0] %vm631, %v1673
        %s1694 = scalar_lea.vmem %s407, 197 [#allocation4]
        %1695 = vst.msk [vmem:[%s1694] ss:$8 sm:$0x3] %vm631, %v1674
        %1696 = vst.msk [vmem:[%s1694] ss:$8 sm:$0x0] %vm631, %v1674
        %s1697 = scalar_lea.vmem %s407, 229 [#allocation4]
        %1698 = vst.msk [vmem:[%s1697] ss:$8 sm:$0x3] %vm631, %v1675
        %1699 = vst.msk [vmem:[%s1697] ss:$8 sm:$0x0] %vm631, %v1675
        %v1700 = vld [vmem:[%s373 + $0x6] sm:$0x1]
        %v1701 = vld [vmem:[%s373 + $0x16] sm:$0x1]
        %v1702 = vld [vmem:[%s373 + $0x26] sm:$0x1]
        %v1703 = vld [vmem:[%s373 + $0x36] sm:$0x1]
        %v1704 = vlaneseq
        %v1705 = vshrl.u32 %v1704, 7
        %v1706 = vsub.s32 0, %v1705
        %v1707 = vrot.slane %v1700, %v1706
        %v1708 = vmul.f32 %v428, %v1707
        %v1709 = vadd.f32 %v1708, 0.0
        %v1710 = vlaneseq
        %v1711 = vshrl.u32 %v1710, 7
        %v1712 = vsub.s32 0, %v1711
        %v1713 = vrot.slane %v1701, %v1712
        %v1714 = vmul.f32 %v438, %v1713
        %v1715 = vadd.f32 %v1709, %v1714
        %v1716 = vlaneseq
        %v1717 = vshrl.u32 %v1716, 7
        %v1718 = vsub.s32 0, %v1717
        %v1719 = vrot.slane %v1702, %v1718
        %v1720 = vmul.f32 %v448, %v1719
        %v1721 = vadd.f32 %v1715, %v1720
        %v1722 = vlaneseq
        %v1723 = vshrl.u32 %v1722, 7
        %v1724 = vsub.s32 0, %v1723
        %v1725 = vrot.slane %v1703, %v1724
        %v1726 = vmul.f32 %v458, %v1725
        %v1727 = vadd.f32 %v1721, %v1726
        %v1728 = vadd.f32 %v1727, %v469
        %v1730 = vsel %vm472, %v1728, 0
        %1732 = vmatprep.subr.mxu0 0.0
        %1733 = vmatpush1.msra.mxu0 0.0
        %1734 = vmatprep.subr.mxu0 0.0
        %1735 = vmatpush1.msra.mxu0 0.0
        %1736 = vmatprep.subr.mxu0 0.0
        %1737 = vmatpush1.msra.mxu0 0.0
        %1738 = vmatprep.subr.mxu0 0.0
        %1739 = vmatpush1.msra.mxu0 0.0
        %1740 = vmatprep.subr.mxu0 0.0
        %1741 = vmatpush1.msra.mxu0 0.0
        %1742 = vmatprep.subr.mxu0 0.0
        %1743 = vmatpush1.msra.mxu0 0.0
        %1744 = vmatprep.subr.mxu0 0.0
        %1745 = vmatpush1.msra.mxu0 0.0
        %1746 = vmatprep.subr.mxu0 0.0
        %1747 = vmatpush1.msra.mxu0 0.0
        %1748 = vmatprep.subr.mxu0 0.0
        %1749 = vmatpush1.msra.mxu0 %v420
        %1750 = vmatprep.subr.mxu0 0.0
        %1751 = vmatpush1.msra.mxu0 %v419
        %1752 = vmatprep.subr.mxu0 0.0
        %1753 = vmatpush1.msra.mxu0 %v418
        %1754 = vmatprep.subr.mxu0 0.0
        %1755 = vmatpush1.msra.mxu0 %v417
        %1756 = vmatprep.subr.mxu0 0.0
        %1757 = vmatpush1.msra.mxu0 %v416
        %1758 = vmatprep.subr.mxu0 0.0
        %1759 = vmatpush1.msra.mxu0 %v415
        %1760 = vmatprep.subr.mxu0 0.0
        %1761 = vmatpush1.msra.mxu0 %v414
        %1762 = vmatprep.subr.mxu0 0.0
        %1763 = vmatpush1.msra.mxu0 %v413
        %1764 = vmatprep.subr.mxu0 0.0
        %1765 = vmatpush2.msra.mxu0 0.0
        %1766 = vmatprep.subr.mxu0 0.0
        %1767 = vmatpush2.msra.mxu0 0.0
        %1768 = vmatprep.subr.mxu0 0.0
        %1769 = vmatpush2.msra.mxu0 0.0
        %1770 = vmatprep.subr.mxu0 0.0
        %1771 = vmatpush2.msra.mxu0 0.0
        %1772 = vmatprep.subr.mxu0 0.0
        %1773 = vmatpush2.msra.mxu0 0.0
        %1774 = vmatprep.subr.mxu0 0.0
        %1775 = vmatpush2.msra.mxu0 0.0
        %1776 = vmatprep.subr.mxu0 0.0
        %1777 = vmatpush2.msra.mxu0 0.0
        %1778 = vmatprep.subr.mxu0 0.0
        %1779 = vmatpush2.msra.mxu0 0.0
        %1780 = vmatprep.subr.mxu0 0.0
        %1781 = vmatpush2.msra.mxu0 0.0
        %1782 = vmatprep.subr.mxu0 0.0
        %1783 = vmatpush2.msra.mxu0 0.0
        %1784 = vmatprep.subr.mxu0 0.0
        %1785 = vmatpush2.msra.mxu0 0.0
        %1786 = vmatprep.subr.mxu0 0.0
        %1787 = vmatpush2.msra.mxu0 0.0
        %1788 = vmatprep.subr.mxu0 0.0
        %1789 = vmatpush2.msra.mxu0 0.0
        %1790 = vmatprep.subr.mxu0 0.0
        %1791 = vmatpush2.msra.mxu0 0.0
        %1792 = vmatprep.subr.mxu0 0.0
        %1793 = vmatpush2.msra.mxu0 0.0
        %1794 = vmatprep.subr.mxu0 0.0
        %1795 = vmatpush2.msra.mxu0 0.0
        %1796 = vmatprep.mubr.f32.mxu0 0.0
        %1797 = vmatmul.mubr.f32.gmra.mxu0 %v1730
        %v1798 = vpop.f32.mrf.mxu0
        %v1799 = vadd.f32 0.0, %v1798
        %v1800 = vpop.f32.mrf.mxu0
        %1801 = vdwg.mxu0
        %s1802 = scalar_lea.vmem %s380, 6 [#allocation3]
        %v1803 = vld [vmem:[%s1802] ss:$8 sm:$0x3]
        %s1804 = scalar_lea.vmem %s380, 38 [#allocation3]
        %v1805 = vld [vmem:[%s1804] ss:$8 sm:$0x3]
        %s1806 = scalar_lea.vmem %s380, 70 [#allocation3]
        %v1807 = vld [vmem:[%s1806] ss:$8 sm:$0x3]
        %s1808 = scalar_lea.vmem %s380, 102 [#allocation3]
        %v1809 = vld [vmem:[%s1808] ss:$8 sm:$0x3]
        %s1810 = scalar_lea.vmem %s380, 134 [#allocation3]
        %v1811 = vld [vmem:[%s1810] ss:$8 sm:$0x3]
        %s1812 = scalar_lea.vmem %s380, 166 [#allocation3]
        %v1813 = vld [vmem:[%s1812] ss:$8 sm:$0x3]
        %s1814 = scalar_lea.vmem %s380, 198 [#allocation3]
        %v1815 = vld [vmem:[%s1814] ss:$8 sm:$0x3]
        %s1816 = scalar_lea.vmem %s380, 230 [#allocation3]
        %v1817 = vld [vmem:[%s1816] ss:$8 sm:$0x3]
        %v1819 = vcombine.low %v1799, %v1799
        %v1820 = vcombine.high %v1799, %v1799
        %v1822 = vunpack.c.l.s4 1966171168
        %v1823 = vunpack.c.0.s8 %v1822
        %v1824 = vlaneseq
        %v1825 = vshrl.u32 %v1824, 7
        %v1826 = vsub.s32 %v1823, %v1825
        %v1827 = vrot.slane %v1819, %v1826
        %v1829 = vunpack.c.l.s4 1966171168
        %v1830 = vunpack.c.0.s8 %v1829
        %v1831 = vlaneseq
        %v1832 = vshrl.u32 %v1831, 7
        %v1833 = vsub.s32 %v1830, %v1832
        %v1834 = vrot.slane %v1820, %v1833
        %v1835 = vcombine.high %v1827, %v1827
        %v1836 = vcombine.high %v1834, %v1834
        %v1838 = vunpack.c.l.s4 1966171168
        %v1839 = vunpack.c.0.s8 %v1838
        %v1840 = vlaneseq
        %v1841 = vshrl.u32 %v1840, 7
        %v1842 = vsub.s32 %v1839, %v1841
        %v1843 = vrot.slane %v1827, %v1842
        %v1845 = vunpack.c.l.s4 1966171168
        %v1846 = vunpack.c.0.s8 %v1845
        %v1847 = vlaneseq
        %v1848 = vshrl.u32 %v1847, 7
        %v1849 = vsub.s32 %v1846, %v1848
        %v1850 = vrot.slane %v1834, %v1849
        %v1852 = vunpack.c.l.s4 1966171168
        %v1853 = vunpack.c.0.s8 %v1852
        %v1854 = vlaneseq
        %v1855 = vshrl.u32 %v1854, 7
        %v1856 = vsub.s32 %v1853, %v1855
        %v1857 = vrot.slane %v1835, %v1856
        %v1859 = vunpack.c.l.s4 1966171168
        %v1860 = vunpack.c.0.s8 %v1859
        %v1861 = vlaneseq
        %v1862 = vshrl.u32 %v1861, 7
        %v1863 = vsub.s32 %v1860, %v1862
        %v1864 = vrot.slane %v1836, %v1863
        %v1865 = vcombine.high %v1843, %v1843
        %v1866 = vcombine.high %v1850, %v1850
        %v1867 = vcombine.high %v1857, %v1857
        %v1868 = vcombine.high %v1864, %v1864
        %v1877 = vadd.f32 %v1803, %v1843
        %v1878 = vadd.f32 %v1805, %v1857
        %v1879 = vadd.f32 %v1807, %v1865
        %v1880 = vadd.f32 %v1809, %v1867
        %v1881 = vadd.f32 %v1811, %v1850
        %v1882 = vadd.f32 %v1813, %v1864
        %v1883 = vadd.f32 %v1815, %v1866
        %v1884 = vadd.f32 %v1817, %v1868
        %s1885 = scalar_lea.vmem %s407, 6 [#allocation4]
        %1886 = vst.msk [vmem:[%s1885] ss:$8 sm:$0x3] %vm631, %v1877
        %1887 = vst.msk [vmem:[%s1885] ss:$8 sm:$0x0] %vm631, %v1877
        %s1888 = scalar_lea.vmem %s407, 38 [#allocation4]
        %1889 = vst.msk [vmem:[%s1888] ss:$8 sm:$0x3] %vm631, %v1878
        %1890 = vst.msk [vmem:[%s1888] ss:$8 sm:$0x0] %vm631, %v1878
        %s1891 = scalar_lea.vmem %s407, 70 [#allocation4]
        %1892 = vst.msk [vmem:[%s1891] ss:$8 sm:$0x3] %vm631, %v1879
        %1893 = vst.msk [vmem:[%s1891] ss:$8 sm:$0x0] %vm631, %v1879
        %s1894 = scalar_lea.vmem %s407, 102 [#allocation4]
        %1895 = vst.msk [vmem:[%s1894] ss:$8 sm:$0x3] %vm631, %v1880
        %1896 = vst.msk [vmem:[%s1894] ss:$8 sm:$0x0] %vm631, %v1880
        %s1897 = scalar_lea.vmem %s407, 134 [#allocation4]
        %1898 = vst.msk [vmem:[%s1897] ss:$8 sm:$0x3] %vm631, %v1881
        %1899 = vst.msk [vmem:[%s1897] ss:$8 sm:$0x0] %vm631, %v1881
        %s1900 = scalar_lea.vmem %s407, 166 [#allocation4]
        %1901 = vst.msk [vmem:[%s1900] ss:$8 sm:$0x3] %vm631, %v1882
        %1902 = vst.msk [vmem:[%s1900] ss:$8 sm:$0x0] %vm631, %v1882
        %s1903 = scalar_lea.vmem %s407, 198 [#allocation4]
        %1904 = vst.msk [vmem:[%s1903] ss:$8 sm:$0x3] %vm631, %v1883
        %1905 = vst.msk [vmem:[%s1903] ss:$8 sm:$0x0] %vm631, %v1883
        %s1906 = scalar_lea.vmem %s407, 230 [#allocation4]
        %1907 = vst.msk [vmem:[%s1906] ss:$8 sm:$0x3] %vm631, %v1884
        %1908 = vst.msk [vmem:[%s1906] ss:$8 sm:$0x0] %vm631, %v1884
        %v1909 = vld [vmem:[%s373 + $0x7] sm:$0x1]
        %v1910 = vld [vmem:[%s373 + $0x17] sm:$0x1]
        %v1911 = vld [vmem:[%s373 + $0x27] sm:$0x1]
        %v1912 = vld [vmem:[%s373 + $0x37] sm:$0x1]
        %v1913 = vlaneseq
        %v1914 = vshrl.u32 %v1913, 7
        %v1915 = vsub.s32 0, %v1914
        %v1916 = vrot.slane %v1909, %v1915
        %v1917 = vmul.f32 %v428, %v1916
        %v1918 = vadd.f32 %v1917, 0.0
        %v1919 = vlaneseq
        %v1920 = vshrl.u32 %v1919, 7
        %v1921 = vsub.s32 0, %v1920
        %v1922 = vrot.slane %v1910, %v1921
        %v1923 = vmul.f32 %v438, %v1922
        %v1924 = vadd.f32 %v1918, %v1923
        %v1925 = vlaneseq
        %v1926 = vshrl.u32 %v1925, 7
        %v1927 = vsub.s32 0, %v1926
        %v1928 = vrot.slane %v1911, %v1927
        %v1929 = vmul.f32 %v448, %v1928
        %v1930 = vadd.f32 %v1924, %v1929
        %v1931 = vlaneseq
        %v1932 = vshrl.u32 %v1931, 7
        %v1933 = vsub.s32 0, %v1932
        %v1934 = vrot.slane %v1912, %v1933
        %v1935 = vmul.f32 %v458, %v1934
        %v1936 = vadd.f32 %v1930, %v1935
        %v1937 = vadd.f32 %v1936, %v469
        %v1939 = vsel %vm472, %v1937, 0
        %1941 = vmatprep.subr.mxu0 0.0
        %1942 = vmatpush1.msra.mxu0 0.0
        %1943 = vmatprep.subr.mxu0 0.0
        %1944 = vmatpush1.msra.mxu0 0.0
        %1945 = vmatprep.subr.mxu0 0.0
        %1946 = vmatpush1.msra.mxu0 0.0
        %1947 = vmatprep.subr.mxu0 0.0
        %1948 = vmatpush1.msra.mxu0 0.0
        %1949 = vmatprep.subr.mxu0 0.0
        %1950 = vmatpush1.msra.mxu0 0.0
        %1951 = vmatprep.subr.mxu0 0.0
        %1952 = vmatpush1.msra.mxu0 0.0
        %1953 = vmatprep.subr.mxu0 0.0
        %1954 = vmatpush1.msra.mxu0 0.0
        %1955 = vmatprep.subr.mxu0 0.0
        %1956 = vmatpush1.msra.mxu0 0.0
        %1957 = vmatprep.subr.mxu0 0.0
        %1958 = vmatpush1.msra.mxu0 %v420
        %1959 = vmatprep.subr.mxu0 0.0
        %1960 = vmatpush1.msra.mxu0 %v419
        %1961 = vmatprep.subr.mxu0 0.0
        %1962 = vmatpush1.msra.mxu0 %v418
        %1963 = vmatprep.subr.mxu0 0.0
        %1964 = vmatpush1.msra.mxu0 %v417
        %1965 = vmatprep.subr.mxu0 0.0
        %1966 = vmatpush1.msra.mxu0 %v416
        %1967 = vmatprep.subr.mxu0 0.0
        %1968 = vmatpush1.msra.mxu0 %v415
        %1969 = vmatprep.subr.mxu0 0.0
        %1970 = vmatpush1.msra.mxu0 %v414
        %1971 = vmatprep.subr.mxu0 0.0
        %1972 = vmatpush1.msra.mxu0 %v413
        %1973 = vmatprep.subr.mxu0 0.0
        %1974 = vmatpush2.msra.mxu0 0.0
        %1975 = vmatprep.subr.mxu0 0.0
        %1976 = vmatpush2.msra.mxu0 0.0
        %1977 = vmatprep.subr.mxu0 0.0
        %1978 = vmatpush2.msra.mxu0 0.0
        %1979 = vmatprep.subr.mxu0 0.0
        %1980 = vmatpush2.msra.mxu0 0.0
        %1981 = vmatprep.subr.mxu0 0.0
        %1982 = vmatpush2.msra.mxu0 0.0
        %1983 = vmatprep.subr.mxu0 0.0
        %1984 = vmatpush2.msra.mxu0 0.0
        %1985 = vmatprep.subr.mxu0 0.0
        %1986 = vmatpush2.msra.mxu0 0.0
        %1987 = vmatprep.subr.mxu0 0.0
        %1988 = vmatpush2.msra.mxu0 0.0
        %1989 = vmatprep.subr.mxu0 0.0
        %1990 = vmatpush2.msra.mxu0 0.0
        %1991 = vmatprep.subr.mxu0 0.0
        %1992 = vmatpush2.msra.mxu0 0.0
        %1993 = vmatprep.subr.mxu0 0.0
        %1994 = vmatpush2.msra.mxu0 0.0
        %1995 = vmatprep.subr.mxu0 0.0
        %1996 = vmatpush2.msra.mxu0 0.0
        %1997 = vmatprep.subr.mxu0 0.0
        %1998 = vmatpush2.msra.mxu0 0.0
        %1999 = vmatprep.subr.mxu0 0.0
        %2000 = vmatpush2.msra.mxu0 0.0
        %2001 = vmatprep.subr.mxu0 0.0
        %2002 = vmatpush2.msra.mxu0 0.0
        %2003 = vmatprep.subr.mxu0 0.0
        %2004 = vmatpush2.msra.mxu0 0.0
        %2005 = vmatprep.mubr.f32.mxu0 0.0
        %2006 = vmatmul.mubr.f32.gmra.mxu0 %v1939
        %v2007 = vpop.f32.mrf.mxu0
        %v2008 = vadd.f32 0.0, %v2007
        %v2009 = vpop.f32.mrf.mxu0
        %2010 = vdwg.mxu0
        %s2011 = scalar_lea.vmem %s380, 7 [#allocation3]
        %v2012 = vld [vmem:[%s2011] ss:$8 sm:$0x3]
        %s2013 = scalar_lea.vmem %s380, 39 [#allocation3]
        %v2014 = vld [vmem:[%s2013] ss:$8 sm:$0x3]
        %s2015 = scalar_lea.vmem %s380, 71 [#allocation3]
        %v2016 = vld [vmem:[%s2015] ss:$8 sm:$0x3]
        %s2017 = scalar_lea.vmem %s380, 103 [#allocation3]
        %v2018 = vld [vmem:[%s2017] ss:$8 sm:$0x3]
        %s2019 = scalar_lea.vmem %s380, 135 [#allocation3]
        %v2020 = vld [vmem:[%s2019] ss:$8 sm:$0x3]
        %s2021 = scalar_lea.vmem %s380, 167 [#allocation3]
        %v2022 = vld [vmem:[%s2021] ss:$8 sm:$0x3]
        %s2023 = scalar_lea.vmem %s380, 199 [#allocation3]
        %v2024 = vld [vmem:[%s2023] ss:$8 sm:$0x3]
        %s2025 = scalar_lea.vmem %s380, 231 [#allocation3]
        %v2026 = vld [vmem:[%s2025] ss:$8 sm:$0x3]
        %v2028 = vcombine.low %v2008, %v2008
        %v2029 = vcombine.high %v2008, %v2008
        %v2031 = vunpack.c.l.s4 1966171168
        %v2032 = vunpack.c.0.s8 %v2031
        %v2033 = vlaneseq
        %v2034 = vshrl.u32 %v2033, 7
        %v2035 = vsub.s32 %v2032, %v2034
        %v2036 = vrot.slane %v2028, %v2035
        %v2038 = vunpack.c.l.s4 1966171168
        %v2039 = vunpack.c.0.s8 %v2038
        %v2040 = vlaneseq
        %v2041 = vshrl.u32 %v2040, 7
        %v2042 = vsub.s32 %v2039, %v2041
        %v2043 = vrot.slane %v2029, %v2042
        %v2044 = vcombine.high %v2036, %v2036
        %v2045 = vcombine.high %v2043, %v2043
        %v2047 = vunpack.c.l.s4 1966171168
        %v2048 = vunpack.c.0.s8 %v2047
        %v2049 = vlaneseq
        %v2050 = vshrl.u32 %v2049, 7
        %v2051 = vsub.s32 %v2048, %v2050
        %v2052 = vrot.slane %v2036, %v2051
        %v2054 = vunpack.c.l.s4 1966171168
        %v2055 = vunpack.c.0.s8 %v2054
        %v2056 = vlaneseq
        %v2057 = vshrl.u32 %v2056, 7
        %v2058 = vsub.s32 %v2055, %v2057
        %v2059 = vrot.slane %v2043, %v2058
        %v2061 = vunpack.c.l.s4 1966171168
        %v2062 = vunpack.c.0.s8 %v2061
        %v2063 = vlaneseq
        %v2064 = vshrl.u32 %v2063, 7
        %v2065 = vsub.s32 %v2062, %v2064
        %v2066 = vrot.slane %v2044, %v2065
        %v2068 = vunpack.c.l.s4 1966171168
        %v2069 = vunpack.c.0.s8 %v2068
        %v2070 = vlaneseq
        %v2071 = vshrl.u32 %v2070, 7
        %v2072 = vsub.s32 %v2069, %v2071
        %v2073 = vrot.slane %v2045, %v2072
        %v2074 = vcombine.high %v2052, %v2052
        %v2075 = vcombine.high %v2059, %v2059
        %v2076 = vcombine.high %v2066, %v2066
        %v2077 = vcombine.high %v2073, %v2073
        %v2086 = vadd.f32 %v2012, %v2052
        %v2087 = vadd.f32 %v2014, %v2066
        %v2088 = vadd.f32 %v2016, %v2074
        %v2089 = vadd.f32 %v2018, %v2076
        %v2090 = vadd.f32 %v2020, %v2059
        %v2091 = vadd.f32 %v2022, %v2073
        %v2092 = vadd.f32 %v2024, %v2075
        %v2093 = vadd.f32 %v2026, %v2077
        %s2094 = scalar_lea.vmem %s407, 7 [#allocation4]
        %2095 = vst.msk [vmem:[%s2094] ss:$8 sm:$0x3] %vm631, %v2086
        %2096 = vst.msk [vmem:[%s2094] ss:$8 sm:$0x0] %vm631, %v2086
        %s2097 = scalar_lea.vmem %s407, 39 [#allocation4]
        %2098 = vst.msk [vmem:[%s2097] ss:$8 sm:$0x3] %vm631, %v2087
        %2099 = vst.msk [vmem:[%s2097] ss:$8 sm:$0x0] %vm631, %v2087
        %s2100 = scalar_lea.vmem %s407, 71 [#allocation4]
        %2101 = vst.msk [vmem:[%s2100] ss:$8 sm:$0x3] %vm631, %v2088
        %2102 = vst.msk [vmem:[%s2100] ss:$8 sm:$0x0] %vm631, %v2088
        %s2103 = scalar_lea.vmem %s407, 103 [#allocation4]
        %2104 = vst.msk [vmem:[%s2103] ss:$8 sm:$0x3] %vm631, %v2089
        %2105 = vst.msk [vmem:[%s2103] ss:$8 sm:$0x0] %vm631, %v2089
        %s2106 = scalar_lea.vmem %s407, 135 [#allocation4]
        %2107 = vst.msk [vmem:[%s2106] ss:$8 sm:$0x3] %vm631, %v2090
        %2108 = vst.msk [vmem:[%s2106] ss:$8 sm:$0x0] %vm631, %v2090
        %s2109 = scalar_lea.vmem %s407, 167 [#allocation4]
        %2110 = vst.msk [vmem:[%s2109] ss:$8 sm:$0x3] %vm631, %v2091
        %2111 = vst.msk [vmem:[%s2109] ss:$8 sm:$0x0] %vm631, %v2091
        %s2112 = scalar_lea.vmem %s407, 199 [#allocation4]
        %2113 = vst.msk [vmem:[%s2112] ss:$8 sm:$0x3] %vm631, %v2092
        %2114 = vst.msk [vmem:[%s2112] ss:$8 sm:$0x0] %vm631, %v2092
        %s2115 = scalar_lea.vmem %s407, 231 [#allocation4]
        %2116 = vst.msk [vmem:[%s2115] ss:$8 sm:$0x3] %vm631, %v2093
        %2117 = vst.msk [vmem:[%s2115] ss:$8 sm:$0x0] %vm631, %v2093
        %v2118 = vld [vmem:[%s373 + $0x8] sm:$0x1]
        %v2119 = vld [vmem:[%s373 + $0x18] sm:$0x1]
        %v2120 = vld [vmem:[%s373 + $0x28] sm:$0x1]
        %v2121 = vld [vmem:[%s373 + $0x38] sm:$0x1]
        %v2122 = vlaneseq
        %v2123 = vshrl.u32 %v2122, 7
        %v2124 = vsub.s32 0, %v2123
        %v2125 = vrot.slane %v2118, %v2124
        %v2126 = vmul.f32 %v428, %v2125
        %v2127 = vadd.f32 %v2126, 0.0
        %v2128 = vlaneseq
        %v2129 = vshrl.u32 %v2128, 7
        %v2130 = vsub.s32 0, %v2129
        %v2131 = vrot.slane %v2119, %v2130
        %v2132 = vmul.f32 %v438, %v2131
        %v2133 = vadd.f32 %v2127, %v2132
        %v2134 = vlaneseq
        %v2135 = vshrl.u32 %v2134, 7
        %v2136 = vsub.s32 0, %v2135
        %v2137 = vrot.slane %v2120, %v2136
        %v2138 = vmul.f32 %v448, %v2137
        %v2139 = vadd.f32 %v2133, %v2138
        %v2140 = vlaneseq
        %v2141 = vshrl.u32 %v2140, 7
        %v2142 = vsub.s32 0, %v2141
        %v2143 = vrot.slane %v2121, %v2142
        %v2144 = vmul.f32 %v458, %v2143
        %v2145 = vadd.f32 %v2139, %v2144
        %v2146 = vadd.f32 %v2145, %v469
        %v2148 = vsel %vm472, %v2146, 0
        %2150 = vmatprep.subr.mxu0 0.0
        %2151 = vmatpush1.msra.mxu0 0.0
        %2152 = vmatprep.subr.mxu0 0.0
        %2153 = vmatpush1.msra.mxu0 0.0
        %2154 = vmatprep.subr.mxu0 0.0
        %2155 = vmatpush1.msra.mxu0 0.0
        %2156 = vmatprep.subr.mxu0 0.0
        %2157 = vmatpush1.msra.mxu0 0.0
        %2158 = vmatprep.subr.mxu0 0.0
        %2159 = vmatpush1.msra.mxu0 0.0
        %2160 = vmatprep.subr.mxu0 0.0
        %2161 = vmatpush1.msra.mxu0 0.0
        %2162 = vmatprep.subr.mxu0 0.0
        %2163 = vmatpush1.msra.mxu0 0.0
        %2164 = vmatprep.subr.mxu0 0.0
        %2165 = vmatpush1.msra.mxu0 0.0
        %2166 = vmatprep.subr.mxu0 0.0
        %2167 = vmatpush1.msra.mxu0 %v420
        %2168 = vmatprep.subr.mxu0 0.0
        %2169 = vmatpush1.msra.mxu0 %v419
        %2170 = vmatprep.subr.mxu0 0.0
        %2171 = vmatpush1.msra.mxu0 %v418
        %2172 = vmatprep.subr.mxu0 0.0
        %2173 = vmatpush1.msra.mxu0 %v417
        %2174 = vmatprep.subr.mxu0 0.0
        %2175 = vmatpush1.msra.mxu0 %v416
        %2176 = vmatprep.subr.mxu0 0.0
        %2177 = vmatpush1.msra.mxu0 %v415
        %2178 = vmatprep.subr.mxu0 0.0
        %2179 = vmatpush1.msra.mxu0 %v414
        %2180 = vmatprep.subr.mxu0 0.0
        %2181 = vmatpush1.msra.mxu0 %v413
        %2182 = vmatprep.subr.mxu0 0.0
        %2183 = vmatpush2.msra.mxu0 0.0
        %2184 = vmatprep.subr.mxu0 0.0
        %2185 = vmatpush2.msra.mxu0 0.0
        %2186 = vmatprep.subr.mxu0 0.0
        %2187 = vmatpush2.msra.mxu0 0.0
        %2188 = vmatprep.subr.mxu0 0.0
        %2189 = vmatpush2.msra.mxu0 0.0
        %2190 = vmatprep.subr.mxu0 0.0
        %2191 = vmatpush2.msra.mxu0 0.0
        %2192 = vmatprep.subr.mxu0 0.0
        %2193 = vmatpush2.msra.mxu0 0.0
        %2194 = vmatprep.subr.mxu0 0.0
        %2195 = vmatpush2.msra.mxu0 0.0
        %2196 = vmatprep.subr.mxu0 0.0
        %2197 = vmatpush2.msra.mxu0 0.0
        %2198 = vmatprep.subr.mxu0 0.0
        %2199 = vmatpush2.msra.mxu0 0.0
        %2200 = vmatprep.subr.mxu0 0.0
        %2201 = vmatpush2.msra.mxu0 0.0
        %2202 = vmatprep.subr.mxu0 0.0
        %2203 = vmatpush2.msra.mxu0 0.0
        %2204 = vmatprep.subr.mxu0 0.0
        %2205 = vmatpush2.msra.mxu0 0.0
        %2206 = vmatprep.subr.mxu0 0.0
        %2207 = vmatpush2.msra.mxu0 0.0
        %2208 = vmatprep.subr.mxu0 0.0
        %2209 = vmatpush2.msra.mxu0 0.0
        %2210 = vmatprep.subr.mxu0 0.0
        %2211 = vmatpush2.msra.mxu0 0.0
        %2212 = vmatprep.subr.mxu0 0.0
        %2213 = vmatpush2.msra.mxu0 0.0
        %2214 = vmatprep.mubr.f32.mxu0 0.0
        %2215 = vmatmul.mubr.f32.gmra.mxu0 %v2148
        %v2216 = vpop.f32.mrf.mxu0
        %v2217 = vadd.f32 0.0, %v2216
        %v2218 = vpop.f32.mrf.mxu0
        %2219 = vdwg.mxu0
        %s2220 = scalar_lea.vmem %s380, 16 [#allocation3]
        %v2221 = vld [vmem:[%s2220] ss:$8 sm:$0x3]
        %s2222 = scalar_lea.vmem %s380, 48 [#allocation3]
        %v2223 = vld [vmem:[%s2222] ss:$8 sm:$0x3]
        %s2224 = scalar_lea.vmem %s380, 80 [#allocation3]
        %v2225 = vld [vmem:[%s2224] ss:$8 sm:$0x3]
        %s2226 = scalar_lea.vmem %s380, 112 [#allocation3]
        %v2227 = vld [vmem:[%s2226] ss:$8 sm:$0x3]
        %s2228 = scalar_lea.vmem %s380, 144 [#allocation3]
        %v2229 = vld [vmem:[%s2228] ss:$8 sm:$0x3]
        %s2230 = scalar_lea.vmem %s380, 176 [#allocation3]
        %v2231 = vld [vmem:[%s2230] ss:$8 sm:$0x3]
        %s2232 = scalar_lea.vmem %s380, 208 [#allocation3]
        %v2233 = vld [vmem:[%s2232] ss:$8 sm:$0x3]
        %s2234 = scalar_lea.vmem %s380, 240 [#allocation3]
        %v2235 = vld [vmem:[%s2234] ss:$8 sm:$0x3]
        %v2237 = vcombine.low %v2217, %v2217
        %v2238 = vcombine.high %v2217, %v2217
        %v2240 = vunpack.c.l.s4 1966171168
        %v2241 = vunpack.c.0.s8 %v2240
        %v2242 = vlaneseq
        %v2243 = vshrl.u32 %v2242, 7
        %v2244 = vsub.s32 %v2241, %v2243
        %v2245 = vrot.slane %v2237, %v2244
        %v2247 = vunpack.c.l.s4 1966171168
        %v2248 = vunpack.c.0.s8 %v2247
        %v2249 = vlaneseq
        %v2250 = vshrl.u32 %v2249, 7
        %v2251 = vsub.s32 %v2248, %v2250
        %v2252 = vrot.slane %v2238, %v2251
        %v2253 = vcombine.high %v2245, %v2245
        %v2254 = vcombine.high %v2252, %v2252
        %v2256 = vunpack.c.l.s4 1966171168
        %v2257 = vunpack.c.0.s8 %v2256
        %v2258 = vlaneseq
        %v2259 = vshrl.u32 %v2258, 7
        %v2260 = vsub.s32 %v2257, %v2259
        %v2261 = vrot.slane %v2245, %v2260
        %v2263 = vunpack.c.l.s4 1966171168
        %v2264 = vunpack.c.0.s8 %v2263
        %v2265 = vlaneseq
        %v2266 = vshrl.u32 %v2265, 7
        %v2267 = vsub.s32 %v2264, %v2266
        %v2268 = vrot.slane %v2252, %v2267
        %v2270 = vunpack.c.l.s4 1966171168
        %v2271 = vunpack.c.0.s8 %v2270
        %v2272 = vlaneseq
        %v2273 = vshrl.u32 %v2272, 7
        %v2274 = vsub.s32 %v2271, %v2273
        %v2275 = vrot.slane %v2253, %v2274
        %v2277 = vunpack.c.l.s4 1966171168
        %v2278 = vunpack.c.0.s8 %v2277
        %v2279 = vlaneseq
        %v2280 = vshrl.u32 %v2279, 7
        %v2281 = vsub.s32 %v2278, %v2280
        %v2282 = vrot.slane %v2254, %v2281
        %v2283 = vcombine.high %v2261, %v2261
        %v2284 = vcombine.high %v2268, %v2268
        %v2285 = vcombine.high %v2275, %v2275
        %v2286 = vcombine.high %v2282, %v2282
        %v2295 = vadd.f32 %v2221, %v2261
        %v2296 = vadd.f32 %v2223, %v2275
        %v2297 = vadd.f32 %v2225, %v2283
        %v2298 = vadd.f32 %v2227, %v2285
        %v2299 = vadd.f32 %v2229, %v2268
        %v2300 = vadd.f32 %v2231, %v2282
        %v2301 = vadd.f32 %v2233, %v2284
        %v2302 = vadd.f32 %v2235, %v2286
        %s2303 = scalar_lea.vmem %s407, 16 [#allocation4]
        %2304 = vst.msk [vmem:[%s2303] ss:$8 sm:$0x3] %vm631, %v2295
        %2305 = vst.msk [vmem:[%s2303] ss:$8 sm:$0x0] %vm631, %v2295
        %s2306 = scalar_lea.vmem %s407, 48 [#allocation4]
        %2307 = vst.msk [vmem:[%s2306] ss:$8 sm:$0x3] %vm631, %v2296
        %2308 = vst.msk [vmem:[%s2306] ss:$8 sm:$0x0] %vm631, %v2296
        %s2309 = scalar_lea.vmem %s407, 80 [#allocation4]
        %2310 = vst.msk [vmem:[%s2309] ss:$8 sm:$0x3] %vm631, %v2297
        %2311 = vst.msk [vmem:[%s2309] ss:$8 sm:$0x0] %vm631, %v2297
        %s2312 = scalar_lea.vmem %s407, 112 [#allocation4]
        %2313 = vst.msk [vmem:[%s2312] ss:$8 sm:$0x3] %vm631, %v2298
        %2314 = vst.msk [vmem:[%s2312] ss:$8 sm:$0x0] %vm631, %v2298
        %s2315 = scalar_lea.vmem %s407, 144 [#allocation4]
        %2316 = vst.msk [vmem:[%s2315] ss:$8 sm:$0x3] %vm631, %v2299
        %2317 = vst.msk [vmem:[%s2315] ss:$8 sm:$0x0] %vm631, %v2299
        %s2318 = scalar_lea.vmem %s407, 176 [#allocation4]
        %2319 = vst.msk [vmem:[%s2318] ss:$8 sm:$0x3] %vm631, %v2300
        %2320 = vst.msk [vmem:[%s2318] ss:$8 sm:$0x0] %vm631, %v2300
        %s2321 = scalar_lea.vmem %s407, 208 [#allocation4]
        %2322 = vst.msk [vmem:[%s2321] ss:$8 sm:$0x3] %vm631, %v2301
        %2323 = vst.msk [vmem:[%s2321] ss:$8 sm:$0x0] %vm631, %v2301
        %s2324 = scalar_lea.vmem %s407, 240 [#allocation4]
        %2325 = vst.msk [vmem:[%s2324] ss:$8 sm:$0x3] %vm631, %v2302
        %2326 = vst.msk [vmem:[%s2324] ss:$8 sm:$0x0] %vm631, %v2302
        %v2327 = vld [vmem:[%s373 + $0x9] sm:$0x1]
        %v2328 = vld [vmem:[%s373 + $0x19] sm:$0x1]
        %v2329 = vld [vmem:[%s373 + $0x29] sm:$0x1]
        %v2330 = vld [vmem:[%s373 + $0x39] sm:$0x1]
        %v2331 = vlaneseq
        %v2332 = vshrl.u32 %v2331, 7
        %v2333 = vsub.s32 0, %v2332
        %v2334 = vrot.slane %v2327, %v2333
        %v2335 = vmul.f32 %v428, %v2334
        %v2336 = vadd.f32 %v2335, 0.0
        %v2337 = vlaneseq
        %v2338 = vshrl.u32 %v2337, 7
        %v2339 = vsub.s32 0, %v2338
        %v2340 = vrot.slane %v2328, %v2339
        %v2341 = vmul.f32 %v438, %v2340
        %v2342 = vadd.f32 %v2336, %v2341
        %v2343 = vlaneseq
        %v2344 = vshrl.u32 %v2343, 7
        %v2345 = vsub.s32 0, %v2344
        %v2346 = vrot.slane %v2329, %v2345
        %v2347 = vmul.f32 %v448, %v2346
        %v2348 = vadd.f32 %v2342, %v2347
        %v2349 = vlaneseq
        %v2350 = vshrl.u32 %v2349, 7
        %v2351 = vsub.s32 0, %v2350
        %v2352 = vrot.slane %v2330, %v2351
        %v2353 = vmul.f32 %v458, %v2352
        %v2354 = vadd.f32 %v2348, %v2353
        %v2355 = vadd.f32 %v2354, %v469
        %v2357 = vsel %vm472, %v2355, 0
        %2359 = vmatprep.subr.mxu0 0.0
        %2360 = vmatpush1.msra.mxu0 0.0
        %2361 = vmatprep.subr.mxu0 0.0
        %2362 = vmatpush1.msra.mxu0 0.0
        %2363 = vmatprep.subr.mxu0 0.0
        %2364 = vmatpush1.msra.mxu0 0.0
        %2365 = vmatprep.subr.mxu0 0.0
        %2366 = vmatpush1.msra.mxu0 0.0
        %2367 = vmatprep.subr.mxu0 0.0
        %2368 = vmatpush1.msra.mxu0 0.0
        %2369 = vmatprep.subr.mxu0 0.0
        %2370 = vmatpush1.msra.mxu0 0.0
        %2371 = vmatprep.subr.mxu0 0.0
        %2372 = vmatpush1.msra.mxu0 0.0
        %2373 = vmatprep.subr.mxu0 0.0
        %2374 = vmatpush1.msra.mxu0 0.0
        %2375 = vmatprep.subr.mxu0 0.0
        %2376 = vmatpush1.msra.mxu0 %v420
        %2377 = vmatprep.subr.mxu0 0.0
        %2378 = vmatpush1.msra.mxu0 %v419
        %2379 = vmatprep.subr.mxu0 0.0
        %2380 = vmatpush1.msra.mxu0 %v418
        %2381 = vmatprep.subr.mxu0 0.0
        %2382 = vmatpush1.msra.mxu0 %v417
        %2383 = vmatprep.subr.mxu0 0.0
        %2384 = vmatpush1.msra.mxu0 %v416
        %2385 = vmatprep.subr.mxu0 0.0
        %2386 = vmatpush1.msra.mxu0 %v415
        %2387 = vmatprep.subr.mxu0 0.0
        %2388 = vmatpush1.msra.mxu0 %v414
        %2389 = vmatprep.subr.mxu0 0.0
        %2390 = vmatpush1.msra.mxu0 %v413
        %2391 = vmatprep.subr.mxu0 0.0
        %2392 = vmatpush2.msra.mxu0 0.0
        %2393 = vmatprep.subr.mxu0 0.0
        %2394 = vmatpush2.msra.mxu0 0.0
        %2395 = vmatprep.subr.mxu0 0.0
        %2396 = vmatpush2.msra.mxu0 0.0
        %2397 = vmatprep.subr.mxu0 0.0
        %2398 = vmatpush2.msra.mxu0 0.0
        %2399 = vmatprep.subr.mxu0 0.0
        %2400 = vmatpush2.msra.mxu0 0.0
        %2401 = vmatprep.subr.mxu0 0.0
        %2402 = vmatpush2.msra.mxu0 0.0
        %2403 = vmatprep.subr.mxu0 0.0
        %2404 = vmatpush2.msra.mxu0 0.0
        %2405 = vmatprep.subr.mxu0 0.0
        %2406 = vmatpush2.msra.mxu0 0.0
        %2407 = vmatprep.subr.mxu0 0.0
        %2408 = vmatpush2.msra.mxu0 0.0
        %2409 = vmatprep.subr.mxu0 0.0
        %2410 = vmatpush2.msra.mxu0 0.0
        %2411 = vmatprep.subr.mxu0 0.0
        %2412 = vmatpush2.msra.mxu0 0.0
        %2413 = vmatprep.subr.mxu0 0.0
        %2414 = vmatpush2.msra.mxu0 0.0
        %2415 = vmatprep.subr.mxu0 0.0
        %2416 = vmatpush2.msra.mxu0 0.0
        %2417 = vmatprep.subr.mxu0 0.0
        %2418 = vmatpush2.msra.mxu0 0.0
        %2419 = vmatprep.subr.mxu0 0.0
        %2420 = vmatpush2.msra.mxu0 0.0
        %2421 = vmatprep.subr.mxu0 0.0
        %2422 = vmatpush2.msra.mxu0 0.0
        %2423 = vmatprep.mubr.f32.mxu0 0.0
        %2424 = vmatmul.mubr.f32.gmra.mxu0 %v2357
        %v2425 = vpop.f32.mrf.mxu0
        %v2426 = vadd.f32 0.0, %v2425
        %v2427 = vpop.f32.mrf.mxu0
        %2428 = vdwg.mxu0
        %s2429 = scalar_lea.vmem %s380, 17 [#allocation3]
        %v2430 = vld [vmem:[%s2429] ss:$8 sm:$0x3]
        %s2431 = scalar_lea.vmem %s380, 49 [#allocation3]
        %v2432 = vld [vmem:[%s2431] ss:$8 sm:$0x3]
        %s2433 = scalar_lea.vmem %s380, 81 [#allocation3]
        %v2434 = vld [vmem:[%s2433] ss:$8 sm:$0x3]
        %s2435 = scalar_lea.vmem %s380, 113 [#allocation3]
        %v2436 = vld [vmem:[%s2435] ss:$8 sm:$0x3]
        %s2437 = scalar_lea.vmem %s380, 145 [#allocation3]
        %v2438 = vld [vmem:[%s2437] ss:$8 sm:$0x3]
        %s2439 = scalar_lea.vmem %s380, 177 [#allocation3]
        %v2440 = vld [vmem:[%s2439] ss:$8 sm:$0x3]
        %s2441 = scalar_lea.vmem %s380, 209 [#allocation3]
        %v2442 = vld [vmem:[%s2441] ss:$8 sm:$0x3]
        %s2443 = scalar_lea.vmem %s380, 241 [#allocation3]
        %v2444 = vld [vmem:[%s2443] ss:$8 sm:$0x3]
        %v2446 = vcombine.low %v2426, %v2426
        %v2447 = vcombine.high %v2426, %v2426
        %v2449 = vunpack.c.l.s4 1966171168
        %v2450 = vunpack.c.0.s8 %v2449
        %v2451 = vlaneseq
        %v2452 = vshrl.u32 %v2451, 7
        %v2453 = vsub.s32 %v2450, %v2452
        %v2454 = vrot.slane %v2446, %v2453
        %v2456 = vunpack.c.l.s4 1966171168
        %v2457 = vunpack.c.0.s8 %v2456
        %v2458 = vlaneseq
        %v2459 = vshrl.u32 %v2458, 7
        %v2460 = vsub.s32 %v2457, %v2459
        %v2461 = vrot.slane %v2447, %v2460
        %v2462 = vcombine.high %v2454, %v2454
        %v2463 = vcombine.high %v2461, %v2461
        %v2465 = vunpack.c.l.s4 1966171168
        %v2466 = vunpack.c.0.s8 %v2465
        %v2467 = vlaneseq
        %v2468 = vshrl.u32 %v2467, 7
        %v2469 = vsub.s32 %v2466, %v2468
        %v2470 = vrot.slane %v2454, %v2469
        %v2472 = vunpack.c.l.s4 1966171168
        %v2473 = vunpack.c.0.s8 %v2472
        %v2474 = vlaneseq
        %v2475 = vshrl.u32 %v2474, 7
        %v2476 = vsub.s32 %v2473, %v2475
        %v2477 = vrot.slane %v2461, %v2476
        %v2479 = vunpack.c.l.s4 1966171168
        %v2480 = vunpack.c.0.s8 %v2479
        %v2481 = vlaneseq
        %v2482 = vshrl.u32 %v2481, 7
        %v2483 = vsub.s32 %v2480, %v2482
        %v2484 = vrot.slane %v2462, %v2483
        %v2486 = vunpack.c.l.s4 1966171168
        %v2487 = vunpack.c.0.s8 %v2486
        %v2488 = vlaneseq
        %v2489 = vshrl.u32 %v2488, 7
        %v2490 = vsub.s32 %v2487, %v2489
        %v2491 = vrot.slane %v2463, %v2490
        %v2492 = vcombine.high %v2470, %v2470
        %v2493 = vcombine.high %v2477, %v2477
        %v2494 = vcombine.high %v2484, %v2484
        %v2495 = vcombine.high %v2491, %v2491
        %v2504 = vadd.f32 %v2430, %v2470
        %v2505 = vadd.f32 %v2432, %v2484
        %v2506 = vadd.f32 %v2434, %v2492
        %v2507 = vadd.f32 %v2436, %v2494
        %v2508 = vadd.f32 %v2438, %v2477
        %v2509 = vadd.f32 %v2440, %v2491
        %v2510 = vadd.f32 %v2442, %v2493
        %v2511 = vadd.f32 %v2444, %v2495
        %s2512 = scalar_lea.vmem %s407, 17 [#allocation4]
        %2513 = vst.msk [vmem:[%s2512] ss:$8 sm:$0x3] %vm631, %v2504
        %2514 = vst.msk [vmem:[%s2512] ss:$8 sm:$0x0] %vm631, %v2504
        %s2515 = scalar_lea.vmem %s407, 49 [#allocation4]
        %2516 = vst.msk [vmem:[%s2515] ss:$8 sm:$0x3] %vm631, %v2505
        %2517 = vst.msk [vmem:[%s2515] ss:$8 sm:$0x0] %vm631, %v2505
        %s2518 = scalar_lea.vmem %s407, 81 [#allocation4]
        %2519 = vst.msk [vmem:[%s2518] ss:$8 sm:$0x3] %vm631, %v2506
        %2520 = vst.msk [vmem:[%s2518] ss:$8 sm:$0x0] %vm631, %v2506
        %s2521 = scalar_lea.vmem %s407, 113 [#allocation4]
        %2522 = vst.msk [vmem:[%s2521] ss:$8 sm:$0x3] %vm631, %v2507
        %2523 = vst.msk [vmem:[%s2521] ss:$8 sm:$0x0] %vm631, %v2507
        %s2524 = scalar_lea.vmem %s407, 145 [#allocation4]
        %2525 = vst.msk [vmem:[%s2524] ss:$8 sm:$0x3] %vm631, %v2508
        %2526 = vst.msk [vmem:[%s2524] ss:$8 sm:$0x0] %vm631, %v2508
        %s2527 = scalar_lea.vmem %s407, 177 [#allocation4]
        %2528 = vst.msk [vmem:[%s2527] ss:$8 sm:$0x3] %vm631, %v2509
        %2529 = vst.msk [vmem:[%s2527] ss:$8 sm:$0x0] %vm631, %v2509
        %s2530 = scalar_lea.vmem %s407, 209 [#allocation4]
        %2531 = vst.msk [vmem:[%s2530] ss:$8 sm:$0x3] %vm631, %v2510
        %2532 = vst.msk [vmem:[%s2530] ss:$8 sm:$0x0] %vm631, %v2510
        %s2533 = scalar_lea.vmem %s407, 241 [#allocation4]
        %2534 = vst.msk [vmem:[%s2533] ss:$8 sm:$0x3] %vm631, %v2511
        %2535 = vst.msk [vmem:[%s2533] ss:$8 sm:$0x0] %vm631, %v2511
        %v2536 = vld [vmem:[%s373 + $0xa] sm:$0x1]
        %v2537 = vld [vmem:[%s373 + $0x1a] sm:$0x1]
        %v2538 = vld [vmem:[%s373 + $0x2a] sm:$0x1]
        %v2539 = vld [vmem:[%s373 + $0x3a] sm:$0x1]
        %v2540 = vlaneseq
        %v2541 = vshrl.u32 %v2540, 7
        %v2542 = vsub.s32 0, %v2541
        %v2543 = vrot.slane %v2536, %v2542
        %v2544 = vmul.f32 %v428, %v2543
        %v2545 = vadd.f32 %v2544, 0.0
        %v2546 = vlaneseq
        %v2547 = vshrl.u32 %v2546, 7
        %v2548 = vsub.s32 0, %v2547
        %v2549 = vrot.slane %v2537, %v2548
        %v2550 = vmul.f32 %v438, %v2549
        %v2551 = vadd.f32 %v2545, %v2550
        %v2552 = vlaneseq
        %v2553 = vshrl.u32 %v2552, 7
        %v2554 = vsub.s32 0, %v2553
        %v2555 = vrot.slane %v2538, %v2554
        %v2556 = vmul.f32 %v448, %v2555
        %v2557 = vadd.f32 %v2551, %v2556
        %v2558 = vlaneseq
        %v2559 = vshrl.u32 %v2558, 7
        %v2560 = vsub.s32 0, %v2559
        %v2561 = vrot.slane %v2539, %v2560
        %v2562 = vmul.f32 %v458, %v2561
        %v2563 = vadd.f32 %v2557, %v2562
        %v2564 = vadd.f32 %v2563, %v469
        %v2566 = vsel %vm472, %v2564, 0
        %2568 = vmatprep.subr.mxu0 0.0
        %2569 = vmatpush1.msra.mxu0 0.0
        %2570 = vmatprep.subr.mxu0 0.0
        %2571 = vmatpush1.msra.mxu0 0.0
        %2572 = vmatprep.subr.mxu0 0.0
        %2573 = vmatpush1.msra.mxu0 0.0
        %2574 = vmatprep.subr.mxu0 0.0
        %2575 = vmatpush1.msra.mxu0 0.0
        %2576 = vmatprep.subr.mxu0 0.0
        %2577 = vmatpush1.msra.mxu0 0.0
        %2578 = vmatprep.subr.mxu0 0.0
        %2579 = vmatpush1.msra.mxu0 0.0
        %2580 = vmatprep.subr.mxu0 0.0
        %2581 = vmatpush1.msra.mxu0 0.0
        %2582 = vmatprep.subr.mxu0 0.0
        %2583 = vmatpush1.msra.mxu0 0.0
        %2584 = vmatprep.subr.mxu0 0.0
        %2585 = vmatpush1.msra.mxu0 %v420
        %2586 = vmatprep.subr.mxu0 0.0
        %2587 = vmatpush1.msra.mxu0 %v419
        %2588 = vmatprep.subr.mxu0 0.0
        %2589 = vmatpush1.msra.mxu0 %v418
        %2590 = vmatprep.subr.mxu0 0.0
        %2591 = vmatpush1.msra.mxu0 %v417
        %2592 = vmatprep.subr.mxu0 0.0
        %2593 = vmatpush1.msra.mxu0 %v416
        %2594 = vmatprep.subr.mxu0 0.0
        %2595 = vmatpush1.msra.mxu0 %v415
        %2596 = vmatprep.subr.mxu0 0.0
        %2597 = vmatpush1.msra.mxu0 %v414
        %2598 = vmatprep.subr.mxu0 0.0
        %2599 = vmatpush1.msra.mxu0 %v413
        %2600 = vmatprep.subr.mxu0 0.0
        %2601 = vmatpush2.msra.mxu0 0.0
        %2602 = vmatprep.subr.mxu0 0.0
        %2603 = vmatpush2.msra.mxu0 0.0
        %2604 = vmatprep.subr.mxu0 0.0
        %2605 = vmatpush2.msra.mxu0 0.0
        %2606 = vmatprep.subr.mxu0 0.0
        %2607 = vmatpush2.msra.mxu0 0.0
        %2608 = vmatprep.subr.mxu0 0.0
        %2609 = vmatpush2.msra.mxu0 0.0
        %2610 = vmatprep.subr.mxu0 0.0
        %2611 = vmatpush2.msra.mxu0 0.0
        %2612 = vmatprep.subr.mxu0 0.0
        %2613 = vmatpush2.msra.mxu0 0.0
        %2614 = vmatprep.subr.mxu0 0.0
        %2615 = vmatpush2.msra.mxu0 0.0
        %2616 = vmatprep.subr.mxu0 0.0
        %2617 = vmatpush2.msra.mxu0 0.0
        %2618 = vmatprep.subr.mxu0 0.0
        %2619 = vmatpush2.msra.mxu0 0.0
        %2620 = vmatprep.subr.mxu0 0.0
        %2621 = vmatpush2.msra.mxu0 0.0
        %2622 = vmatprep.subr.mxu0 0.0
        %2623 = vmatpush2.msra.mxu0 0.0
        %2624 = vmatprep.subr.mxu0 0.0
        %2625 = vmatpush2.msra.mxu0 0.0
        %2626 = vmatprep.subr.mxu0 0.0
        %2627 = vmatpush2.msra.mxu0 0.0
        %2628 = vmatprep.subr.mxu0 0.0
        %2629 = vmatpush2.msra.mxu0 0.0
        %2630 = vmatprep.subr.mxu0 0.0
        %2631 = vmatpush2.msra.mxu0 0.0
        %2632 = vmatprep.mubr.f32.mxu0 0.0
        %2633 = vmatmul.mubr.f32.gmra.mxu0 %v2566
        %v2634 = vpop.f32.mrf.mxu0
        %v2635 = vadd.f32 0.0, %v2634
        %v2636 = vpop.f32.mrf.mxu0
        %2637 = vdwg.mxu0
        %s2638 = scalar_lea.vmem %s380, 18 [#allocation3]
        %v2639 = vld [vmem:[%s2638] ss:$8 sm:$0x3]
        %s2640 = scalar_lea.vmem %s380, 50 [#allocation3]
        %v2641 = vld [vmem:[%s2640] ss:$8 sm:$0x3]
        %s2642 = scalar_lea.vmem %s380, 82 [#allocation3]
        %v2643 = vld [vmem:[%s2642] ss:$8 sm:$0x3]
        %s2644 = scalar_lea.vmem %s380, 114 [#allocation3]
        %v2645 = vld [vmem:[%s2644] ss:$8 sm:$0x3]
        %s2646 = scalar_lea.vmem %s380, 146 [#allocation3]
        %v2647 = vld [vmem:[%s2646] ss:$8 sm:$0x3]
        %s2648 = scalar_lea.vmem %s380, 178 [#allocation3]
        %v2649 = vld [vmem:[%s2648] ss:$8 sm:$0x3]
        %s2650 = scalar_lea.vmem %s380, 210 [#allocation3]
        %v2651 = vld [vmem:[%s2650] ss:$8 sm:$0x3]
        %s2652 = scalar_lea.vmem %s380, 242 [#allocation3]
        %v2653 = vld [vmem:[%s2652] ss:$8 sm:$0x3]
        %v2655 = vcombine.low %v2635, %v2635
        %v2656 = vcombine.high %v2635, %v2635
        %v2658 = vunpack.c.l.s4 1966171168
        %v2659 = vunpack.c.0.s8 %v2658
        %v2660 = vlaneseq
        %v2661 = vshrl.u32 %v2660, 7
        %v2662 = vsub.s32 %v2659, %v2661
        %v2663 = vrot.slane %v2655, %v2662
        %v2665 = vunpack.c.l.s4 1966171168
        %v2666 = vunpack.c.0.s8 %v2665
        %v2667 = vlaneseq
        %v2668 = vshrl.u32 %v2667, 7
        %v2669 = vsub.s32 %v2666, %v2668
        %v2670 = vrot.slane %v2656, %v2669
        %v2671 = vcombine.high %v2663, %v2663
        %v2672 = vcombine.high %v2670, %v2670
        %v2674 = vunpack.c.l.s4 1966171168
        %v2675 = vunpack.c.0.s8 %v2674
        %v2676 = vlaneseq
        %v2677 = vshrl.u32 %v2676, 7
        %v2678 = vsub.s32 %v2675, %v2677
        %v2679 = vrot.slane %v2663, %v2678
        %v2681 = vunpack.c.l.s4 1966171168
        %v2682 = vunpack.c.0.s8 %v2681
        %v2683 = vlaneseq
        %v2684 = vshrl.u32 %v2683, 7
        %v2685 = vsub.s32 %v2682, %v2684
        %v2686 = vrot.slane %v2670, %v2685
        %v2688 = vunpack.c.l.s4 1966171168
        %v2689 = vunpack.c.0.s8 %v2688
        %v2690 = vlaneseq
        %v2691 = vshrl.u32 %v2690, 7
        %v2692 = vsub.s32 %v2689, %v2691
        %v2693 = vrot.slane %v2671, %v2692
        %v2695 = vunpack.c.l.s4 1966171168
        %v2696 = vunpack.c.0.s8 %v2695
        %v2697 = vlaneseq
        %v2698 = vshrl.u32 %v2697, 7
        %v2699 = vsub.s32 %v2696, %v2698
        %v2700 = vrot.slane %v2672, %v2699
        %v2701 = vcombine.high %v2679, %v2679
        %v2702 = vcombine.high %v2686, %v2686
        %v2703 = vcombine.high %v2693, %v2693
        %v2704 = vcombine.high %v2700, %v2700
        %v2713 = vadd.f32 %v2639, %v2679
        %v2714 = vadd.f32 %v2641, %v2693
        %v2715 = vadd.f32 %v2643, %v2701
        %v2716 = vadd.f32 %v2645, %v2703
        %v2717 = vadd.f32 %v2647, %v2686
        %v2718 = vadd.f32 %v2649, %v2700
        %v2719 = vadd.f32 %v2651, %v2702
        %v2720 = vadd.f32 %v2653, %v2704
        %s2721 = scalar_lea.vmem %s407, 18 [#allocation4]
        %2722 = vst.msk [vmem:[%s2721] ss:$8 sm:$0x3] %vm631, %v2713
        %2723 = vst.msk [vmem:[%s2721] ss:$8 sm:$0x0] %vm631, %v2713
        %s2724 = scalar_lea.vmem %s407, 50 [#allocation4]
        %2725 = vst.msk [vmem:[%s2724] ss:$8 sm:$0x3] %vm631, %v2714
        %2726 = vst.msk [vmem:[%s2724] ss:$8 sm:$0x0] %vm631, %v2714
        %s2727 = scalar_lea.vmem %s407, 82 [#allocation4]
        %2728 = vst.msk [vmem:[%s2727] ss:$8 sm:$0x3] %vm631, %v2715
        %2729 = vst.msk [vmem:[%s2727] ss:$8 sm:$0x0] %vm631, %v2715
        %s2730 = scalar_lea.vmem %s407, 114 [#allocation4]
        %2731 = vst.msk [vmem:[%s2730] ss:$8 sm:$0x3] %vm631, %v2716
        %2732 = vst.msk [vmem:[%s2730] ss:$8 sm:$0x0] %vm631, %v2716
        %s2733 = scalar_lea.vmem %s407, 146 [#allocation4]
        %2734 = vst.msk [vmem:[%s2733] ss:$8 sm:$0x3] %vm631, %v2717
        %2735 = vst.msk [vmem:[%s2733] ss:$8 sm:$0x0] %vm631, %v2717
        %s2736 = scalar_lea.vmem %s407, 178 [#allocation4]
        %2737 = vst.msk [vmem:[%s2736] ss:$8 sm:$0x3] %vm631, %v2718
        %2738 = vst.msk [vmem:[%s2736] ss:$8 sm:$0x0] %vm631, %v2718
        %s2739 = scalar_lea.vmem %s407, 210 [#allocation4]
        %2740 = vst.msk [vmem:[%s2739] ss:$8 sm:$0x3] %vm631, %v2719
        %2741 = vst.msk [vmem:[%s2739] ss:$8 sm:$0x0] %vm631, %v2719
        %s2742 = scalar_lea.vmem %s407, 242 [#allocation4]
        %2743 = vst.msk [vmem:[%s2742] ss:$8 sm:$0x3] %vm631, %v2720
        %2744 = vst.msk [vmem:[%s2742] ss:$8 sm:$0x0] %vm631, %v2720
        %v2745 = vld [vmem:[%s373 + $0xb] sm:$0x1]
        %v2746 = vld [vmem:[%s373 + $0x1b] sm:$0x1]
        %v2747 = vld [vmem:[%s373 + $0x2b] sm:$0x1]
        %v2748 = vld [vmem:[%s373 + $0x3b] sm:$0x1]
        %v2749 = vlaneseq
        %v2750 = vshrl.u32 %v2749, 7
        %v2751 = vsub.s32 0, %v2750
        %v2752 = vrot.slane %v2745, %v2751
        %v2753 = vmul.f32 %v428, %v2752
        %v2754 = vadd.f32 %v2753, 0.0
        %v2755 = vlaneseq
        %v2756 = vshrl.u32 %v2755, 7
        %v2757 = vsub.s32 0, %v2756
        %v2758 = vrot.slane %v2746, %v2757
        %v2759 = vmul.f32 %v438, %v2758
        %v2760 = vadd.f32 %v2754, %v2759
        %v2761 = vlaneseq
        %v2762 = vshrl.u32 %v2761, 7
        %v2763 = vsub.s32 0, %v2762
        %v2764 = vrot.slane %v2747, %v2763
        %v2765 = vmul.f32 %v448, %v2764
        %v2766 = vadd.f32 %v2760, %v2765
        %v2767 = vlaneseq
        %v2768 = vshrl.u32 %v2767, 7
        %v2769 = vsub.s32 0, %v2768
        %v2770 = vrot.slane %v2748, %v2769
        %v2771 = vmul.f32 %v458, %v2770
        %v2772 = vadd.f32 %v2766, %v2771
        %v2773 = vadd.f32 %v2772, %v469
        %v2775 = vsel %vm472, %v2773, 0
        %2777 = vmatprep.subr.mxu0 0.0
        %2778 = vmatpush1.msra.mxu0 0.0
        %2779 = vmatprep.subr.mxu0 0.0
        %2780 = vmatpush1.msra.mxu0 0.0
        %2781 = vmatprep.subr.mxu0 0.0
        %2782 = vmatpush1.msra.mxu0 0.0
        %2783 = vmatprep.subr.mxu0 0.0
        %2784 = vmatpush1.msra.mxu0 0.0
        %2785 = vmatprep.subr.mxu0 0.0
        %2786 = vmatpush1.msra.mxu0 0.0
        %2787 = vmatprep.subr.mxu0 0.0
        %2788 = vmatpush1.msra.mxu0 0.0
        %2789 = vmatprep.subr.mxu0 0.0
        %2790 = vmatpush1.msra.mxu0 0.0
        %2791 = vmatprep.subr.mxu0 0.0
        %2792 = vmatpush1.msra.mxu0 0.0
        %2793 = vmatprep.subr.mxu0 0.0
        %2794 = vmatpush1.msra.mxu0 %v420
        %2795 = vmatprep.subr.mxu0 0.0
        %2796 = vmatpush1.msra.mxu0 %v419
        %2797 = vmatprep.subr.mxu0 0.0
        %2798 = vmatpush1.msra.mxu0 %v418
        %2799 = vmatprep.subr.mxu0 0.0
        %2800 = vmatpush1.msra.mxu0 %v417
        %2801 = vmatprep.subr.mxu0 0.0
        %2802 = vmatpush1.msra.mxu0 %v416
        %2803 = vmatprep.subr.mxu0 0.0
        %2804 = vmatpush1.msra.mxu0 %v415
        %2805 = vmatprep.subr.mxu0 0.0
        %2806 = vmatpush1.msra.mxu0 %v414
        %2807 = vmatprep.subr.mxu0 0.0
        %2808 = vmatpush1.msra.mxu0 %v413
        %2809 = vmatprep.subr.mxu0 0.0
        %2810 = vmatpush2.msra.mxu0 0.0
        %2811 = vmatprep.subr.mxu0 0.0
        %2812 = vmatpush2.msra.mxu0 0.0
        %2813 = vmatprep.subr.mxu0 0.0
        %2814 = vmatpush2.msra.mxu0 0.0
        %2815 = vmatprep.subr.mxu0 0.0
        %2816 = vmatpush2.msra.mxu0 0.0
        %2817 = vmatprep.subr.mxu0 0.0
        %2818 = vmatpush2.msra.mxu0 0.0
        %2819 = vmatprep.subr.mxu0 0.0
        %2820 = vmatpush2.msra.mxu0 0.0
        %2821 = vmatprep.subr.mxu0 0.0
        %2822 = vmatpush2.msra.mxu0 0.0
        %2823 = vmatprep.subr.mxu0 0.0
        %2824 = vmatpush2.msra.mxu0 0.0
        %2825 = vmatprep.subr.mxu0 0.0
        %2826 = vmatpush2.msra.mxu0 0.0
        %2827 = vmatprep.subr.mxu0 0.0
        %2828 = vmatpush2.msra.mxu0 0.0
        %2829 = vmatprep.subr.mxu0 0.0
        %2830 = vmatpush2.msra.mxu0 0.0
        %2831 = vmatprep.subr.mxu0 0.0
        %2832 = vmatpush2.msra.mxu0 0.0
        %2833 = vmatprep.subr.mxu0 0.0
        %2834 = vmatpush2.msra.mxu0 0.0
        %2835 = vmatprep.subr.mxu0 0.0
        %2836 = vmatpush2.msra.mxu0 0.0
        %2837 = vmatprep.subr.mxu0 0.0
        %2838 = vmatpush2.msra.mxu0 0.0
        %2839 = vmatprep.subr.mxu0 0.0
        %2840 = vmatpush2.msra.mxu0 0.0
        %2841 = vmatprep.mubr.f32.mxu0 0.0
        %2842 = vmatmul.mubr.f32.gmra.mxu0 %v2775
        %v2843 = vpop.f32.mrf.mxu0
        %v2844 = vadd.f32 0.0, %v2843
        %v2845 = vpop.f32.mrf.mxu0
        %2846 = vdwg.mxu0
        %s2847 = scalar_lea.vmem %s380, 19 [#allocation3]
        %v2848 = vld [vmem:[%s2847] ss:$8 sm:$0x3]
        %s2849 = scalar_lea.vmem %s380, 51 [#allocation3]
        %v2850 = vld [vmem:[%s2849] ss:$8 sm:$0x3]
        %s2851 = scalar_lea.vmem %s380, 83 [#allocation3]
        %v2852 = vld [vmem:[%s2851] ss:$8 sm:$0x3]
        %s2853 = scalar_lea.vmem %s380, 115 [#allocation3]
        %v2854 = vld [vmem:[%s2853] ss:$8 sm:$0x3]
        %s2855 = scalar_lea.vmem %s380, 147 [#allocation3]
        %v2856 = vld [vmem:[%s2855] ss:$8 sm:$0x3]
        %s2857 = scalar_lea.vmem %s380, 179 [#allocation3]
        %v2858 = vld [vmem:[%s2857] ss:$8 sm:$0x3]
        %s2859 = scalar_lea.vmem %s380, 211 [#allocation3]
        %v2860 = vld [vmem:[%s2859] ss:$8 sm:$0x3]
        %s2861 = scalar_lea.vmem %s380, 243 [#allocation3]
        %v2862 = vld [vmem:[%s2861] ss:$8 sm:$0x3]
        %v2864 = vcombine.low %v2844, %v2844
        %v2865 = vcombine.high %v2844, %v2844
        %v2867 = vunpack.c.l.s4 1966171168
        %v2868 = vunpack.c.0.s8 %v2867
        %v2869 = vlaneseq
        %v2870 = vshrl.u32 %v2869, 7
        %v2871 = vsub.s32 %v2868, %v2870
        %v2872 = vrot.slane %v2864, %v2871
        %v2874 = vunpack.c.l.s4 1966171168
        %v2875 = vunpack.c.0.s8 %v2874
        %v2876 = vlaneseq
        %v2877 = vshrl.u32 %v2876, 7
        %v2878 = vsub.s32 %v2875, %v2877
        %v2879 = vrot.slane %v2865, %v2878
        %v2880 = vcombine.high %v2872, %v2872
        %v2881 = vcombine.high %v2879, %v2879
        %v2883 = vunpack.c.l.s4 1966171168
        %v2884 = vunpack.c.0.s8 %v2883
        %v2885 = vlaneseq
        %v2886 = vshrl.u32 %v2885, 7
        %v2887 = vsub.s32 %v2884, %v2886
        %v2888 = vrot.slane %v2872, %v2887
        %v2890 = vunpack.c.l.s4 1966171168
        %v2891 = vunpack.c.0.s8 %v2890
        %v2892 = vlaneseq
        %v2893 = vshrl.u32 %v2892, 7
        %v2894 = vsub.s32 %v2891, %v2893
        %v2895 = vrot.slane %v2879, %v2894
        %v2897 = vunpack.c.l.s4 1966171168
        %v2898 = vunpack.c.0.s8 %v2897
        %v2899 = vlaneseq
        %v2900 = vshrl.u32 %v2899, 7
        %v2901 = vsub.s32 %v2898, %v2900
        %v2902 = vrot.slane %v2880, %v2901
        %v2904 = vunpack.c.l.s4 1966171168
        %v2905 = vunpack.c.0.s8 %v2904
        %v2906 = vlaneseq
        %v2907 = vshrl.u32 %v2906, 7
        %v2908 = vsub.s32 %v2905, %v2907
        %v2909 = vrot.slane %v2881, %v2908
        %v2910 = vcombine.high %v2888, %v2888
        %v2911 = vcombine.high %v2895, %v2895
        %v2912 = vcombine.high %v2902, %v2902
        %v2913 = vcombine.high %v2909, %v2909
        %v2922 = vadd.f32 %v2848, %v2888
        %v2923 = vadd.f32 %v2850, %v2902
        %v2924 = vadd.f32 %v2852, %v2910
        %v2925 = vadd.f32 %v2854, %v2912
        %v2926 = vadd.f32 %v2856, %v2895
        %v2927 = vadd.f32 %v2858, %v2909
        %v2928 = vadd.f32 %v2860, %v2911
        %v2929 = vadd.f32 %v2862, %v2913
        %s2930 = scalar_lea.vmem %s407, 19 [#allocation4]
        %2931 = vst.msk [vmem:[%s2930] ss:$8 sm:$0x3] %vm631, %v2922
        %2932 = vst.msk [vmem:[%s2930] ss:$8 sm:$0x0] %vm631, %v2922
        %s2933 = scalar_lea.vmem %s407, 51 [#allocation4]
        %2934 = vst.msk [vmem:[%s2933] ss:$8 sm:$0x3] %vm631, %v2923
        %2935 = vst.msk [vmem:[%s2933] ss:$8 sm:$0x0] %vm631, %v2923
        %s2936 = scalar_lea.vmem %s407, 83 [#allocation4]
        %2937 = vst.msk [vmem:[%s2936] ss:$8 sm:$0x3] %vm631, %v2924
        %2938 = vst.msk [vmem:[%s2936] ss:$8 sm:$0x0] %vm631, %v2924
        %s2939 = scalar_lea.vmem %s407, 115 [#allocation4]
        %2940 = vst.msk [vmem:[%s2939] ss:$8 sm:$0x3] %vm631, %v2925
        %2941 = vst.msk [vmem:[%s2939] ss:$8 sm:$0x0] %vm631, %v2925
        %s2942 = scalar_lea.vmem %s407, 147 [#allocation4]
        %2943 = vst.msk [vmem:[%s2942] ss:$8 sm:$0x3] %vm631, %v2926
        %2944 = vst.msk [vmem:[%s2942] ss:$8 sm:$0x0] %vm631, %v2926
        %s2945 = scalar_lea.vmem %s407, 179 [#allocation4]
        %2946 = vst.msk [vmem:[%s2945] ss:$8 sm:$0x3] %vm631, %v2927
        %2947 = vst.msk [vmem:[%s2945] ss:$8 sm:$0x0] %vm631, %v2927
        %s2948 = scalar_lea.vmem %s407, 211 [#allocation4]
        %2949 = vst.msk [vmem:[%s2948] ss:$8 sm:$0x3] %vm631, %v2928
        %2950 = vst.msk [vmem:[%s2948] ss:$8 sm:$0x0] %vm631, %v2928
        %s2951 = scalar_lea.vmem %s407, 243 [#allocation4]
        %2952 = vst.msk [vmem:[%s2951] ss:$8 sm:$0x3] %vm631, %v2929
        %2953 = vst.msk [vmem:[%s2951] ss:$8 sm:$0x0] %vm631, %v2929
        %v2954 = vld [vmem:[%s373 + $0xc] sm:$0x1]
        %v2955 = vld [vmem:[%s373 + $0x1c] sm:$0x1]
        %v2956 = vld [vmem:[%s373 + $0x2c] sm:$0x1]
        %v2957 = vld [vmem:[%s373 + $0x3c] sm:$0x1]
        %v2958 = vlaneseq
        %v2959 = vshrl.u32 %v2958, 7
        %v2960 = vsub.s32 0, %v2959
        %v2961 = vrot.slane %v2954, %v2960
        %v2962 = vmul.f32 %v428, %v2961
        %v2963 = vadd.f32 %v2962, 0.0
        %v2964 = vlaneseq
        %v2965 = vshrl.u32 %v2964, 7
        %v2966 = vsub.s32 0, %v2965
        %v2967 = vrot.slane %v2955, %v2966
        %v2968 = vmul.f32 %v438, %v2967
        %v2969 = vadd.f32 %v2963, %v2968
        %v2970 = vlaneseq
        %v2971 = vshrl.u32 %v2970, 7
        %v2972 = vsub.s32 0, %v2971
        %v2973 = vrot.slane %v2956, %v2972
        %v2974 = vmul.f32 %v448, %v2973
        %v2975 = vadd.f32 %v2969, %v2974
        %v2976 = vlaneseq
        %v2977 = vshrl.u32 %v2976, 7
        %v2978 = vsub.s32 0, %v2977
        %v2979 = vrot.slane %v2957, %v2978
        %v2980 = vmul.f32 %v458, %v2979
        %v2981 = vadd.f32 %v2975, %v2980
        %v2982 = vadd.f32 %v2981, %v469
        %v2984 = vsel %vm472, %v2982, 0
        %2986 = vmatprep.subr.mxu0 0.0
        %2987 = vmatpush1.msra.mxu0 0.0
        %2988 = vmatprep.subr.mxu0 0.0
        %2989 = vmatpush1.msra.mxu0 0.0
        %2990 = vmatprep.subr.mxu0 0.0
        %2991 = vmatpush1.msra.mxu0 0.0
        %2992 = vmatprep.subr.mxu0 0.0
        %2993 = vmatpush1.msra.mxu0 0.0
        %2994 = vmatprep.subr.mxu0 0.0
        %2995 = vmatpush1.msra.mxu0 0.0
        %2996 = vmatprep.subr.mxu0 0.0
        %2997 = vmatpush1.msra.mxu0 0.0
        %2998 = vmatprep.subr.mxu0 0.0
        %2999 = vmatpush1.msra.mxu0 0.0
        %3000 = vmatprep.subr.mxu0 0.0
        %3001 = vmatpush1.msra.mxu0 0.0
        %3002 = vmatprep.subr.mxu0 0.0
        %3003 = vmatpush1.msra.mxu0 %v420
        %3004 = vmatprep.subr.mxu0 0.0
        %3005 = vmatpush1.msra.mxu0 %v419
        %3006 = vmatprep.subr.mxu0 0.0
        %3007 = vmatpush1.msra.mxu0 %v418
        %3008 = vmatprep.subr.mxu0 0.0
        %3009 = vmatpush1.msra.mxu0 %v417
        %3010 = vmatprep.subr.mxu0 0.0
        %3011 = vmatpush1.msra.mxu0 %v416
        %3012 = vmatprep.subr.mxu0 0.0
        %3013 = vmatpush1.msra.mxu0 %v415
        %3014 = vmatprep.subr.mxu0 0.0
        %3015 = vmatpush1.msra.mxu0 %v414
        %3016 = vmatprep.subr.mxu0 0.0
        %3017 = vmatpush1.msra.mxu0 %v413
        %3018 = vmatprep.subr.mxu0 0.0
        %3019 = vmatpush2.msra.mxu0 0.0
        %3020 = vmatprep.subr.mxu0 0.0
        %3021 = vmatpush2.msra.mxu0 0.0
        %3022 = vmatprep.subr.mxu0 0.0
        %3023 = vmatpush2.msra.mxu0 0.0
        %3024 = vmatprep.subr.mxu0 0.0
        %3025 = vmatpush2.msra.mxu0 0.0
        %3026 = vmatprep.subr.mxu0 0.0
        %3027 = vmatpush2.msra.mxu0 0.0
        %3028 = vmatprep.subr.mxu0 0.0
        %3029 = vmatpush2.msra.mxu0 0.0
        %3030 = vmatprep.subr.mxu0 0.0
        %3031 = vmatpush2.msra.mxu0 0.0
        %3032 = vmatprep.subr.mxu0 0.0
        %3033 = vmatpush2.msra.mxu0 0.0
        %3034 = vmatprep.subr.mxu0 0.0
        %3035 = vmatpush2.msra.mxu0 0.0
        %3036 = vmatprep.subr.mxu0 0.0
        %3037 = vmatpush2.msra.mxu0 0.0
        %3038 = vmatprep.subr.mxu0 0.0
        %3039 = vmatpush2.msra.mxu0 0.0
        %3040 = vmatprep.subr.mxu0 0.0
        %3041 = vmatpush2.msra.mxu0 0.0
        %3042 = vmatprep.subr.mxu0 0.0
        %3043 = vmatpush2.msra.mxu0 0.0
        %3044 = vmatprep.subr.mxu0 0.0
        %3045 = vmatpush2.msra.mxu0 0.0
        %3046 = vmatprep.subr.mxu0 0.0
        %3047 = vmatpush2.msra.mxu0 0.0
        %3048 = vmatprep.subr.mxu0 0.0
        %3049 = vmatpush2.msra.mxu0 0.0
        %3050 = vmatprep.mubr.f32.mxu0 0.0
        %3051 = vmatmul.mubr.f32.gmra.mxu0 %v2984
        %v3052 = vpop.f32.mrf.mxu0
        %v3053 = vadd.f32 0.0, %v3052
        %v3054 = vpop.f32.mrf.mxu0
        %3055 = vdwg.mxu0
        %s3056 = scalar_lea.vmem %s380, 20 [#allocation3]
        %v3057 = vld [vmem:[%s3056] ss:$8 sm:$0x3]
        %s3058 = scalar_lea.vmem %s380, 52 [#allocation3]
        %v3059 = vld [vmem:[%s3058] ss:$8 sm:$0x3]
        %s3060 = scalar_lea.vmem %s380, 84 [#allocation3]
        %v3061 = vld [vmem:[%s3060] ss:$8 sm:$0x3]
        %s3062 = scalar_lea.vmem %s380, 116 [#allocation3]
        %v3063 = vld [vmem:[%s3062] ss:$8 sm:$0x3]
        %s3064 = scalar_lea.vmem %s380, 148 [#allocation3]
        %v3065 = vld [vmem:[%s3064] ss:$8 sm:$0x3]
        %s3066 = scalar_lea.vmem %s380, 180 [#allocation3]
        %v3067 = vld [vmem:[%s3066] ss:$8 sm:$0x3]
        %s3068 = scalar_lea.vmem %s380, 212 [#allocation3]
        %v3069 = vld [vmem:[%s3068] ss:$8 sm:$0x3]
        %s3070 = scalar_lea.vmem %s380, 244 [#allocation3]
        %v3071 = vld [vmem:[%s3070] ss:$8 sm:$0x3]
        %v3073 = vcombine.low %v3053, %v3053
        %v3074 = vcombine.high %v3053, %v3053
        %v3076 = vunpack.c.l.s4 1966171168
        %v3077 = vunpack.c.0.s8 %v3076
        %v3078 = vlaneseq
        %v3079 = vshrl.u32 %v3078, 7
        %v3080 = vsub.s32 %v3077, %v3079
        %v3081 = vrot.slane %v3073, %v3080
        %v3083 = vunpack.c.l.s4 1966171168
        %v3084 = vunpack.c.0.s8 %v3083
        %v3085 = vlaneseq
        %v3086 = vshrl.u32 %v3085, 7
        %v3087 = vsub.s32 %v3084, %v3086
        %v3088 = vrot.slane %v3074, %v3087
        %v3089 = vcombine.high %v3081, %v3081
        %v3090 = vcombine.high %v3088, %v3088
        %v3092 = vunpack.c.l.s4 1966171168
        %v3093 = vunpack.c.0.s8 %v3092
        %v3094 = vlaneseq
        %v3095 = vshrl.u32 %v3094, 7
        %v3096 = vsub.s32 %v3093, %v3095
        %v3097 = vrot.slane %v3081, %v3096
        %v3099 = vunpack.c.l.s4 1966171168
        %v3100 = vunpack.c.0.s8 %v3099
        %v3101 = vlaneseq
        %v3102 = vshrl.u32 %v3101, 7
        %v3103 = vsub.s32 %v3100, %v3102
        %v3104 = vrot.slane %v3088, %v3103
        %v3106 = vunpack.c.l.s4 1966171168
        %v3107 = vunpack.c.0.s8 %v3106
        %v3108 = vlaneseq
        %v3109 = vshrl.u32 %v3108, 7
        %v3110 = vsub.s32 %v3107, %v3109
        %v3111 = vrot.slane %v3089, %v3110
        %v3113 = vunpack.c.l.s4 1966171168
        %v3114 = vunpack.c.0.s8 %v3113
        %v3115 = vlaneseq
        %v3116 = vshrl.u32 %v3115, 7
        %v3117 = vsub.s32 %v3114, %v3116
        %v3118 = vrot.slane %v3090, %v3117
        %v3119 = vcombine.high %v3097, %v3097
        %v3120 = vcombine.high %v3104, %v3104
        %v3121 = vcombine.high %v3111, %v3111
        %v3122 = vcombine.high %v3118, %v3118
        %v3131 = vadd.f32 %v3057, %v3097
        %v3132 = vadd.f32 %v3059, %v3111
        %v3133 = vadd.f32 %v3061, %v3119
        %v3134 = vadd.f32 %v3063, %v3121
        %v3135 = vadd.f32 %v3065, %v3104
        %v3136 = vadd.f32 %v3067, %v3118
        %v3137 = vadd.f32 %v3069, %v3120
        %v3138 = vadd.f32 %v3071, %v3122
        %s3139 = scalar_lea.vmem %s407, 20 [#allocation4]
        %3140 = vst.msk [vmem:[%s3139] ss:$8 sm:$0x3] %vm631, %v3131
        %3141 = vst.msk [vmem:[%s3139] ss:$8 sm:$0x0] %vm631, %v3131
        %s3142 = scalar_lea.vmem %s407, 52 [#allocation4]
        %3143 = vst.msk [vmem:[%s3142] ss:$8 sm:$0x3] %vm631, %v3132
        %3144 = vst.msk [vmem:[%s3142] ss:$8 sm:$0x0] %vm631, %v3132
        %s3145 = scalar_lea.vmem %s407, 84 [#allocation4]
        %3146 = vst.msk [vmem:[%s3145] ss:$8 sm:$0x3] %vm631, %v3133
        %3147 = vst.msk [vmem:[%s3145] ss:$8 sm:$0x0] %vm631, %v3133
        %s3148 = scalar_lea.vmem %s407, 116 [#allocation4]
        %3149 = vst.msk [vmem:[%s3148] ss:$8 sm:$0x3] %vm631, %v3134
        %3150 = vst.msk [vmem:[%s3148] ss:$8 sm:$0x0] %vm631, %v3134
        %s3151 = scalar_lea.vmem %s407, 148 [#allocation4]
        %3152 = vst.msk [vmem:[%s3151] ss:$8 sm:$0x3] %vm631, %v3135
        %3153 = vst.msk [vmem:[%s3151] ss:$8 sm:$0x0] %vm631, %v3135
        %s3154 = scalar_lea.vmem %s407, 180 [#allocation4]
        %3155 = vst.msk [vmem:[%s3154] ss:$8 sm:$0x3] %vm631, %v3136
        %3156 = vst.msk [vmem:[%s3154] ss:$8 sm:$0x0] %vm631, %v3136
        %s3157 = scalar_lea.vmem %s407, 212 [#allocation4]
        %3158 = vst.msk [vmem:[%s3157] ss:$8 sm:$0x3] %vm631, %v3137
        %3159 = vst.msk [vmem:[%s3157] ss:$8 sm:$0x0] %vm631, %v3137
        %s3160 = scalar_lea.vmem %s407, 244 [#allocation4]
        %3161 = vst.msk [vmem:[%s3160] ss:$8 sm:$0x3] %vm631, %v3138
        %3162 = vst.msk [vmem:[%s3160] ss:$8 sm:$0x0] %vm631, %v3138
        %v3163 = vld [vmem:[%s373 + $0xd] sm:$0x1]
        %v3164 = vld [vmem:[%s373 + $0x1d] sm:$0x1]
        %v3165 = vld [vmem:[%s373 + $0x2d] sm:$0x1]
        %v3166 = vld [vmem:[%s373 + $0x3d] sm:$0x1]
        %v3167 = vlaneseq
        %v3168 = vshrl.u32 %v3167, 7
        %v3169 = vsub.s32 0, %v3168
        %v3170 = vrot.slane %v3163, %v3169
        %v3171 = vmul.f32 %v428, %v3170
        %v3172 = vadd.f32 %v3171, 0.0
        %v3173 = vlaneseq
        %v3174 = vshrl.u32 %v3173, 7
        %v3175 = vsub.s32 0, %v3174
        %v3176 = vrot.slane %v3164, %v3175
        %v3177 = vmul.f32 %v438, %v3176
        %v3178 = vadd.f32 %v3172, %v3177
        %v3179 = vlaneseq
        %v3180 = vshrl.u32 %v3179, 7
        %v3181 = vsub.s32 0, %v3180
        %v3182 = vrot.slane %v3165, %v3181
        %v3183 = vmul.f32 %v448, %v3182
        %v3184 = vadd.f32 %v3178, %v3183
        %v3185 = vlaneseq
        %v3186 = vshrl.u32 %v3185, 7
        %v3187 = vsub.s32 0, %v3186
        %v3188 = vrot.slane %v3166, %v3187
        %v3189 = vmul.f32 %v458, %v3188
        %v3190 = vadd.f32 %v3184, %v3189
        %v3191 = vadd.f32 %v3190, %v469
        %v3193 = vsel %vm472, %v3191, 0
        %3195 = vmatprep.subr.mxu0 0.0
        %3196 = vmatpush1.msra.mxu0 0.0
        %3197 = vmatprep.subr.mxu0 0.0
        %3198 = vmatpush1.msra.mxu0 0.0
        %3199 = vmatprep.subr.mxu0 0.0
        %3200 = vmatpush1.msra.mxu0 0.0
        %3201 = vmatprep.subr.mxu0 0.0
        %3202 = vmatpush1.msra.mxu0 0.0
        %3203 = vmatprep.subr.mxu0 0.0
        %3204 = vmatpush1.msra.mxu0 0.0
        %3205 = vmatprep.subr.mxu0 0.0
        %3206 = vmatpush1.msra.mxu0 0.0
        %3207 = vmatprep.subr.mxu0 0.0
        %3208 = vmatpush1.msra.mxu0 0.0
        %3209 = vmatprep.subr.mxu0 0.0
        %3210 = vmatpush1.msra.mxu0 0.0
        %3211 = vmatprep.subr.mxu0 0.0
        %3212 = vmatpush1.msra.mxu0 %v420
        %3213 = vmatprep.subr.mxu0 0.0
        %3214 = vmatpush1.msra.mxu0 %v419
        %3215 = vmatprep.subr.mxu0 0.0
        %3216 = vmatpush1.msra.mxu0 %v418
        %3217 = vmatprep.subr.mxu0 0.0
        %3218 = vmatpush1.msra.mxu0 %v417
        %3219 = vmatprep.subr.mxu0 0.0
        %3220 = vmatpush1.msra.mxu0 %v416
        %3221 = vmatprep.subr.mxu0 0.0
        %3222 = vmatpush1.msra.mxu0 %v415
        %3223 = vmatprep.subr.mxu0 0.0
        %3224 = vmatpush1.msra.mxu0 %v414
        %3225 = vmatprep.subr.mxu0 0.0
        %3226 = vmatpush1.msra.mxu0 %v413
        %3227 = vmatprep.subr.mxu0 0.0
        %3228 = vmatpush2.msra.mxu0 0.0
        %3229 = vmatprep.subr.mxu0 0.0
        %3230 = vmatpush2.msra.mxu0 0.0
        %3231 = vmatprep.subr.mxu0 0.0
        %3232 = vmatpush2.msra.mxu0 0.0
        %3233 = vmatprep.subr.mxu0 0.0
        %3234 = vmatpush2.msra.mxu0 0.0
        %3235 = vmatprep.subr.mxu0 0.0
        %3236 = vmatpush2.msra.mxu0 0.0
        %3237 = vmatprep.subr.mxu0 0.0
        %3238 = vmatpush2.msra.mxu0 0.0
        %3239 = vmatprep.subr.mxu0 0.0
        %3240 = vmatpush2.msra.mxu0 0.0
        %3241 = vmatprep.subr.mxu0 0.0
        %3242 = vmatpush2.msra.mxu0 0.0
        %3243 = vmatprep.subr.mxu0 0.0
        %3244 = vmatpush2.msra.mxu0 0.0
        %3245 = vmatprep.subr.mxu0 0.0
        %3246 = vmatpush2.msra.mxu0 0.0
        %3247 = vmatprep.subr.mxu0 0.0
        %3248 = vmatpush2.msra.mxu0 0.0
        %3249 = vmatprep.subr.mxu0 0.0
        %3250 = vmatpush2.msra.mxu0 0.0
        %3251 = vmatprep.subr.mxu0 0.0
        %3252 = vmatpush2.msra.mxu0 0.0
        %3253 = vmatprep.subr.mxu0 0.0
        %3254 = vmatpush2.msra.mxu0 0.0
        %3255 = vmatprep.subr.mxu0 0.0
        %3256 = vmatpush2.msra.mxu0 0.0
        %3257 = vmatprep.subr.mxu0 0.0
        %3258 = vmatpush2.msra.mxu0 0.0
        %3259 = vmatprep.mubr.f32.mxu0 0.0
        %3260 = vmatmul.mubr.f32.gmra.mxu0 %v3193
        %v3261 = vpop.f32.mrf.mxu0
        %v3262 = vadd.f32 0.0, %v3261
        %v3263 = vpop.f32.mrf.mxu0
        %3264 = vdwg.mxu0
        %s3265 = scalar_lea.vmem %s380, 21 [#allocation3]
        %v3266 = vld [vmem:[%s3265] ss:$8 sm:$0x3]
        %s3267 = scalar_lea.vmem %s380, 53 [#allocation3]
        %v3268 = vld [vmem:[%s3267] ss:$8 sm:$0x3]
        %s3269 = scalar_lea.vmem %s380, 85 [#allocation3]
        %v3270 = vld [vmem:[%s3269] ss:$8 sm:$0x3]
        %s3271 = scalar_lea.vmem %s380, 117 [#allocation3]
        %v3272 = vld [vmem:[%s3271] ss:$8 sm:$0x3]
        %s3273 = scalar_lea.vmem %s380, 149 [#allocation3]
        %v3274 = vld [vmem:[%s3273] ss:$8 sm:$0x3]
        %s3275 = scalar_lea.vmem %s380, 181 [#allocation3]
        %v3276 = vld [vmem:[%s3275] ss:$8 sm:$0x3]
        %s3277 = scalar_lea.vmem %s380, 213 [#allocation3]
        %v3278 = vld [vmem:[%s3277] ss:$8 sm:$0x3]
        %s3279 = scalar_lea.vmem %s380, 245 [#allocation3]
        %v3280 = vld [vmem:[%s3279] ss:$8 sm:$0x3]
        %v3282 = vcombine.low %v3262, %v3262
        %v3283 = vcombine.high %v3262, %v3262
        %v3285 = vunpack.c.l.s4 1966171168
        %v3286 = vunpack.c.0.s8 %v3285
        %v3287 = vlaneseq
        %v3288 = vshrl.u32 %v3287, 7
        %v3289 = vsub.s32 %v3286, %v3288
        %v3290 = vrot.slane %v3282, %v3289
        %v3292 = vunpack.c.l.s4 1966171168
        %v3293 = vunpack.c.0.s8 %v3292
        %v3294 = vlaneseq
        %v3295 = vshrl.u32 %v3294, 7
        %v3296 = vsub.s32 %v3293, %v3295
        %v3297 = vrot.slane %v3283, %v3296
        %v3298 = vcombine.high %v3290, %v3290
        %v3299 = vcombine.high %v3297, %v3297
        %v3301 = vunpack.c.l.s4 1966171168
        %v3302 = vunpack.c.0.s8 %v3301
        %v3303 = vlaneseq
        %v3304 = vshrl.u32 %v3303, 7
        %v3305 = vsub.s32 %v3302, %v3304
        %v3306 = vrot.slane %v3290, %v3305
        %v3308 = vunpack.c.l.s4 1966171168
        %v3309 = vunpack.c.0.s8 %v3308
        %v3310 = vlaneseq
        %v3311 = vshrl.u32 %v3310, 7
        %v3312 = vsub.s32 %v3309, %v3311
        %v3313 = vrot.slane %v3297, %v3312
        %v3315 = vunpack.c.l.s4 1966171168
        %v3316 = vunpack.c.0.s8 %v3315
        %v3317 = vlaneseq
        %v3318 = vshrl.u32 %v3317, 7
        %v3319 = vsub.s32 %v3316, %v3318
        %v3320 = vrot.slane %v3298, %v3319
        %v3322 = vunpack.c.l.s4 1966171168
        %v3323 = vunpack.c.0.s8 %v3322
        %v3324 = vlaneseq
        %v3325 = vshrl.u32 %v3324, 7
        %v3326 = vsub.s32 %v3323, %v3325
        %v3327 = vrot.slane %v3299, %v3326
        %v3328 = vcombine.high %v3306, %v3306
        %v3329 = vcombine.high %v3313, %v3313
        %v3330 = vcombine.high %v3320, %v3320
        %v3331 = vcombine.high %v3327, %v3327
        %v3340 = vadd.f32 %v3266, %v3306
        %v3341 = vadd.f32 %v3268, %v3320
        %v3342 = vadd.f32 %v3270, %v3328
        %v3343 = vadd.f32 %v3272, %v3330
        %v3344 = vadd.f32 %v3274, %v3313
        %v3345 = vadd.f32 %v3276, %v3327
        %v3346 = vadd.f32 %v3278, %v3329
        %v3347 = vadd.f32 %v3280, %v3331
        %s3348 = scalar_lea.vmem %s407, 21 [#allocation4]
        %3349 = vst.msk [vmem:[%s3348] ss:$8 sm:$0x3] %vm631, %v3340
        %3350 = vst.msk [vmem:[%s3348] ss:$8 sm:$0x0] %vm631, %v3340
        %s3351 = scalar_lea.vmem %s407, 53 [#allocation4]
        %3352 = vst.msk [vmem:[%s3351] ss:$8 sm:$0x3] %vm631, %v3341
        %3353 = vst.msk [vmem:[%s3351] ss:$8 sm:$0x0] %vm631, %v3341
        %s3354 = scalar_lea.vmem %s407, 85 [#allocation4]
        %3355 = vst.msk [vmem:[%s3354] ss:$8 sm:$0x3] %vm631, %v3342
        %3356 = vst.msk [vmem:[%s3354] ss:$8 sm:$0x0] %vm631, %v3342
        %s3357 = scalar_lea.vmem %s407, 117 [#allocation4]
        %3358 = vst.msk [vmem:[%s3357] ss:$8 sm:$0x3] %vm631, %v3343
        %3359 = vst.msk [vmem:[%s3357] ss:$8 sm:$0x0] %vm631, %v3343
        %s3360 = scalar_lea.vmem %s407, 149 [#allocation4]
        %3361 = vst.msk [vmem:[%s3360] ss:$8 sm:$0x3] %vm631, %v3344
        %3362 = vst.msk [vmem:[%s3360] ss:$8 sm:$0x0] %vm631, %v3344
        %s3363 = scalar_lea.vmem %s407, 181 [#allocation4]
        %3364 = vst.msk [vmem:[%s3363] ss:$8 sm:$0x3] %vm631, %v3345
        %3365 = vst.msk [vmem:[%s3363] ss:$8 sm:$0x0] %vm631, %v3345
        %s3366 = scalar_lea.vmem %s407, 213 [#allocation4]
        %3367 = vst.msk [vmem:[%s3366] ss:$8 sm:$0x3] %vm631, %v3346
        %3368 = vst.msk [vmem:[%s3366] ss:$8 sm:$0x0] %vm631, %v3346
        %s3369 = scalar_lea.vmem %s407, 245 [#allocation4]
        %3370 = vst.msk [vmem:[%s3369] ss:$8 sm:$0x3] %vm631, %v3347
        %3371 = vst.msk [vmem:[%s3369] ss:$8 sm:$0x0] %vm631, %v3347
        %v3372 = vld [vmem:[%s373 + $0xe] sm:$0x1]
        %v3373 = vld [vmem:[%s373 + $0x1e] sm:$0x1]
        %v3374 = vld [vmem:[%s373 + $0x2e] sm:$0x1]
        %v3375 = vld [vmem:[%s373 + $0x3e] sm:$0x1]
        %v3376 = vlaneseq
        %v3377 = vshrl.u32 %v3376, 7
        %v3378 = vsub.s32 0, %v3377
        %v3379 = vrot.slane %v3372, %v3378
        %v3380 = vmul.f32 %v428, %v3379
        %v3381 = vadd.f32 %v3380, 0.0
        %v3382 = vlaneseq
        %v3383 = vshrl.u32 %v3382, 7
        %v3384 = vsub.s32 0, %v3383
        %v3385 = vrot.slane %v3373, %v3384
        %v3386 = vmul.f32 %v438, %v3385
        %v3387 = vadd.f32 %v3381, %v3386
        %v3388 = vlaneseq
        %v3389 = vshrl.u32 %v3388, 7
        %v3390 = vsub.s32 0, %v3389
        %v3391 = vrot.slane %v3374, %v3390
        %v3392 = vmul.f32 %v448, %v3391
        %v3393 = vadd.f32 %v3387, %v3392
        %v3394 = vlaneseq
        %v3395 = vshrl.u32 %v3394, 7
        %v3396 = vsub.s32 0, %v3395
        %v3397 = vrot.slane %v3375, %v3396
        %v3398 = vmul.f32 %v458, %v3397
        %v3399 = vadd.f32 %v3393, %v3398
        %v3400 = vadd.f32 %v3399, %v469
        %v3402 = vsel %vm472, %v3400, 0
        %3404 = vmatprep.subr.mxu0 0.0
        %3405 = vmatpush1.msra.mxu0 0.0
        %3406 = vmatprep.subr.mxu0 0.0
        %3407 = vmatpush1.msra.mxu0 0.0
        %3408 = vmatprep.subr.mxu0 0.0
        %3409 = vmatpush1.msra.mxu0 0.0
        %3410 = vmatprep.subr.mxu0 0.0
        %3411 = vmatpush1.msra.mxu0 0.0
        %3412 = vmatprep.subr.mxu0 0.0
        %3413 = vmatpush1.msra.mxu0 0.0
        %3414 = vmatprep.subr.mxu0 0.0
        %3415 = vmatpush1.msra.mxu0 0.0
        %3416 = vmatprep.subr.mxu0 0.0
        %3417 = vmatpush1.msra.mxu0 0.0
        %3418 = vmatprep.subr.mxu0 0.0
        %3419 = vmatpush1.msra.mxu0 0.0
        %3420 = vmatprep.subr.mxu0 0.0
        %3421 = vmatpush1.msra.mxu0 %v420
        %3422 = vmatprep.subr.mxu0 0.0
        %3423 = vmatpush1.msra.mxu0 %v419
        %3424 = vmatprep.subr.mxu0 0.0
        %3425 = vmatpush1.msra.mxu0 %v418
        %3426 = vmatprep.subr.mxu0 0.0
        %3427 = vmatpush1.msra.mxu0 %v417
        %3428 = vmatprep.subr.mxu0 0.0
        %3429 = vmatpush1.msra.mxu0 %v416
        %3430 = vmatprep.subr.mxu0 0.0
        %3431 = vmatpush1.msra.mxu0 %v415
        %3432 = vmatprep.subr.mxu0 0.0
        %3433 = vmatpush1.msra.mxu0 %v414
        %3434 = vmatprep.subr.mxu0 0.0
        %3435 = vmatpush1.msra.mxu0 %v413
        %3436 = vmatprep.subr.mxu0 0.0
        %3437 = vmatpush2.msra.mxu0 0.0
        %3438 = vmatprep.subr.mxu0 0.0
        %3439 = vmatpush2.msra.mxu0 0.0
        %3440 = vmatprep.subr.mxu0 0.0
        %3441 = vmatpush2.msra.mxu0 0.0
        %3442 = vmatprep.subr.mxu0 0.0
        %3443 = vmatpush2.msra.mxu0 0.0
        %3444 = vmatprep.subr.mxu0 0.0
        %3445 = vmatpush2.msra.mxu0 0.0
        %3446 = vmatprep.subr.mxu0 0.0
        %3447 = vmatpush2.msra.mxu0 0.0
        %3448 = vmatprep.subr.mxu0 0.0
        %3449 = vmatpush2.msra.mxu0 0.0
        %3450 = vmatprep.subr.mxu0 0.0
        %3451 = vmatpush2.msra.mxu0 0.0
        %3452 = vmatprep.subr.mxu0 0.0
        %3453 = vmatpush2.msra.mxu0 0.0
        %3454 = vmatprep.subr.mxu0 0.0
        %3455 = vmatpush2.msra.mxu0 0.0
        %3456 = vmatprep.subr.mxu0 0.0
        %3457 = vmatpush2.msra.mxu0 0.0
        %3458 = vmatprep.subr.mxu0 0.0
        %3459 = vmatpush2.msra.mxu0 0.0
        %3460 = vmatprep.subr.mxu0 0.0
        %3461 = vmatpush2.msra.mxu0 0.0
        %3462 = vmatprep.subr.mxu0 0.0
        %3463 = vmatpush2.msra.mxu0 0.0
        %3464 = vmatprep.subr.mxu0 0.0
        %3465 = vmatpush2.msra.mxu0 0.0
        %3466 = vmatprep.subr.mxu0 0.0
        %3467 = vmatpush2.msra.mxu0 0.0
        %3468 = vmatprep.mubr.f32.mxu0 0.0
        %3469 = vmatmul.mubr.f32.gmra.mxu0 %v3402
        %v3470 = vpop.f32.mrf.mxu0
        %v3471 = vadd.f32 0.0, %v3470
        %v3472 = vpop.f32.mrf.mxu0
        %3473 = vdwg.mxu0
        %s3474 = scalar_lea.vmem %s380, 22 [#allocation3]
        %v3475 = vld [vmem:[%s3474] ss:$8 sm:$0x3]
        %s3476 = scalar_lea.vmem %s380, 54 [#allocation3]
        %v3477 = vld [vmem:[%s3476] ss:$8 sm:$0x3]
        %s3478 = scalar_lea.vmem %s380, 86 [#allocation3]
        %v3479 = vld [vmem:[%s3478] ss:$8 sm:$0x3]
        %s3480 = scalar_lea.vmem %s380, 118 [#allocation3]
        %v3481 = vld [vmem:[%s3480] ss:$8 sm:$0x3]
        %s3482 = scalar_lea.vmem %s380, 150 [#allocation3]
        %v3483 = vld [vmem:[%s3482] ss:$8 sm:$0x3]
        %s3484 = scalar_lea.vmem %s380, 182 [#allocation3]
        %v3485 = vld [vmem:[%s3484] ss:$8 sm:$0x3]
        %s3486 = scalar_lea.vmem %s380, 214 [#allocation3]
        %v3487 = vld [vmem:[%s3486] ss:$8 sm:$0x3]
        %s3488 = scalar_lea.vmem %s380, 246 [#allocation3]
        %v3489 = vld [vmem:[%s3488] ss:$8 sm:$0x3]
        %v3491 = vcombine.low %v3471, %v3471
        %v3492 = vcombine.high %v3471, %v3471
        %v3494 = vunpack.c.l.s4 1966171168
        %v3495 = vunpack.c.0.s8 %v3494
        %v3496 = vlaneseq
        %v3497 = vshrl.u32 %v3496, 7
        %v3498 = vsub.s32 %v3495, %v3497
        %v3499 = vrot.slane %v3491, %v3498
        %v3501 = vunpack.c.l.s4 1966171168
        %v3502 = vunpack.c.0.s8 %v3501
        %v3503 = vlaneseq
        %v3504 = vshrl.u32 %v3503, 7
        %v3505 = vsub.s32 %v3502, %v3504
        %v3506 = vrot.slane %v3492, %v3505
        %v3507 = vcombine.high %v3499, %v3499
        %v3508 = vcombine.high %v3506, %v3506
        %v3510 = vunpack.c.l.s4 1966171168
        %v3511 = vunpack.c.0.s8 %v3510
        %v3512 = vlaneseq
        %v3513 = vshrl.u32 %v3512, 7
        %v3514 = vsub.s32 %v3511, %v3513
        %v3515 = vrot.slane %v3499, %v3514
        %v3517 = vunpack.c.l.s4 1966171168
        %v3518 = vunpack.c.0.s8 %v3517
        %v3519 = vlaneseq
        %v3520 = vshrl.u32 %v3519, 7
        %v3521 = vsub.s32 %v3518, %v3520
        %v3522 = vrot.slane %v3506, %v3521
        %v3524 = vunpack.c.l.s4 1966171168
        %v3525 = vunpack.c.0.s8 %v3524
        %v3526 = vlaneseq
        %v3527 = vshrl.u32 %v3526, 7
        %v3528 = vsub.s32 %v3525, %v3527
        %v3529 = vrot.slane %v3507, %v3528
        %v3531 = vunpack.c.l.s4 1966171168
        %v3532 = vunpack.c.0.s8 %v3531
        %v3533 = vlaneseq
        %v3534 = vshrl.u32 %v3533, 7
        %v3535 = vsub.s32 %v3532, %v3534
        %v3536 = vrot.slane %v3508, %v3535
        %v3537 = vcombine.high %v3515, %v3515
        %v3538 = vcombine.high %v3522, %v3522
        %v3539 = vcombine.high %v3529, %v3529
        %v3540 = vcombine.high %v3536, %v3536
        %v3549 = vadd.f32 %v3475, %v3515
        %v3550 = vadd.f32 %v3477, %v3529
        %v3551 = vadd.f32 %v3479, %v3537
        %v3552 = vadd.f32 %v3481, %v3539
        %v3553 = vadd.f32 %v3483, %v3522
        %v3554 = vadd.f32 %v3485, %v3536
        %v3555 = vadd.f32 %v3487, %v3538
        %v3556 = vadd.f32 %v3489, %v3540
        %s3557 = scalar_lea.vmem %s407, 22 [#allocation4]
        %3558 = vst.msk [vmem:[%s3557] ss:$8 sm:$0x3] %vm631, %v3549
        %3559 = vst.msk [vmem:[%s3557] ss:$8 sm:$0x0] %vm631, %v3549
        %s3560 = scalar_lea.vmem %s407, 54 [#allocation4]
        %3561 = vst.msk [vmem:[%s3560] ss:$8 sm:$0x3] %vm631, %v3550
        %3562 = vst.msk [vmem:[%s3560] ss:$8 sm:$0x0] %vm631, %v3550
        %s3563 = scalar_lea.vmem %s407, 86 [#allocation4]
        %3564 = vst.msk [vmem:[%s3563] ss:$8 sm:$0x3] %vm631, %v3551
        %3565 = vst.msk [vmem:[%s3563] ss:$8 sm:$0x0] %vm631, %v3551
        %s3566 = scalar_lea.vmem %s407, 118 [#allocation4]
        %3567 = vst.msk [vmem:[%s3566] ss:$8 sm:$0x3] %vm631, %v3552
        %3568 = vst.msk [vmem:[%s3566] ss:$8 sm:$0x0] %vm631, %v3552
        %s3569 = scalar_lea.vmem %s407, 150 [#allocation4]
        %3570 = vst.msk [vmem:[%s3569] ss:$8 sm:$0x3] %vm631, %v3553
        %3571 = vst.msk [vmem:[%s3569] ss:$8 sm:$0x0] %vm631, %v3553
        %s3572 = scalar_lea.vmem %s407, 182 [#allocation4]
        %3573 = vst.msk [vmem:[%s3572] ss:$8 sm:$0x3] %vm631, %v3554
        %3574 = vst.msk [vmem:[%s3572] ss:$8 sm:$0x0] %vm631, %v3554
        %s3575 = scalar_lea.vmem %s407, 214 [#allocation4]
        %3576 = vst.msk [vmem:[%s3575] ss:$8 sm:$0x3] %vm631, %v3555
        %3577 = vst.msk [vmem:[%s3575] ss:$8 sm:$0x0] %vm631, %v3555
        %s3578 = scalar_lea.vmem %s407, 246 [#allocation4]
        %3579 = vst.msk [vmem:[%s3578] ss:$8 sm:$0x3] %vm631, %v3556
        %3580 = vst.msk [vmem:[%s3578] ss:$8 sm:$0x0] %vm631, %v3556
        %v3581 = vld [vmem:[%s373 + $0xf] sm:$0x1]
        %v3582 = vld [vmem:[%s373 + $0x1f] sm:$0x1]
        %v3583 = vld [vmem:[%s373 + $0x2f] sm:$0x1]
        %v3584 = vld [vmem:[%s373 + $0x3f] sm:$0x1]
        %v3585 = vlaneseq
        %v3586 = vshrl.u32 %v3585, 7
        %v3587 = vsub.s32 0, %v3586
        %v3588 = vrot.slane %v3581, %v3587
        %v3589 = vmul.f32 %v428, %v3588
        %v3590 = vadd.f32 %v3589, 0.0
        %v3591 = vlaneseq
        %v3592 = vshrl.u32 %v3591, 7
        %v3593 = vsub.s32 0, %v3592
        %v3594 = vrot.slane %v3582, %v3593
        %v3595 = vmul.f32 %v438, %v3594
        %v3596 = vadd.f32 %v3590, %v3595
        %v3597 = vlaneseq
        %v3598 = vshrl.u32 %v3597, 7
        %v3599 = vsub.s32 0, %v3598
        %v3600 = vrot.slane %v3583, %v3599
        %v3601 = vmul.f32 %v448, %v3600
        %v3602 = vadd.f32 %v3596, %v3601
        %v3603 = vlaneseq
        %v3604 = vshrl.u32 %v3603, 7
        %v3605 = vsub.s32 0, %v3604
        %v3606 = vrot.slane %v3584, %v3605
        %v3607 = vmul.f32 %v458, %v3606
        %v3608 = vadd.f32 %v3602, %v3607
        %v3609 = vadd.f32 %v3608, %v469
        %v3611 = vsel %vm472, %v3609, 0
        %3613 = vmatprep.subr.mxu0 0.0
        %3614 = vmatpush1.msra.mxu0 0.0
        %3615 = vmatprep.subr.mxu0 0.0
        %3616 = vmatpush1.msra.mxu0 0.0
        %3617 = vmatprep.subr.mxu0 0.0
        %3618 = vmatpush1.msra.mxu0 0.0
        %3619 = vmatprep.subr.mxu0 0.0
        %3620 = vmatpush1.msra.mxu0 0.0
        %3621 = vmatprep.subr.mxu0 0.0
        %3622 = vmatpush1.msra.mxu0 0.0
        %3623 = vmatprep.subr.mxu0 0.0
        %3624 = vmatpush1.msra.mxu0 0.0
        %3625 = vmatprep.subr.mxu0 0.0
        %3626 = vmatpush1.msra.mxu0 0.0
        %3627 = vmatprep.subr.mxu0 0.0
        %3628 = vmatpush1.msra.mxu0 0.0
        %3629 = vmatprep.subr.mxu0 0.0
        %3630 = vmatpush1.msra.mxu0 %v420
        %3631 = vmatprep.subr.mxu0 0.0
        %3632 = vmatpush1.msra.mxu0 %v419
        %3633 = vmatprep.subr.mxu0 0.0
        %3634 = vmatpush1.msra.mxu0 %v418
        %3635 = vmatprep.subr.mxu0 0.0
        %3636 = vmatpush1.msra.mxu0 %v417
        %3637 = vmatprep.subr.mxu0 0.0
        %3638 = vmatpush1.msra.mxu0 %v416
        %3639 = vmatprep.subr.mxu0 0.0
        %3640 = vmatpush1.msra.mxu0 %v415
        %3641 = vmatprep.subr.mxu0 0.0
        %3642 = vmatpush1.msra.mxu0 %v414
        %3643 = vmatprep.subr.mxu0 0.0
        %3644 = vmatpush1.msra.mxu0 %v413
        %3645 = vmatprep.subr.mxu0 0.0
        %3646 = vmatpush2.msra.mxu0 0.0
        %3647 = vmatprep.subr.mxu0 0.0
        %3648 = vmatpush2.msra.mxu0 0.0
        %3649 = vmatprep.subr.mxu0 0.0
        %3650 = vmatpush2.msra.mxu0 0.0
        %3651 = vmatprep.subr.mxu0 0.0
        %3652 = vmatpush2.msra.mxu0 0.0
        %3653 = vmatprep.subr.mxu0 0.0
        %3654 = vmatpush2.msra.mxu0 0.0
        %3655 = vmatprep.subr.mxu0 0.0
        %3656 = vmatpush2.msra.mxu0 0.0
        %3657 = vmatprep.subr.mxu0 0.0
        %3658 = vmatpush2.msra.mxu0 0.0
        %3659 = vmatprep.subr.mxu0 0.0
        %3660 = vmatpush2.msra.mxu0 0.0
        %3661 = vmatprep.subr.mxu0 0.0
        %3662 = vmatpush2.msra.mxu0 0.0
        %3663 = vmatprep.subr.mxu0 0.0
        %3664 = vmatpush2.msra.mxu0 0.0
        %3665 = vmatprep.subr.mxu0 0.0
        %3666 = vmatpush2.msra.mxu0 0.0
        %3667 = vmatprep.subr.mxu0 0.0
        %3668 = vmatpush2.msra.mxu0 0.0
        %3669 = vmatprep.subr.mxu0 0.0
        %3670 = vmatpush2.msra.mxu0 0.0
        %3671 = vmatprep.subr.mxu0 0.0
        %3672 = vmatpush2.msra.mxu0 0.0
        %3673 = vmatprep.subr.mxu0 0.0
        %3674 = vmatpush2.msra.mxu0 0.0
        %3675 = vmatprep.subr.mxu0 0.0
        %3676 = vmatpush2.msra.mxu0 0.0
        %3677 = vmatprep.mubr.f32.mxu0 0.0
        %3678 = vmatmul.mubr.f32.gmra.mxu0 %v3611
        %v3679 = vpop.f32.mrf.mxu0
        %v3680 = vadd.f32 0.0, %v3679
        %v3681 = vpop.f32.mrf.mxu0
        %3682 = vdwg.mxu0
        %s3683 = scalar_lea.vmem %s380, 23 [#allocation3]
        %v3684 = vld [vmem:[%s3683] ss:$8 sm:$0x3]
        %s3685 = scalar_lea.vmem %s380, 55 [#allocation3]
        %v3686 = vld [vmem:[%s3685] ss:$8 sm:$0x3]
        %s3687 = scalar_lea.vmem %s380, 87 [#allocation3]
        %v3688 = vld [vmem:[%s3687] ss:$8 sm:$0x3]
        %s3689 = scalar_lea.vmem %s380, 119 [#allocation3]
        %v3690 = vld [vmem:[%s3689] ss:$8 sm:$0x3]
        %s3691 = scalar_lea.vmem %s380, 151 [#allocation3]
        %v3692 = vld [vmem:[%s3691] ss:$8 sm:$0x3]
        %s3693 = scalar_lea.vmem %s380, 183 [#allocation3]
        %v3694 = vld [vmem:[%s3693] ss:$8 sm:$0x3]
        %s3695 = scalar_lea.vmem %s380, 215 [#allocation3]
        %v3696 = vld [vmem:[%s3695] ss:$8 sm:$0x3]
        %s3697 = scalar_lea.vmem %s380, 247 [#allocation3]
        %v3698 = vld [vmem:[%s3697] ss:$8 sm:$0x3]
        %v3700 = vcombine.low %v3680, %v3680
        %v3701 = vcombine.high %v3680, %v3680
        %v3703 = vunpack.c.l.s4 1966171168
        %v3704 = vunpack.c.0.s8 %v3703
        %v3705 = vlaneseq
        %v3706 = vshrl.u32 %v3705, 7
        %v3707 = vsub.s32 %v3704, %v3706
        %v3708 = vrot.slane %v3700, %v3707
        %v3710 = vunpack.c.l.s4 1966171168
        %v3711 = vunpack.c.0.s8 %v3710
        %v3712 = vlaneseq
        %v3713 = vshrl.u32 %v3712, 7
        %v3714 = vsub.s32 %v3711, %v3713
        %v3715 = vrot.slane %v3701, %v3714
        %v3716 = vcombine.high %v3708, %v3708
        %v3717 = vcombine.high %v3715, %v3715
        %v3719 = vunpack.c.l.s4 1966171168
        %v3720 = vunpack.c.0.s8 %v3719
        %v3721 = vlaneseq
        %v3722 = vshrl.u32 %v3721, 7
        %v3723 = vsub.s32 %v3720, %v3722
        %v3724 = vrot.slane %v3708, %v3723
        %v3726 = vunpack.c.l.s4 1966171168
        %v3727 = vunpack.c.0.s8 %v3726
        %v3728 = vlaneseq
        %v3729 = vshrl.u32 %v3728, 7
        %v3730 = vsub.s32 %v3727, %v3729
        %v3731 = vrot.slane %v3715, %v3730
        %v3733 = vunpack.c.l.s4 1966171168
        %v3734 = vunpack.c.0.s8 %v3733
        %v3735 = vlaneseq
        %v3736 = vshrl.u32 %v3735, 7
        %v3737 = vsub.s32 %v3734, %v3736
        %v3738 = vrot.slane %v3716, %v3737
        %v3740 = vunpack.c.l.s4 1966171168
        %v3741 = vunpack.c.0.s8 %v3740
        %v3742 = vlaneseq
        %v3743 = vshrl.u32 %v3742, 7
        %v3744 = vsub.s32 %v3741, %v3743
        %v3745 = vrot.slane %v3717, %v3744
        %v3746 = vcombine.high %v3724, %v3724
        %v3747 = vcombine.high %v3731, %v3731
        %v3748 = vcombine.high %v3738, %v3738
        %v3749 = vcombine.high %v3745, %v3745
        %v3758 = vadd.f32 %v3684, %v3724
        %v3759 = vadd.f32 %v3686, %v3738
        %v3760 = vadd.f32 %v3688, %v3746
        %v3761 = vadd.f32 %v3690, %v3748
        %v3762 = vadd.f32 %v3692, %v3731
        %v3763 = vadd.f32 %v3694, %v3745
        %v3764 = vadd.f32 %v3696, %v3747
        %v3765 = vadd.f32 %v3698, %v3749
        %s3766 = scalar_lea.vmem %s407, 23 [#allocation4]
        %3767 = vst.msk [vmem:[%s3766] ss:$8 sm:$0x3] %vm631, %v3758
        %3768 = vst.msk [vmem:[%s3766] ss:$8 sm:$0x0] %vm631, %v3758
        %s3769 = scalar_lea.vmem %s407, 55 [#allocation4]
        %3770 = vst.msk [vmem:[%s3769] ss:$8 sm:$0x3] %vm631, %v3759
        %3771 = vst.msk [vmem:[%s3769] ss:$8 sm:$0x0] %vm631, %v3759
        %s3772 = scalar_lea.vmem %s407, 87 [#allocation4]
        %3773 = vst.msk [vmem:[%s3772] ss:$8 sm:$0x3] %vm631, %v3760
        %3774 = vst.msk [vmem:[%s3772] ss:$8 sm:$0x0] %vm631, %v3760
        %s3775 = scalar_lea.vmem %s407, 119 [#allocation4]
        %3776 = vst.msk [vmem:[%s3775] ss:$8 sm:$0x3] %vm631, %v3761
        %3777 = vst.msk [vmem:[%s3775] ss:$8 sm:$0x0] %vm631, %v3761
        %s3778 = scalar_lea.vmem %s407, 151 [#allocation4]
        %3779 = vst.msk [vmem:[%s3778] ss:$8 sm:$0x3] %vm631, %v3762
        %3780 = vst.msk [vmem:[%s3778] ss:$8 sm:$0x0] %vm631, %v3762
        %s3781 = scalar_lea.vmem %s407, 183 [#allocation4]
        %3782 = vst.msk [vmem:[%s3781] ss:$8 sm:$0x3] %vm631, %v3763
        %3783 = vst.msk [vmem:[%s3781] ss:$8 sm:$0x0] %vm631, %v3763
        %s3784 = scalar_lea.vmem %s407, 215 [#allocation4]
        %3785 = vst.msk [vmem:[%s3784] ss:$8 sm:$0x3] %vm631, %v3764
        %3786 = vst.msk [vmem:[%s3784] ss:$8 sm:$0x0] %vm631, %v3764
        %s3787 = scalar_lea.vmem %s407, 247 [#allocation4]
        %3788 = vst.msk [vmem:[%s3787] ss:$8 sm:$0x3] %vm631, %v3765
        %3789 = vst.msk [vmem:[%s3787] ss:$8 sm:$0x0] %vm631, %v3765
        %s3790 = sand.u32 %s157, 1
        %s3791 = sand.u32 %s157, 1
        %s3792 = smul.addr %s3791, 256
        %s3793 = scalar_lea.vmem [#allocation4], %s3792
        // Predicated region
        $region102: #{u_shortcut_process.1} parent=92 // pred_check
          %p3794 = pneg %p167
        $region103: #{u_shortcut_process.1} parent=92 // pred_check_branch
          %3796 = sbr.rel (%p3794) target = $region105
        $region104: #{u_shortcut_process.1} parent=92 // pred_region
          %s3797 = smul.u32 2, %s21
          %s3798 = smul.addr %s3797, 2
          %s3799 = smul.addr %s20, 64
          %s3800 = sadd.s32 %s3798, %s3799
          %s3801 = smul.addr %s3800, 8
          %s3802 = scalar_lea.vmem %s5, %s3801
          // Predicated region
          $region106: #{u_shortcut_process.1} parent=104 // pred_check
            _
          $region107: #{u_shortcut_process.1} parent=104 // pred_check_branch
            %3804 = sbr.rel (0) target = $region109
          $region108: #{u_shortcut_process.1} parent=104 // pred_region
            // Predicated region
            $region110: #{u_shortcut_process.1} parent=108 // pred_check
              _
            $region111: #{u_shortcut_process.1} parent=108 // pred_check_branch
              %3806 = sbr.rel (0) target = $region113
            $region112: #{u_shortcut_process.1} parent=108 // pred_region
              loop: start=0, step=1, limit=1
              $region114: #{u_shortcut_process.1} parent=112 // loop_pre_header
                _
              $region115: #{u_shortcut_process.1} parent=112 // loop_header
                %s3808 = sphi 0, %s3812
                %p3809 = scmp.ge.s32.totalorder %s3808, 1
                %s3813 = sphi %s3793, %s3793
                %s3814 = sphi %s3802, %s3802
              $region116: #{u_shortcut_process.1} parent=112 // loop_header_branch
                %3811 = sbr.rel (%p3809) target = $region120
              $region117: #{u_shortcut_process.1} parent=112 // loop_body
                %v3815 = vld [vmem:[%s3813] sm:$0xff]
                %3816 = vst [vmem:[%s3814] sm:$0xff] %v3815
                %v3817 = vld [vmem:[%s3813 + $0x8] sm:$0xff]
                %3818 = vst [vmem:[%s3814 + $0x8] sm:$0xff] %v3817
                %v3819 = vld [vmem:[%s3813 + $0x10] sm:$0xff]
                %3820 = vst [vmem:[%s3814 + $0x10] sm:$0xff] %v3819
                %v3821 = vld [vmem:[%s3813 + $0x18] sm:$0xff]
                %3822 = vst [vmem:[%s3814 + $0x18] sm:$0xff] %v3821
                %v3823 = vld [vmem:[%s3813 + $0x20] sm:$0xff]
                %3824 = vst [vmem:[%s3814 + $0x40] sm:$0xff] %v3823
                %v3825 = vld [vmem:[%s3813 + $0x28] sm:$0xff]
                %3826 = vst [vmem:[%s3814 + $0x48] sm:$0xff] %v3825
                %v3827 = vld [vmem:[%s3813 + $0x30] sm:$0xff]
                %3828 = vst [vmem:[%s3814 + $0x50] sm:$0xff] %v3827
                %v3829 = vld [vmem:[%s3813 + $0x38] sm:$0xff]
                %3830 = vst [vmem:[%s3814 + $0x58] sm:$0xff] %v3829
                %v3831 = vld [vmem:[%s3813 + $0x40] sm:$0xff]
                %3832 = vst [vmem:[%s3814 + $0x80] sm:$0xff] %v3831
                %v3833 = vld [vmem:[%s3813 + $0x48] sm:$0xff]
                %3834 = vst [vmem:[%s3814 + $0x88] sm:$0xff] %v3833
                %v3835 = vld [vmem:[%s3813 + $0x50] sm:$0xff]
                %3836 = vst [vmem:[%s3814 + $0x90] sm:$0xff] %v3835
                %v3837 = vld [vmem:[%s3813 + $0x58] sm:$0xff]
                %3838 = vst [vmem:[%s3814 + $0x98] sm:$0xff] %v3837
                %v3839 = vld [vmem:[%s3813 + $0x60] sm:$0xff]
                %3840 = vst [vmem:[%s3814 + $0xc0] sm:$0xff] %v3839
                %v3841 = vld [vmem:[%s3813 + $0x68] sm:$0xff]
                %3842 = vst [vmem:[%s3814 + $0xc8] sm:$0xff] %v3841
                %v3843 = vld [vmem:[%s3813 + $0x70] sm:$0xff]
                %3844 = vst [vmem:[%s3814 + $0xd0] sm:$0xff] %v3843
                %v3845 = vld [vmem:[%s3813 + $0x78] sm:$0xff]
                %3846 = vst [vmem:[%s3814 + $0xd8] sm:$0xff] %v3845
                %v3847 = vld [vmem:[%s3813 + $0x80] sm:$0xff]
                %3848 = vst [vmem:[%s3814 + $0x100] sm:$0xff] %v3847
                %v3849 = vld [vmem:[%s3813 + $0x88] sm:$0xff]
                %3850 = vst [vmem:[%s3814 + $0x108] sm:$0xff] %v3849
                %v3851 = vld [vmem:[%s3813 + $0x90] sm:$0xff]
                %3852 = vst [vmem:[%s3814 + $0x110] sm:$0xff] %v3851
                %v3853 = vld [vmem:[%s3813 + $0x98] sm:$0xff]
                %3854 = vst [vmem:[%s3814 + $0x118] sm:$0xff] %v3853
                %v3855 = vld [vmem:[%s3813 + $0xa0] sm:$0xff]
                %3856 = vst [vmem:[%s3814 + $0x140] sm:$0xff] %v3855
                %v3857 = vld [vmem:[%s3813 + $0xa8] sm:$0xff]
                %3858 = vst [vmem:[%s3814 + $0x148] sm:$0xff] %v3857
                %v3859 = vld [vmem:[%s3813 + $0xb0] sm:$0xff]
                %3860 = vst [vmem:[%s3814 + $0x150] sm:$0xff] %v3859
                %v3861 = vld [vmem:[%s3813 + $0xb8] sm:$0xff]
                %3862 = vst [vmem:[%s3814 + $0x158] sm:$0xff] %v3861
                %v3863 = vld [vmem:[%s3813 + $0xc0] sm:$0xff]
                %3864 = vst [vmem:[%s3814 + $0x180] sm:$0xff] %v3863
                %v3865 = vld [vmem:[%s3813 + $0xc8] sm:$0xff]
                %3866 = vst [vmem:[%s3814 + $0x188] sm:$0xff] %v3865
                %v3867 = vld [vmem:[%s3813 + $0xd0] sm:$0xff]
                %3868 = vst [vmem:[%s3814 + $0x190] sm:$0xff] %v3867
                %v3869 = vld [vmem:[%s3813 + $0xd8] sm:$0xff]
                %3870 = vst [vmem:[%s3814 + $0x198] sm:$0xff] %v3869
                %v3871 = vld [vmem:[%s3813 + $0xe0] sm:$0xff]
                %3872 = vst [vmem:[%s3814 + $0x1c0] sm:$0xff] %v3871
                %v3873 = vld [vmem:[%s3813 + $0xe8] sm:$0xff]
                %3874 = vst [vmem:[%s3814 + $0x1c8] sm:$0xff] %v3873
                %v3875 = vld [vmem:[%s3813 + $0xf0] sm:$0xff]
                %3876 = vst [vmem:[%s3814 + $0x1d0] sm:$0xff] %v3875
                %v3877 = vld [vmem:[%s3813 + $0xf8] sm:$0xff]
                %3878 = vst [vmem:[%s3814 + $0x1d8] sm:$0xff] %v3877
              $region118: #{u_shortcut_process.1} parent=112 // loop_footer
                %s3812 = sadd.s32 1, %s3808
              $region119: #{u_shortcut_process.1} parent=112 // loop_footer_branch
                %3807 = sbr.rel target = $region115
              $region120: #{u_shortcut_process.1} parent=112 // loop_exit
                _
            $region113: #{u_shortcut_process.1} parent=108 // pred_fallthru
              _
            // Predicated region
            $region121: #{u_shortcut_process.1} parent=108 // pred_check
              _
            $region122: #{u_shortcut_process.1} parent=108 // pred_check_branch
              %3880 = sbr.rel target = $region124
            $region123: #{u_shortcut_process.1} parent=108 // pred_region
              _
            $region124: #{u_shortcut_process.1} parent=108 // pred_fallthru
              _
          $region109: #{u_shortcut_process.1} parent=104 // pred_fallthru
            _
          %3881 = vnop
        $region105: #{u_shortcut_process.1} parent=92 // pred_fallthru
          _
      $region93: #{u_shortcut_process.1} parent=5 // pred_fallthru
        _
      %p3882 = scmp.le.s32.totalorder 2, %s11
      // Predicated region
      $region125: #{u_shortcut_process.1} parent=5 // pred_check
        %p3883 = pneg %p3882
      $region126: #{u_shortcut_process.1} parent=5 // pred_check_branch
        %3885 = sbr.rel (%p3883) target = $region128
      $region127: #{u_shortcut_process.1} parent=5 // pred_region
        %s3886 = ssub.s32 %s11, 2
        // Predicated region
        $region129: #{u_shortcut_process.1} parent=127 // pred_check
          %p3887 = pneg %p173
        $region130: #{u_shortcut_process.1} parent=127 // pred_check_branch
          %3889 = sbr.rel (%p3887) target = $region132
        $region131: #{u_shortcut_process.1} parent=127 // pred_region
          %s3890 = sand.u32 %s158, 1
          %s3891 = sand.u32 %s158, 1
          %s3892 = smul.addr %s3891, 256
          %s3893 = scalar_lea.vmem [#allocation4], %s3892
        $region132: #{u_shortcut_process.1} parent=127 // pred_fallthru
          _
      $region128: #{u_shortcut_process.1} parent=5 // pred_fallthru
        _
    $region6: #{u_shortcut_process.1} parent=1 // loop_footer
      %s15 = sadd.s32 1, %s11
    $region7: #{u_shortcut_process.1} parent=1 // loop_footer_branch
      %10 = sbr.rel target = $region3
    $region8: #{u_shortcut_process.1} parent=1 // loop_exit
      _

</llo_original>
